<compile_context>
chip_gen: v7x
topology: tpu7x:2x2x1
jax: 0.10.0
libtpu: 0.0.40
codegen_flags: <defaults>
</compile_context>

<pallas_src>
import functools

import jax
import jax.numpy as jnp
from jax.experimental import pallas as pl
from jax.experimental.pallas import tpu as pltpu

LANE = 128       # lane-dense padded channel / feature width
CONV1_K = 128    # 5*5*3  = 75  -> padded contraction dim
CONV2_K = 256    # 5*5*6  = 150 -> padded contraction dim


# ----------------------------------------------------------------------------
# Kernels
# ----------------------------------------------------------------------------
def _conv_pool_relu_kernel(t_ref, w_ref, b_ref, o_ref):
    """t: (4, tm, K) bf16 pool-tap-major im2col patches; w: (K, 128) bf16;
    b: (1, 128) f32.   o = relu(max_t(t[t] @ w) + b) == relu(maxpool(conv))."""
    z = jnp.dot(t_ref[0], w_ref[...], preferred_element_type=jnp.float32)
    for t in range(1, 4):
        z = jnp.maximum(
            z, jnp.dot(t_ref[t], w_ref[...], preferred_element_type=jnp.float32))
    o_ref[...] = jnp.maximum(z + b_ref[...], 0.0).astype(o_ref.dtype)


def _conv2_fc_head_kernel(t_ref, w2_ref, bc2_ref, wf1_ref, bf1_ref,
                          wf2_ref, bf2_ref, wf3_ref, bf3_ref, o_ref, *, bp):
    """Fused conv2 + 2x2 maxpool + ReLU + fc1 + ReLU + fc2 + ReLU + fc3 +
    log_softmax.  Rows of t are ordered (spatial s = pi*5+pj, padded batch)."""
    # conv2 + bias + maxpool + relu  ->  (25*bp, 128), channels 0..15 real
    z = jnp.dot(t_ref[0], w2_ref[...], preferred_element_type=jnp.float32)
    for t in range(1, 4):
        z = jnp.maximum(
            z, jnp.dot(t_ref[t], w2_ref[...], preferred_element_type=jnp.float32))
    h = jnp.maximum(z + bc2_ref[...], 0.0).astype(jnp.bfloat16)

    # fc1: the PyTorch NCHW flatten (index c*25 + s) is folded into wf1 as one
    # (128, 128) slab per spatial position, so fc1 = sum_s h[s-rows] @ wf1[s].
    acc = jnp.zeros((bp, LANE), jnp.float32)
    for s in range(25):                                   # 8-row aligned slices
        acc = acc + jnp.dot(h[s * bp:(s + 1) * bp, :], wf1_ref[s],
                            preferred_element_type=jnp.float32)
    a1 = jnp.maximum(acc + bf1_ref[...], 0.0)             # lanes 0..119 real

    a2 = jnp.dot(a1.astype(jnp.bfloat16), wf2_ref[...],
                 preferred_element_type=jnp.float32) + bf2_ref[...]
    a2 = jnp.maximum(a2, 0.0)                             # lanes 0..83 real

    z3 = jnp.dot(a2.astype(jnp.bfloat16), wf3_ref[...],
                 preferred_element_type=jnp.float32) + bf3_ref[...]
    # bf3 padding lanes carry -1e30 so they vanish from the softmax sum.
    m = jnp.max(z3, axis=-1, keepdims=True)
    e = jnp.exp(z3 - m)
    den = jnp.sum(e, axis=-1, keepdims=True)
    o_ref[...] = (z3 - m - jnp.log(den)).astype(o_ref.dtype)


# ----------------------------------------------------------------------------
# Pallas wrappers
# ----------------------------------------------------------------------------
def conv_pool_relu(taps, w, b, *, tm=56):
    """taps: (4, M, K) bf16, w: (K, 128) bf16, b: (1, 128) f32 -> (M, 128) f32."""
    _, m, k = taps.shape
    mp = ((m + tm - 1) // tm) * tm                # no M % tm assumption
    if mp != m:
        taps = jnp.pad(taps, ((0, 0), (0, mp - m), (0, 0)))
    flops = 2 * 4 * mp * k * LANE
    bytes_accessed = taps.size * 2 + w.size * 2 + b.size * 4 + mp * LANE * 4
    out = pl.pallas_call(
        _conv_pool_relu_kernel,
        out_shape=jax.ShapeDtypeStruct((mp, LANE), jnp.float32),
        grid=(mp // tm,),
        in_specs=[
            pl.BlockSpec((4, tm, k), lambda i: (0, i, 0)),
            pl.BlockSpec((k, LANE), lambda i: (0, 0)),
            pl.BlockSpec((1, LANE), lambda i: (0, 0)),
        ],
        out_specs=pl.BlockSpec((tm, LANE), lambda i: (i, 0)),
        compiler_params=pltpu.CompilerParams(dimension_semantics=("parallel",)),
        cost_estimate=pl.CostEstimate(flops=flops, transcendentals=0,
                                      bytes_accessed=bytes_accessed),
    )(taps, w, b)
    return out[:m]


def conv2_fc_head(taps, w2, bc2, wf1s, bf1, wf2, bf2, wf3, bf3, *, bp):
    """taps: (4, 25*bp, 256) bf16 -> log-probs (bp, 128) f32 (first 10 real)."""
    _, m, k = taps.shape
    flops = 2 * (4 * m * k * LANE + 25 * bp * LANE * LANE + 2 * bp * LANE * LANE)
    bytes_accessed = (taps.size * 2 + w2.size * 2 + wf1s.size * 2
                      + wf2.size * 2 + wf3.size * 2 + 5 * LANE * 4
                      + bp * LANE * 4)
    return pl.pallas_call(
        functools.partial(_conv2_fc_head_kernel, bp=bp),
        out_shape=jax.ShapeDtypeStruct((bp, LANE), jnp.float32),
        grid=(1,),
        in_specs=[
            pl.BlockSpec((4, m, k), lambda i: (0, 0, 0)),
            pl.BlockSpec((k, LANE), lambda i: (0, 0)),
            pl.BlockSpec((1, LANE), lambda i: (0, 0)),
            pl.BlockSpec((25, LANE, LANE), lambda i: (0, 0, 0)),
            pl.BlockSpec((1, LANE), lambda i: (0, 0)),
            pl.BlockSpec((LANE, LANE), lambda i: (0, 0)),
            pl.BlockSpec((1, LANE), lambda i: (0, 0)),
            pl.BlockSpec((LANE, LANE), lambda i: (0, 0)),
            pl.BlockSpec((1, LANE), lambda i: (0, 0)),
        ],
        out_specs=pl.BlockSpec((bp, LANE), lambda i: (0, 0)),
        compiler_params=pltpu.CompilerParams(dimension_semantics=("arbitrary",)),
        cost_estimate=pl.CostEstimate(flops=flops, transcendentals=bp * LANE,
                                      bytes_accessed=bytes_accessed),
    )(taps, w2, bc2, wf1s, bf1, wf2, bf2, wf3, bf3)


# ----------------------------------------------------------------------------
# XLA glue (tiny tensors): im2col + pool-tap-major rearrangement
# ----------------------------------------------------------------------------
def _im2col(x, k):
    """x: (B, H, W, C) NHWC -> (B, H-k+1, W-k+1, k*k*C); patch index order
    (ki, kj, c), matching the (2, 3, 1, 0) conv-weight transform."""
    B, H, W, C = x.shape
    OH, OW = H - k + 1, W - k + 1
    cols = [x[:, i:i + OH, j:j + OW, :] for i in range(k) for j in range(k)]
    return jnp.concatenate(cols, axis=-1)


# ----------------------------------------------------------------------------
# One-time (offline) weight repack: pad to lane-dense shapes, cast to bf16,
# fold the NCHW flatten into fc1.
# ----------------------------------------------------------------------------
def prepare_params(p):
    def conv_mat(w, kpad):
        cout, cin, kh, kw = w.shape
        m = jnp.transpose(w, (2, 3, 1, 0)).reshape(kh * kw * cin, cout)
        return jnp.pad(m, ((0, kpad - m.shape[0]),
                           (0, LANE - cout))).astype(jnp.bfloat16)

    def bias_vec(b, pad_value=0.0):
        return jnp.pad(b.astype(jnp.float32), (0, LANE - b.shape[0]),
                       constant_values=pad_value).reshape(1, LANE)

    # fc1: x.view(B,-1) order is c*25 + (pi*5+pj); regroup into per-spatial
    # (16 -> 120) slabs, padded to (25, 128, 128).
    wf1 = p["fc1_w"].reshape(120, 16, 25)              # (o, c, s)
    wf1 = jnp.transpose(wf1, (2, 1, 0))                # (s, c, o)
    wf1 = jnp.pad(wf1, ((0, 0), (0, LANE - 16),
                        (0, LANE - 120))).astype(jnp.bfloat16)
    wf2 = jnp.pad(p["fc2_w"].T, ((0, LANE - 120),
                                 (0, LANE - 84))).astype(jnp.bfloat16)
    wf3 = jnp.pad(p["fc3_w"].T, ((0, LANE - 84),
                                 (0, LANE - 10))).astype(jnp.bfloat16)
    return {
        "w1": conv_mat(p["conv1_w"], CONV1_K), "b1": bias_vec(p["conv1_b"]),
        "w2": conv_mat(p["conv2_w"], CONV2_K), "b2": bias_vec(p["conv2_b"]),
        "wf1": wf1, "bf1": bias_vec(p["fc1_b"]),
        "wf2": wf2, "bf2": bias_vec(p["fc2_b"]),
        "wf3": wf3, "bf3": bias_vec(p["fc3_b"], pad_value=-1e30),
    }


# ----------------------------------------------------------------------------
# LeNet forward
# ----------------------------------------------------------------------------
def lenet_forward(x_nchw, prep):
    B = x_nchw.shape[0]
    bp = ((B + 7) // 8) * 8                       # batch padded to sublane mult

    # ---- call A: conv1 + pool + relu -------------------------------------
    x = jnp.transpose(x_nchw, (0, 2, 3, 1))                     # (B,32,32,3)
    p1 = _im2col(x, 5)                                          # (B,28,28,75)
    p1 = p1.reshape(B, 14, 2, 14, 2, 75)                        # (b,i,di,j,dj,K)
    taps1 = jnp.transpose(p1, (2, 4, 0, 1, 3, 5)).reshape(4, B * 196, 75)
    taps1 = jnp.pad(taps1, ((0, 0), (0, 0),
                            (0, CONV1_K - 75))).astype(jnp.bfloat16)
    h1 = conv_pool_relu(taps1, prep["w1"], prep["b1"])          # (B*196, 128)

    # ---- call B: conv2 + pool + relu + fc1/fc2/fc3 + log_softmax ---------
    h1 = h1.reshape(B, 14, 14, LANE)[..., :6]                   # drop lane pad
    p2 = _im2col(h1, 5)                                         # (B,10,10,150)
    p2 = p2.reshape(B, 5, 2, 5, 2, 150)                         # (b,pi,di,pj,dj,K)
    taps2 = jnp.transpose(p2, (2, 4, 1, 3, 0, 5))               # (di,dj,pi,pj,b,K)
    taps2 = jnp.pad(taps2, ((0, 0), (0, 0), (0, 0), (0, 0),
                            (0, bp - B), (0, CONV2_K - 150)))
    taps2 = taps2.reshape(4, 25 * bp, CONV2_K).astype(jnp.bfloat16)
    out = conv2_fc_head(taps2, prep["w2"], prep["b2"],
                        prep["wf1"], prep["bf1"], prep["wf2"], prep["bf2"],
                        prep["wf3"], prep["bf3"], bp=bp)        # (bp, 128)
    return out[:B, :10]


# ----------------------------------------------------------------------------
# Deterministic PyTorch-style init (uniform(-1/sqrt(fan_in), 1/sqrt(fan_in)))
# ----------------------------------------------------------------------------
def init_params(key):
    ks = jax.random.split(key, 10)

    def u(k, shape, fan_in):
        bound = 1.0 / (fan_in ** 0.5)
        return jax.random.uniform(k, shape, jnp.float32, -bound, bound)

    return {
        "conv1_w": u(ks[0], (6, 3, 5, 5), 3 * 25),
        "conv1_b": u(ks[1], (6,), 3 * 25),
        "conv2_w": u(ks[2], (16, 6, 5, 5), 6 * 25),
        "conv2_b": u(ks[3], (16,), 6 * 25),
        "fc1_w": u(ks[4], (120, 400), 400),
        "fc1_b": u(ks[5], (120,), 400),
        "fc2_w": u(ks[6], (84, 120), 120),
        "fc2_b": u(ks[7], (84,), 120),
        "fc3_w": u(ks[8], (10, 84), 84),
        "fc3_b": u(ks[9], (10,), 84),
    }


if __name__ == "__main__":
    key = jax.random.PRNGKey(0)
    kx, kp = jax.random.split(key)
    # LeNet geometry (fc1 in = 16*5*5 = 400) implies 3x32x32 inputs.
    x = jax.random.normal(kx, (2, 3, 32, 32), dtype=jnp.float32)
    params = init_params(kp)
    prep = prepare_params(params)        # one-time weight repack (offline)

    out = jax.jit(lenet_forward)(x, prep)
    out = jax.block_until_ready(out)

    assert out.shape == (2, 10), out.shape
    # log_softmax rows must exponentiate-sum to 1
    row_sums = jnp.exp(out).sum(axis=1)
    assert bool(jnp.all(jnp.abs(row_sums - 1.0) < 1e-4)), row_sums
    print("KERNEL_OK")
</pallas_src>

<mosaic_0001>
module attributes {stable_mosaic.version = 11 : i64} {
  func.func @_conv_pool_relu_kernel(%arg0: i32, %arg1: memref<4x56x128xbf16, #tpu.memory_space<vmem>>, %arg2: memref<128x128xbf16, #tpu.memory_space<vmem>>, %arg3: memref<1x128xf32, #tpu.memory_space<vmem>>, %arg4: memref<56x128xf32, #tpu.memory_space<vmem>>) attributes {dimension_semantics = [#tpu.dimension_semantics<parallel>], iteration_bounds = array<i64: 7>, scalar_prefetch = 0 : i64, scratch_operands = 0 : i64, tpu.core_type = #tpu.core_type<tc>, window_params = [{transform_indices = @transform_0, window_bounds = array<i64: 4, 56, 128>}, {pipeline_mode = #tpu.pipeline_mode<synchronous>, transform_indices = @transform_1, window_bounds = array<i64: 128, 128>}, {pipeline_mode = #tpu.pipeline_mode<synchronous>, transform_indices = @transform_2, window_bounds = array<i64: 1, 128>}, {transform_indices = @transform_3, window_bounds = array<i64: 56, 128>}]} {
    %c0 = arith.constant 0 : index
    %c0_0 = arith.constant 0 : index
    %c0_1 = arith.constant 0 : index
    %0 = vector.load %arg1[%c0, %c0_0, %c0_1] : memref<4x56x128xbf16, #tpu.memory_space<vmem>>, vector<1x56x128xbf16>
    %1 = vector.shape_cast %0 : vector<1x56x128xbf16> to vector<56x128xbf16>
    %c0_2 = arith.constant 0 : index
    %c0_3 = arith.constant 0 : index
    %2 = vector.load %arg2[%c0_2, %c0_3] : memref<128x128xbf16, #tpu.memory_space<vmem>>, vector<128x128xbf16>
    %cst = arith.constant dense<0.000000e+00> : vector<56x128xf32>
    %3 = tpu.matmul %1, %2, %cst {dimension_numbers = #tpu.dot_dimension_numbers<[1], [0], [0], [1], [0, 0, 1, 1], [], []>} : vector<56x128xbf16>, vector<128x128xbf16>, vector<56x128xf32> -> vector<56x128xf32>
    %c1 = arith.constant 1 : index
    %c0_4 = arith.constant 0 : index
    %c0_5 = arith.constant 0 : index
    %4 = vector.load %arg1[%c1, %c0_4, %c0_5] : memref<4x56x128xbf16, #tpu.memory_space<vmem>>, vector<1x56x128xbf16>
    %5 = vector.shape_cast %4 : vector<1x56x128xbf16> to vector<56x128xbf16>
    %c0_6 = arith.constant 0 : index
    %c0_7 = arith.constant 0 : index
    %6 = vector.load %arg2[%c0_6, %c0_7] : memref<128x128xbf16, #tpu.memory_space<vmem>>, vector<128x128xbf16>
    %cst_8 = arith.constant dense<0.000000e+00> : vector<56x128xf32>
    %7 = tpu.matmul %5, %6, %cst_8 {dimension_numbers = #tpu.dot_dimension_numbers<[1], [0], [0], [1], [0, 0, 1, 1], [], []>} : vector<56x128xbf16>, vector<128x128xbf16>, vector<56x128xf32> -> vector<56x128xf32>
    %8 = arith.maximumf %3, %7 : vector<56x128xf32>
    %c2 = arith.constant 2 : index
    %c0_9 = arith.constant 0 : index
    %c0_10 = arith.constant 0 : index
    %9 = vector.load %arg1[%c2, %c0_9, %c0_10] : memref<4x56x128xbf16, #tpu.memory_space<vmem>>, vector<1x56x128xbf16>
    %10 = vector.shape_cast %9 : vector<1x56x128xbf16> to vector<56x128xbf16>
    %c0_11 = arith.constant 0 : index
    %c0_12 = arith.constant 0 : index
    %11 = vector.load %arg2[%c0_11, %c0_12] : memref<128x128xbf16, #tpu.memory_space<vmem>>, vector<128x128xbf16>
    %cst_13 = arith.constant dense<0.000000e+00> : vector<56x128xf32>
    %12 = tpu.matmul %10, %11, %cst_13 {dimension_numbers = #tpu.dot_dimension_numbers<[1], [0], [0], [1], [0, 0, 1, 1], [], []>} : vector<56x128xbf16>, vector<128x128xbf16>, vector<56x128xf32> -> vector<56x128xf32>
    %13 = arith.maximumf %8, %12 : vector<56x128xf32>
    %c3 = arith.constant 3 : index
    %c0_14 = arith.constant 0 : index
    %c0_15 = arith.constant 0 : index
    %14 = vector.load %arg1[%c3, %c0_14, %c0_15] : memref<4x56x128xbf16, #tpu.memory_space<vmem>>, vector<1x56x128xbf16>
    %15 = vector.shape_cast %14 : vector<1x56x128xbf16> to vector<56x128xbf16>
    %c0_16 = arith.constant 0 : index
    %c0_17 = arith.constant 0 : index
    %16 = vector.load %arg2[%c0_16, %c0_17] : memref<128x128xbf16, #tpu.memory_space<vmem>>, vector<128x128xbf16>
    %cst_18 = arith.constant dense<0.000000e+00> : vector<56x128xf32>
    %17 = tpu.matmul %15, %16, %cst_18 {dimension_numbers = #tpu.dot_dimension_numbers<[1], [0], [0], [1], [0, 0, 1, 1], [], []>} : vector<56x128xbf16>, vector<128x128xbf16>, vector<56x128xf32> -> vector<56x128xf32>
    %18 = arith.maximumf %13, %17 : vector<56x128xf32>
    %c0_19 = arith.constant 0 : index
    %c0_20 = arith.constant 0 : index
    %19 = vector.load %arg3[%c0_19, %c0_20] : memref<1x128xf32, #tpu.memory_space<vmem>>, vector<1x128xf32>
    %20 = vector.broadcast %19 : vector<1x128xf32> to vector<56x128xf32>
    %21 = arith.addf %18, %20 : vector<56x128xf32>
    %cst_21 = arith.constant 0.000000e+00 : f32
    %22 = vector.broadcast %cst_21 : f32 to vector<56x128xf32>
    %23 = arith.maximumf %21, %22 : vector<56x128xf32>
    %c0_22 = arith.constant 0 : index
    %c0_23 = arith.constant 0 : index
    %24 = vector.load %arg4[%c0_22, %c0_23] : memref<56x128xf32, #tpu.memory_space<vmem>>, vector<56x128xf32>
    tpu.vector_store %arg4[%c0_22, %c0_23], %23 {strides = array<i32>} : memref<56x128xf32, #tpu.memory_space<vmem>>, vector<56x128xf32>,
    return
  }
  func.func @transform_0(%arg0: i32) -> (i32, i32, i32) {
    %c0_i32 = arith.constant 0 : i32
    %c0_i32_0 = arith.constant 0 : i32
    %c0_i32_1 = arith.constant 0 : i32
    return %c0_i32, %arg0, %c0_i32_0 : i32, i32, i32
  }
  func.func @transform_1(%arg0: i32) -> (i32, i32) {
    %c0_i32 = arith.constant 0 : i32
    %c0_i32_0 = arith.constant 0 : i32
    %c0_i32_1 = arith.constant 0 : i32
    return %c0_i32, %c0_i32_0 : i32, i32
  }
  func.func @transform_2(%arg0: i32) -> (i32, i32) {
    %c0_i32 = arith.constant 0 : i32
    %c0_i32_0 = arith.constant 0 : i32
    %c0_i32_1 = arith.constant 0 : i32
    return %c0_i32, %c0_i32_0 : i32, i32
  }
  func.func @transform_3(%arg0: i32) -> (i32, i32) {
    %c0_i32 = arith.constant 0 : i32
    %c0_i32_0 = arith.constant 0 : i32
    return %arg0, %c0_i32 : i32, i32
  }
}

module attributes {stable_mosaic.version = 11 : i64} {
  func.func @_conv2_fc_head_kernel(%arg0: i32, %arg1: memref<4x200x256xbf16, #tpu.memory_space<vmem>>, %arg2: memref<256x128xbf16, #tpu.memory_space<vmem>>, %arg3: memref<1x128xf32, #tpu.memory_space<vmem>>, %arg4: memref<25x128x128xbf16, #tpu.memory_space<vmem>>, %arg5: memref<1x128xf32, #tpu.memory_space<vmem>>, %arg6: memref<128x128xbf16, #tpu.memory_space<vmem>>, %arg7: memref<1x128xf32, #tpu.memory_space<vmem>>, %arg8: memref<128x128xbf16, #tpu.memory_space<vmem>>, %arg9: memref<1x128xf32, #tpu.memory_space<vmem>>, %arg10: memref<8x128xf32, #tpu.memory_space<vmem>>) attributes {dimension_semantics = [#tpu.dimension_semantics<arbitrary>], iteration_bounds = array<i64: 1>, scalar_prefetch = 0 : i64, scratch_operands = 0 : i64, tpu.core_type = #tpu.core_type<tc>, window_params = [{pipeline_mode = #tpu.pipeline_mode<synchronous>, transform_indices = @transform_0, window_bounds = array<i64: 4, 200, 256>}, {pipeline_mode = #tpu.pipeline_mode<synchronous>, transform_indices = @transform_1, window_bounds = array<i64: 256, 128>}, {pipeline_mode = #tpu.pipeline_mode<synchronous>, transform_indices = @transform_2, window_bounds = array<i64: 1, 128>}, {pipeline_mode = #tpu.pipeline_mode<synchronous>, transform_indices = @transform_3, window_bounds = array<i64: 25, 128, 128>}, {pipeline_mode = #tpu.pipeline_mode<synchronous>, transform_indices = @transform_4, window_bounds = array<i64: 1, 128>}, {pipeline_mode = #tpu.pipeline_mode<synchronous>, transform_indices = @transform_5, window_bounds = array<i64: 128, 128>}, {pipeline_mode = #tpu.pipeline_mode<synchronous>, transform_indices = @transform_6, window_bounds = array<i64: 1, 128>}, {pipeline_mode = #tpu.pipeline_mode<synchronous>, transform_indices = @transform_7, window_bounds = array<i64: 128, 128>}, {pipeline_mode = #tpu.pipeline_mode<synchronous>, transform_indices = @transform_8, window_bounds = array<i64: 1, 128>}, {pipeline_mode = #tpu.pipeline_mode<synchronous>, transform_indices = @transform_9, window_bounds = array<i64: 8, 128>}]} {
    %c0 = arith.constant 0 : index
    %c0_0 = arith.constant 0 : index
    %c0_1 = arith.constant 0 : index
    %0 = vector.load %arg1[%c0, %c0_0, %c0_1] : memref<4x200x256xbf16, #tpu.memory_space<vmem>>, vector<1x200x256xbf16>
    %1 = vector.shape_cast %0 : vector<1x200x256xbf16> to vector<200x256xbf16>
    %c0_2 = arith.constant 0 : index
    %c0_3 = arith.constant 0 : index
    %2 = vector.load %arg2[%c0_2, %c0_3] : memref<256x128xbf16, #tpu.memory_space<vmem>>, vector<256x128xbf16>
    %cst = arith.constant dense<0.000000e+00> : vector<200x128xf32>
    %3 = tpu.matmul %1, %2, %cst {dimension_numbers = #tpu.dot_dimension_numbers<[1], [0], [0], [1], [0, 0, 1, 1], [], []>} : vector<200x256xbf16>, vector<256x128xbf16>, vector<200x128xf32> -> vector<200x128xf32>
    %c1 = arith.constant 1 : index
    %c0_4 = arith.constant 0 : index
    %c0_5 = arith.constant 0 : index
    %4 = vector.load %arg1[%c1, %c0_4, %c0_5] : memref<4x200x256xbf16, #tpu.memory_space<vmem>>, vector<1x200x256xbf16>
    %5 = vector.shape_cast %4 : vector<1x200x256xbf16> to vector<200x256xbf16>
    %c0_6 = arith.constant 0 : index
    %c0_7 = arith.constant 0 : index
    %6 = vector.load %arg2[%c0_6, %c0_7] : memref<256x128xbf16, #tpu.memory_space<vmem>>, vector<256x128xbf16>
    %cst_8 = arith.constant dense<0.000000e+00> : vector<200x128xf32>
    %7 = tpu.matmul %5, %6, %cst_8 {dimension_numbers = #tpu.dot_dimension_numbers<[1], [0], [0], [1], [0, 0, 1, 1], [], []>} : vector<200x256xbf16>, vector<256x128xbf16>, vector<200x128xf32> -> vector<200x128xf32>
    %8 = arith.maximumf %3, %7 : vector<200x128xf32>
    %c2 = arith.constant 2 : index
    %c0_9 = arith.constant 0 : index
    %c0_10 = arith.constant 0 : index
    %9 = vector.load %arg1[%c2, %c0_9, %c0_10] : memref<4x200x256xbf16, #tpu.memory_space<vmem>>, vector<1x200x256xbf16>
    %10 = vector.shape_cast %9 : vector<1x200x256xbf16> to vector<200x256xbf16>
    %c0_11 = arith.constant 0 : index
    %c0_12 = arith.constant 0 : index
    %11 = vector.load %arg2[%c0_11, %c0_12] : memref<256x128xbf16, #tpu.memory_space<vmem>>, vector<256x128xbf16>
    %cst_13 = arith.constant dense<0.000000e+00> : vector<200x128xf32>
    %12 = tpu.matmul %10, %11, %cst_13 {dimension_numbers = #tpu.dot_dimension_numbers<[1], [0], [0], [1], [0, 0, 1, 1], [], []>} : vector<200x256xbf16>, vector<256x128xbf16>, vector<200x128xf32> -> vector<200x128xf32>
    %13 = arith.maximumf %8, %12 : vector<200x128xf32>
    %c3 = arith.constant 3 : index
    %c0_14 = arith.constant 0 : index
    %c0_15 = arith.constant 0 : index
    %14 = vector.load %arg1[%c3, %c0_14, %c0_15] : memref<4x200x256xbf16, #tpu.memory_space<vmem>>, vector<1x200x256xbf16>
    %15 = vector.shape_cast %14 : vector<1x200x256xbf16> to vector<200x256xbf16>
    %c0_16 = arith.constant 0 : index
    %c0_17 = arith.constant 0 : index
    %16 = vector.load %arg2[%c0_16, %c0_17] : memref<256x128xbf16, #tpu.memory_space<vmem>>, vector<256x128xbf16>
    %cst_18 = arith.constant dense<0.000000e+00> : vector<200x128xf32>
    %17 = tpu.matmul %15, %16, %cst_18 {dimension_numbers = #tpu.dot_dimension_numbers<[1], [0], [0], [1], [0, 0, 1, 1], [], []>} : vector<200x256xbf16>, vector<256x128xbf16>, vector<200x128xf32> -> vector<200x128xf32>
    %18 = arith.maximumf %13, %17 : vector<200x128xf32>
    %c0_19 = arith.constant 0 : index
    %c0_20 = arith.constant 0 : index
    %19 = vector.load %arg3[%c0_19, %c0_20] : memref<1x128xf32, #tpu.memory_space<vmem>>, vector<1x128xf32>
    %20 = vector.broadcast %19 : vector<1x128xf32> to vector<200x128xf32>
    %21 = arith.addf %18, %20 : vector<200x128xf32>
    %cst_21 = arith.constant 0.000000e+00 : f32
    %22 = vector.broadcast %cst_21 : f32 to vector<200x128xf32>
    %23 = arith.maximumf %21, %22 : vector<200x128xf32>
    %24 = arith.truncf %23 : vector<200x128xf32> to vector<200x128xbf16>
    %cst_22 = arith.constant 0.000000e+00 : f32
    %25 = vector.broadcast %cst_22 : f32 to vector<8x128xf32>
    %26 = vector.extract_strided_slice %24 {offsets = [0, 0], sizes = [8, 128], strides = [1, 1]} : vector<200x128xbf16> to vector<8x128xbf16>
    %c0_23 = arith.constant 0 : index
    %c0_24 = arith.constant 0 : index
    %c0_25 = arith.constant 0 : index
    %27 = vector.load %arg4[%c0_23, %c0_24, %c0_25] : memref<25x128x128xbf16, #tpu.memory_space<vmem>>, vector<1x128x128xbf16>
    %28 = vector.shape_cast %27 : vector<1x128x128xbf16> to vector<128x128xbf16>
    %cst_26 = arith.constant dense<0.000000e+00> : vector<8x128xf32>
    %29 = tpu.matmul %26, %28, %cst_26 {dimension_numbers = #tpu.dot_dimension_numbers<[1], [0], [0], [1], [0, 0, 1, 1], [], []>} : vector<8x128xbf16>, vector<128x128xbf16>, vector<8x128xf32> -> vector<8x128xf32>
    %30 = arith.addf %25, %29 : vector<8x128xf32>
    %31 = vector.extract_strided_slice %24 {offsets = [8, 0], sizes = [8, 128], strides = [1, 1]} : vector<200x128xbf16> to vector<8x128xbf16>
    %c1_27 = arith.constant 1 : index
    %c0_28 = arith.constant 0 : index
    %c0_29 = arith.constant 0 : index
    %32 = vector.load %arg4[%c1_27, %c0_28, %c0_29] : memref<25x128x128xbf16, #tpu.memory_space<vmem>>, vector<1x128x128xbf16>
    %33 = vector.shape_cast %32 : vector<1x128x128xbf16> to vector<128x128xbf16>
    %cst_30 = arith.constant dense<0.000000e+00> : vector<8x128xf32>
    %34 = tpu.matmul %31, %33, %cst_30 {dimension_numbers = #tpu.dot_dimension_numbers<[1], [0], [0], [1], [0, 0, 1, 1], [], []>} : vector<8x128xbf16>, vector<128x128xbf16>, vector<8x128xf32> -> vector<8x128xf32>
    %35 = arith.addf %30, %34 : vector<8x128xf32>
    %36 = vector.extract_strided_slice %24 {offsets = [16, 0], sizes = [8, 128], strides = [1, 1]} : vector<200x128xbf16> to vector<8x128xbf16>
    %c2_31 = arith.constant 2 : index
    %c0_32 = arith.constant 0 : index
    %c0_33 = arith.constant 0 : index
    %37 = vector.load %arg4[%c2_31, %c0_32, %c0_33] : memref<25x128x128xbf16, #tpu.memory_space<vmem>>, vector<1x128x128xbf16>
    %38 = vector.shape_cast %37 : vector<1x128x128xbf16> to vector<128x128xbf16>
    %cst_34 = arith.constant dense<0.000000e+00> : vector<8x128xf32>
    %39 = tpu.matmul %36, %38, %cst_34 {dimension_numbers = #tpu.dot_dimension_numbers<[1], [0], [0], [1], [0, 0, 1, 1], [], []>} : vector<8x128xbf16>, vector<128x128xbf16>, vector<8x128xf32> -> vector<8x128xf32>
    %40 = arith.addf %35, %39 : vector<8x128xf32>
    %41 = vector.extract_strided_slice %24 {offsets = [24, 0], sizes = [8, 128], strides = [1, 1]} : vector<200x128xbf16> to vector<8x128xbf16>
    %c3_35 = arith.constant 3 : index
    %c0_36 = arith.constant 0 : index
    %c0_37 = arith.constant 0 : index
    %42 = vector.load %arg4[%c3_35, %c0_36, %c0_37] : memref<25x128x128xbf16, #tpu.memory_space<vmem>>, vector<1x128x128xbf16>
    %43 = vector.shape_cast %42 : vector<1x128x128xbf16> to vector<128x128xbf16>
    %cst_38 = arith.constant dense<0.000000e+00> : vector<8x128xf32>
    %44 = tpu.matmul %41, %43, %cst_38 {dimension_numbers = #tpu.dot_dimension_numbers<[1], [0], [0], [1], [0, 0, 1, 1], [], []>} : vector<8x128xbf16>, vector<128x128xbf16>, vector<8x128xf32> -> vector<8x128xf32>
    %45 = arith.addf %40, %44 : vector<8x128xf32>
    %46 = vector.extract_strided_slice %24 {offsets = [32, 0], sizes = [8, 128], strides = [1, 1]} : vector<200x128xbf16> to vector<8x128xbf16>
    %c4 = arith.constant 4 : index
    %c0_39 = arith.constant 0 : index
    %c0_40 = arith.constant 0 : index
    %47 = vector.load %arg4[%c4, %c0_39, %c0_40] : memref<25x128x128xbf16, #tpu.memory_space<vmem>>, vector<1x128x128xbf16>
    %48 = vector.shape_cast %47 : vector<1x128x128xbf16> to vector<128x128xbf16>
    %cst_41 = arith.constant dense<0.000000e+00> : vector<8x128xf32>
    %49 = tpu.matmul %46, %48, %cst_41 {dimension_numbers = #tpu.dot_dimension_numbers<[1], [0], [0], [1], [0, 0, 1, 1], [], []>} : vector<8x128xbf16>, vector<128x128xbf16>, vector<8x128xf32> -> vector<8x128xf32>
    %50 = arith.addf %45, %49 : vector<8x128xf32>
    %51 = vector.extract_strided_slice %24 {offsets = [40, 0], sizes = [8, 128], strides = [1, 1]} : vector<200x128xbf16> to vector<8x128xbf16>
    %c5 = arith.constant 5 : index
    %c0_42 = arith.constant 0 : index
    %c0_43 = arith.constant 0 : index
    %52 = vector.load %arg4[%c5, %c0_42, %c0_43] : memref<25x128x128xbf16, #tpu.memory_space<vmem>>, vector<1x128x128xbf16>
    %53 = vector.shape_cast %52 : vector<1x128x128xbf16> to vector<128x128xbf16>
    %cst_44 = arith.constant dense<0.000000e+00> : vector<8x128xf32>
    %54 = tpu.matmul %51, %53, %cst_44 {dimension_numbers = #tpu.dot_dimension_numbers<[1], [0], [0], [1], [0, 0, 1, 1], [], []>} : vector<8x128xbf16>, vector<128x128xbf16>, vector<8x128xf32> -> vector<8x128xf32>
    %55 = arith.addf %50, %54 : vector<8x128xf32>
    %56 = vector.extract_strided_slice %24 {offsets = [48, 0], sizes = [8, 128], strides = [1, 1]} : vector<200x128xbf16> to vector<8x128xbf16>
    %c6 = arith.constant 6 : index
    %c0_45 = arith.constant 0 : index
    %c0_46 = arith.constant 0 : index
    %57 = vector.load %arg4[%c6, %c0_45, %c0_46] : memref<25x128x128xbf16, #tpu.memory_space<vmem>>, vector<1x128x128xbf16>
    %58 = vector.shape_cast %57 : vector<1x128x128xbf16> to vector<128x128xbf16>
    %cst_47 = arith.constant dense<0.000000e+00> : vector<8x128xf32>
    %59 = tpu.matmul %56, %58, %cst_47 {dimension_numbers = #tpu.dot_dimension_numbers<[1], [0], [0], [1], [0, 0, 1, 1], [], []>} : vector<8x128xbf16>, vector<128x128xbf16>, vector<8x128xf32> -> vector<8x128xf32>
    %60 = arith.addf %55, %59 : vector<8x128xf32>
    %61 = vector.extract_strided_slice %24 {offsets = [56, 0], sizes = [8, 128], strides = [1, 1]} : vector<200x128xbf16> to vector<8x128xbf16>
    %c7 = arith.constant 7 : index
    %c0_48 = arith.constant 0 : index
    %c0_49 = arith.constant 0 : index
    %62 = vector.load %arg4[%c7, %c0_48, %c0_49] : memref<25x128x128xbf16, #tpu.memory_space<vmem>>, vector<1x128x128xbf16>
    %63 = vector.shape_cast %62 : vector<1x128x128xbf16> to vector<128x128xbf16>
    %cst_50 = arith.constant dense<0.000000e+00> : vector<8x128xf32>
    %64 = tpu.matmul %61, %63, %cst_50 {dimension_numbers = #tpu.dot_dimension_numbers<[1], [0], [0], [1], [0, 0, 1, 1], [], []>} : vector<8x128xbf16>, vector<128x128xbf16>, vector<8x128xf32> -> vector<8x128xf32>
    %65 = arith.addf %60, %64 : vector<8x128xf32>
    %66 = vector.extract_strided_slice %24 {offsets = [64, 0], sizes = [8, 128], strides = [1, 1]} : vector<200x128xbf16> to vector<8x128xbf16>
    %c8 = arith.constant 8 : index
    %c0_51 = arith.constant 0 : index
    %c0_52 = arith.constant 0 : index
    %67 = vector.load %arg4[%c8, %c0_51, %c0_52] : memref<25x128x128xbf16, #tpu.memory_space<vmem>>, vector<1x128x128xbf16>
    %68 = vector.shape_cast %67 : vector<1x128x128xbf16> to vector<128x128xbf16>
    %cst_53 = arith.constant dense<0.000000e+00> : vector<8x128xf32>
    %69 = tpu.matmul %66, %68, %cst_53 {dimension_numbers = #tpu.dot_dimension_numbers<[1], [0], [0], [1], [0, 0, 1, 1], [], []>} : vector<8x128xbf16>, vector<128x128xbf16>, vector<8x128xf32> -> vector<8x128xf32>
    %70 = arith.addf %65, %69 : vector<8x128xf32>
    %71 = vector.extract_strided_slice %24 {offsets = [72, 0], sizes = [8, 128], strides = [1, 1]} : vector<200x128xbf16> to vector<8x128xbf16>
    %c9 = arith.constant 9 : index
    %c0_54 = arith.constant 0 : index
    %c0_55 = arith.constant 0 : index
    %72 = vector.load %arg4[%c9, %c0_54, %c0_55] : memref<25x128x128xbf16, #tpu.memory_space<vmem>>, vector<1x128x128xbf16>
    %73 = vector.shape_cast %72 : vector<1x128x128xbf16> to vector<128x128xbf16>
    %cst_56 = arith.constant dense<0.000000e+00> : vector<8x128xf32>
    %74 = tpu.matmul %71, %73, %cst_56 {dimension_numbers = #tpu.dot_dimension_numbers<[1], [0], [0], [1], [0, 0, 1, 1], [], []>} : vector<8x128xbf16>, vector<128x128xbf16>, vector<8x128xf32> -> vector<8x128xf32>
    %75 = arith.addf %70, %74 : vector<8x128xf32>
    %76 = vector.extract_strided_slice %24 {offsets = [80, 0], sizes = [8, 128], strides = [1, 1]} : vector<200x128xbf16> to vector<8x128xbf16>
    %c10 = arith.constant 10 : index
    %c0_57 = arith.constant 0 : index
    %c0_58 = arith.constant 0 : index
    %77 = vector.load %arg4[%c10, %c0_57, %c0_58] : memref<25x128x128xbf16, #tpu.memory_space<vmem>>, vector<1x128x128xbf16>
    %78 = vector.shape_cast %77 : vector<1x128x128xbf16> to vector<128x128xbf16>
    %cst_59 = arith.constant dense<0.000000e+00> : vector<8x128xf32>
    %79 = tpu.matmul %76, %78, %cst_59 {dimension_numbers = #tpu.dot_dimension_numbers<[1], [0], [0], [1], [0, 0, 1, 1], [], []>} : vector<8x128xbf16>, vector<128x128xbf16>, vector<8x128xf32> -> vector<8x128xf32>
    %80 = arith.addf %75, %79 : vector<8x128xf32>
    %81 = vector.extract_strided_slice %24 {offsets = [88, 0], sizes = [8, 128], strides = [1, 1]} : vector<200x128xbf16> to vector<8x128xbf16>
    %c11 = arith.constant 11 : index
    %c0_60 = arith.constant 0 : index
    %c0_61 = arith.constant 0 : index
    %82 = vector.load %arg4[%c11, %c0_60, %c0_61] : memref<25x128x128xbf16, #tpu.memory_space<vmem>>, vector<1x128x128xbf16>
    %83 = vector.shape_cast %82 : vector<1x128x128xbf16> to vector<128x128xbf16>
    %cst_62 = arith.constant dense<0.000000e+00> : vector<8x128xf32>
    %84 = tpu.matmul %81, %83, %cst_62 {dimension_numbers = #tpu.dot_dimension_numbers<[1], [0], [0], [1], [0, 0, 1, 1], [], []>} : vector<8x128xbf16>, vector<128x128xbf16>, vector<8x128xf32> -> vector<8x128xf32>
    %85 = arith.addf %80, %84 : vector<8x128xf32>
    %86 = vector.extract_strided_slice %24 {offsets = [96, 0], sizes = [8, 128], strides = [1, 1]} : vector<200x128xbf16> to vector<8x128xbf16>
    %c12 = arith.constant 12 : index
    %c0_63 = arith.constant 0 : index
    %c0_64 = arith.constant 0 : index
    %87 = vector.load %arg4[%c12, %c0_63, %c0_64] : memref<25x128x128xbf16, #tpu.memory_space<vmem>>, vector<1x128x128xbf16>
    %88 = vector.shape_cast %87 : vector<1x128x128xbf16> to vector<128x128xbf16>
    %cst_65 = arith.constant dense<0.000000e+00> : vector<8x128xf32>
    %89 = tpu.matmul %86, %88, %cst_65 {dimension_numbers = #tpu.dot_dimension_numbers<[1], [0], [0], [1], [0, 0, 1, 1], [], []>} : vector<8x128xbf16>, vector<128x128xbf16>, vector<8x128xf32> -> vector<8x128xf32>
    %90 = arith.addf %85, %89 : vector<8x128xf32>
    %91 = vector.extract_strided_slice %24 {offsets = [104, 0], sizes = [8, 128], strides = [1, 1]} : vector<200x128xbf16> to vector<8x128xbf16>
    %c13 = arith.constant 13 : index
    %c0_66 = arith.constant 0 : index
    %c0_67 = arith.constant 0 : index
    %92 = vector.load %arg4[%c13, %c0_66, %c0_67] : memref<25x128x128xbf16, #tpu.memory_space<vmem>>, vector<1x128x128xbf16>
    %93 = vector.shape_cast %92 : vector<1x128x128xbf16> to vector<128x128xbf16>
    %cst_68 = arith.constant dense<0.000000e+00> : vector<8x128xf32>
    %94 = tpu.matmul %91, %93, %cst_68 {dimension_numbers = #tpu.dot_dimension_numbers<[1], [0], [0], [1], [0, 0, 1, 1], [], []>} : vector<8x128xbf16>, vector<128x128xbf16>, vector<8x128xf32> -> vector<8x128xf32>
    %95 = arith.addf %90, %94 : vector<8x128xf32>
    %96 = vector.extract_strided_slice %24 {offsets = [112, 0], sizes = [8, 128], strides = [1, 1]} : vector<200x128xbf16> to vector<8x128xbf16>
    %c14 = arith.constant 14 : index
    %c0_69 = arith.constant 0 : index
    %c0_70 = arith.constant 0 : index
    %97 = vector.load %arg4[%c14, %c0_69, %c0_70] : memref<25x128x128xbf16, #tpu.memory_space<vmem>>, vector<1x128x128xbf16>
    %98 = vector.shape_cast %97 : vector<1x128x128xbf16> to vector<128x128xbf16>
    %cst_71 = arith.constant dense<0.000000e+00> : vector<8x128xf32>
    %99 = tpu.matmul %96, %98, %cst_71 {dimension_numbers = #tpu.dot_dimension_numbers<[1], [0], [0], [1], [0, 0, 1, 1], [], []>} : vector<8x128xbf16>, vector<128x128xbf16>, vector<8x128xf32> -> vector<8x128xf32>
    %100 = arith.addf %95, %99 : vector<8x128xf32>
    %101 = vector.extract_strided_slice %24 {offsets = [120, 0], sizes = [8, 128], strides = [1, 1]} : vector<200x128xbf16> to vector<8x128xbf16>
    %c15 = arith.constant 15 : index
    %c0_72 = arith.constant 0 : index
    %c0_73 = arith.constant 0 : index
    %102 = vector.load %arg4[%c15, %c0_72, %c0_73] : memref<25x128x128xbf16, #tpu.memory_space<vmem>>, vector<1x128x128xbf16>
    %103 = vector.shape_cast %102 : vector<1x128x128xbf16> to vector<128x128xbf16>
    %cst_74 = arith.constant dense<0.000000e+00> : vector<8x128xf32>
    %104 = tpu.matmul %101, %103, %cst_74 {dimension_numbers = #tpu.dot_dimension_numbers<[1], [0], [0], [1], [0, 0, 1, 1], [], []>} : vector<8x128xbf16>, vector<128x128xbf16>, vector<8x128xf32> -> vector<8x128xf32>
    %105 = arith.addf %100, %104 : vector<8x128xf32>
    %106 = vector.extract_strided_slice %24 {offsets = [128, 0], sizes = [8, 128], strides = [1, 1]} : vector<200x128xbf16> to vector<8x128xbf16>
    %c16 = arith.constant 16 : index
    %c0_75 = arith.constant 0 : index
    %c0_76 = arith.constant 0 : index
    %107 = vector.load %arg4[%c16, %c0_75, %c0_76] : memref<25x128x128xbf16, #tpu.memory_space<vmem>>, vector<1x128x128xbf16>
    %108 = vector.shape_cast %107 : vector<1x128x128xbf16> to vector<128x128xbf16>
    %cst_77 = arith.constant dense<0.000000e+00> : vector<8x128xf32>
    %109 = tpu.matmul %106, %108, %cst_77 {dimension_numbers = #tpu.dot_dimension_numbers<[1], [0], [0], [1], [0, 0, 1, 1], [], []>} : vector<8x128xbf16>, vector<128x128xbf16>, vector<8x128xf32> -> vector<8x128xf32>
    %110 = arith.addf %105, %109 : vector<8x128xf32>
    %111 = vector.extract_strided_slice %24 {offsets = [136, 0], sizes = [8, 128], strides = [1, 1]} : vector<200x128xbf16> to vector<8x128xbf16>
    %c17 = arith.constant 17 : index
    %c0_78 = arith.constant 0 : index
    %c0_79 = arith.constant 0 : index
    %112 = vector.load %arg4[%c17, %c0_78, %c0_79] : memref<25x128x128xbf16, #tpu.memory_space<vmem>>, vector<1x128x128xbf16>
    %113 = vector.shape_cast %112 : vector<1x128x128xbf16> to vector<128x128xbf16>
    %cst_80 = arith.constant dense<0.000000e+00> : vector<8x128xf32>
    %114 = tpu.matmul %111, %113, %cst_80 {dimension_numbers = #tpu.dot_dimension_numbers<[1], [0], [0], [1], [0, 0, 1, 1], [], []>} : vector<8x128xbf16>, vector<128x128xbf16>, vector<8x128xf32> -> vector<8x128xf32>
    %115 = arith.addf %110, %114 : vector<8x128xf32>
    %116 = vector.extract_strided_slice %24 {offsets = [144, 0], sizes = [8, 128], strides = [1, 1]} : vector<200x128xbf16> to vector<8x128xbf16>
    %c18 = arith.constant 18 : index
    %c0_81 = arith.constant 0 : index
    %c0_82 = arith.constant 0 : index
    %117 = vector.load %arg4[%c18, %c0_81, %c0_82] : memref<25x128x128xbf16, #tpu.memory_space<vmem>>, vector<1x128x128xbf16>
    %118 = vector.shape_cast %117 : vector<1x128x128xbf16> to vector<128x128xbf16>
    %cst_83 = arith.constant dense<0.000000e+00> : vector<8x128xf32>
    %119 = tpu.matmul %116, %118, %cst_83 {dimension_numbers = #tpu.dot_dimension_numbers<[1], [0], [0], [1], [0, 0, 1, 1], [], []>} : vector<8x128xbf16>, vector<128x128xbf16>, vector<8x128xf32> -> vector<8x128xf32>
    %120 = arith.addf %115, %119 : vector<8x128xf32>
    %121 = vector.extract_strided_slice %24 {offsets = [152, 0], sizes = [8, 128], strides = [1, 1]} : vector<200x128xbf16> to vector<8x128xbf16>
    %c19 = arith.constant 19 : index
    %c0_84 = arith.constant 0 : index
    %c0_85 = arith.constant 0 : index
    %122 = vector.load %arg4[%c19, %c0_84, %c0_85] : memref<25x128x128xbf16, #tpu.memory_space<vmem>>, vector<1x128x128xbf16>
    %123 = vector.shape_cast %122 : vector<1x128x128xbf16> to vector<128x128xbf16>
    %cst_86 = arith.constant dense<0.000000e+00> : vector<8x128xf32>
    %124 = tpu.matmul %121, %123, %cst_86 {dimension_numbers = #tpu.dot_dimension_numbers<[1], [0], [0], [1], [0, 0, 1, 1], [], []>} : vector<8x128xbf16>, vector<128x128xbf16>, vector<8x128xf32> -> vector<8x128xf32>
    %125 = arith.addf %120, %124 : vector<8x128xf32>
    %126 = vector.extract_strided_slice %24 {offsets = [160, 0], sizes = [8, 128], strides = [1, 1]} : vector<200x128xbf16> to vector<8x128xbf16>
    %c20 = arith.constant 20 : index
    %c0_87 = arith.constant 0 : index
    %c0_88 = arith.constant 0 : index
    %127 = vector.load %arg4[%c20, %c0_87, %c0_88] : memref<25x128x128xbf16, #tpu.memory_space<vmem>>, vector<1x128x128xbf16>
    %128 = vector.shape_cast %127 : vector<1x128x128xbf16> to vector<128x128xbf16>
    %cst_89 = arith.constant dense<0.000000e+00> : vector<8x128xf32>
    %129 = tpu.matmul %126, %128, %cst_89 {dimension_numbers = #tpu.dot_dimension_numbers<[1], [0], [0], [1], [0, 0, 1, 1], [], []>} : vector<8x128xbf16>, vector<128x128xbf16>, vector<8x128xf32> -> vector<8x128xf32>
    %130 = arith.addf %125, %129 : vector<8x128xf32>
    %131 = vector.extract_strided_slice %24 {offsets = [168, 0], sizes = [8, 128], strides = [1, 1]} : vector<200x128xbf16> to vector<8x128xbf16>
    %c21 = arith.constant 21 : index
    %c0_90 = arith.constant 0 : index
    %c0_91 = arith.constant 0 : index
    %132 = vector.load %arg4[%c21, %c0_90, %c0_91] : memref<25x128x128xbf16, #tpu.memory_space<vmem>>, vector<1x128x128xbf16>
    %133 = vector.shape_cast %132 : vector<1x128x128xbf16> to vector<128x128xbf16>
    %cst_92 = arith.constant dense<0.000000e+00> : vector<8x128xf32>
    %134 = tpu.matmul %131, %133, %cst_92 {dimension_numbers = #tpu.dot_dimension_numbers<[1], [0], [0], [1], [0, 0, 1, 1], [], []>} : vector<8x128xbf16>, vector<128x128xbf16>, vector<8x128xf32> -> vector<8x128xf32>
    %135 = arith.addf %130, %134 : vector<8x128xf32>
    %136 = vector.extract_strided_slice %24 {offsets = [176, 0], sizes = [8, 128], strides = [1, 1]} : vector<200x128xbf16> to vector<8x128xbf16>
    %c22 = arith.constant 22 : index
    %c0_93 = arith.constant 0 : index
    %c0_94 = arith.constant 0 : index
    %137 = vector.load %arg4[%c22, %c0_93, %c0_94] : memref<25x128x128xbf16, #tpu.memory_space<vmem>>, vector<1x128x128xbf16>
    %138 = vector.shape_cast %137 : vector<1x128x128xbf16> to vector<128x128xbf16>
    %cst_95 = arith.constant dense<0.000000e+00> : vector<8x128xf32>
    %139 = tpu.matmul %136, %138, %cst_95 {dimension_numbers = #tpu.dot_dimension_numbers<[1], [0], [0], [1], [0, 0, 1, 1], [], []>} : vector<8x128xbf16>, vector<128x128xbf16>, vector<8x128xf32> -> vector<8x128xf32>
    %140 = arith.addf %135, %139 : vector<8x128xf32>
    %141 = vector.extract_strided_slice %24 {offsets = [184, 0], sizes = [8, 128], strides = [1, 1]} : vector<200x128xbf16> to vector<8x128xbf16>
    %c23 = arith.constant 23 : index
    %c0_96 = arith.constant 0 : index
    %c0_97 = arith.constant 0 : index
    %142 = vector.load %arg4[%c23, %c0_96, %c0_97] : memref<25x128x128xbf16, #tpu.memory_space<vmem>>, vector<1x128x128xbf16>
    %143 = vector.shape_cast %142 : vector<1x128x128xbf16> to vector<128x128xbf16>
    %cst_98 = arith.constant dense<0.000000e+00> : vector<8x128xf32>
    %144 = tpu.matmul %141, %143, %cst_98 {dimension_numbers = #tpu.dot_dimension_numbers<[1], [0], [0], [1], [0, 0, 1, 1], [], []>} : vector<8x128xbf16>, vector<128x128xbf16>, vector<8x128xf32> -> vector<8x128xf32>
    %145 = arith.addf %140, %144 : vector<8x128xf32>
    %146 = vector.extract_strided_slice %24 {offsets = [192, 0], sizes = [8, 128], strides = [1, 1]} : vector<200x128xbf16> to vector<8x128xbf16>
    %c24 = arith.constant 24 : index
    %c0_99 = arith.constant 0 : index
    %c0_100 = arith.constant 0 : index
    %147 = vector.load %arg4[%c24, %c0_99, %c0_100] : memref<25x128x128xbf16, #tpu.memory_space<vmem>>, vector<1x128x128xbf16>
    %148 = vector.shape_cast %147 : vector<1x128x128xbf16> to vector<128x128xbf16>
    %cst_101 = arith.constant dense<0.000000e+00> : vector<8x128xf32>
    %149 = tpu.matmul %146, %148, %cst_101 {dimension_numbers = #tpu.dot_dimension_numbers<[1], [0], [0], [1], [0, 0, 1, 1], [], []>} : vector<8x128xbf16>, vector<128x128xbf16>, vector<8x128xf32> -> vector<8x128xf32>
    %150 = arith.addf %145, %149 : vector<8x128xf32>
    %c0_102 = arith.constant 0 : index
    %c0_103 = arith.constant 0 : index
    %151 = vector.load %arg5[%c0_102, %c0_103] : memref<1x128xf32, #tpu.memory_space<vmem>>, vector<1x128xf32>
    %152 = vector.broadcast %151 : vector<1x128xf32> to vector<8x128xf32>
    %153 = arith.addf %150, %152 : vector<8x128xf32>
    %cst_104 = arith.constant 0.000000e+00 : f32
    %154 = vector.broadcast %cst_104 : f32 to vector<8x128xf32>
    %155 = arith.maximumf %153, %154 : vector<8x128xf32>
    %156 = arith.truncf %155 : vector<8x128xf32> to vector<8x128xbf16>
    %c0_105 = arith.constant 0 : index
    %c0_106 = arith.constant 0 : index
    %157 = vector.load %arg6[%c0_105, %c0_106] : memref<128x128xbf16, #tpu.memory_space<vmem>>, vector<128x128xbf16>
    %cst_107 = arith.constant dense<0.000000e+00> : vector<8x128xf32>
    %158 = tpu.matmul %156, %157, %cst_107 {dimension_numbers = #tpu.dot_dimension_numbers<[1], [0], [0], [1], [0, 0, 1, 1], [], []>} : vector<8x128xbf16>, vector<128x128xbf16>, vector<8x128xf32> -> vector<8x128xf32>
    %c0_108 = arith.constant 0 : index
    %c0_109 = arith.constant 0 : index
    %159 = vector.load %arg7[%c0_108, %c0_109] : memref<1x128xf32, #tpu.memory_space<vmem>>, vector<1x128xf32>
    %160 = vector.broadcast %159 : vector<1x128xf32> to vector<8x128xf32>
    %161 = arith.addf %158, %160 : vector<8x128xf32>
    %cst_110 = arith.constant 0.000000e+00 : f32
    %162 = vector.broadcast %cst_110 : f32 to vector<8x128xf32>
    %163 = arith.maximumf %161, %162 : vector<8x128xf32>
    %164 = arith.truncf %163 : vector<8x128xf32> to vector<8x128xbf16>
    %c0_111 = arith.constant 0 : index
    %c0_112 = arith.constant 0 : index
    %165 = vector.load %arg8[%c0_111, %c0_112] : memref<128x128xbf16, #tpu.memory_space<vmem>>, vector<128x128xbf16>
    %cst_113 = arith.constant dense<0.000000e+00> : vector<8x128xf32>
    %166 = tpu.matmul %164, %165, %cst_113 {dimension_numbers = #tpu.dot_dimension_numbers<[1], [0], [0], [1], [0, 0, 1, 1], [], []>} : vector<8x128xbf16>, vector<128x128xbf16>, vector<8x128xf32> -> vector<8x128xf32>
    %c0_114 = arith.constant 0 : index
    %c0_115 = arith.constant 0 : index
    %167 = vector.load %arg9[%c0_114, %c0_115] : memref<1x128xf32, #tpu.memory_space<vmem>>, vector<1x128xf32>
    %168 = vector.broadcast %167 : vector<1x128xf32> to vector<8x128xf32>
    %169 = arith.addf %166, %168 : vector<8x128xf32>
    %cst_116 = arith.constant dense<0xFF800000> : vector<8xf32>
    %170 = vector.multi_reduction <maximumf>, %169, %cst_116 [1] : vector<8x128xf32> to vector<8xf32>
    %171 = vector.shape_cast %170 : vector<8xf32> to vector<8x1xf32>
    %172 = vector.broadcast %171 : vector<8x1xf32> to vector<8x128xf32>
    %173 = arith.subf %169, %172 : vector<8x128xf32>
    %174 = math.exp %173 : vector<8x128xf32>
    %cst_117 = arith.constant dense<0.000000e+00> : vector<8xf32>
    %175 = vector.multi_reduction <add>, %174, %cst_117 [1] : vector<8x128xf32> to vector<8xf32>
    %176 = vector.shape_cast %175 : vector<8xf32> to vector<8x1xf32>
    %177 = vector.broadcast %171 : vector<8x1xf32> to vector<8x128xf32>
    %178 = arith.subf %169, %177 : vector<8x128xf32>
    %179 = math.log %176 : vector<8x1xf32>
    %180 = vector.broadcast %179 : vector<8x1xf32> to vector<8x128xf32>
    %181 = arith.subf %178, %180 : vector<8x128xf32>
    %c0_118 = arith.constant 0 : index
    %c0_119 = arith.constant 0 : index
    %182 = vector.load %arg10[%c0_118, %c0_119] : memref<8x128xf32, #tpu.memory_space<vmem>>, vector<8x128xf32>
    tpu.vector_store %arg10[%c0_118, %c0_119], %181 {strides = array<i32>} : memref<8x128xf32, #tpu.memory_space<vmem>>, vector<8x128xf32>,
    return
  }
  func.func @transform_0(%arg0: i32) -> (i32, i32, i32) {
    %c0_i32 = arith.constant 0 : i32
    %c0_i32_0 = arith.constant 0 : i32
    %c0_i32_1 = arith.constant 0 : i32
    %c0_i32_2 = arith.constant 0 : i32
    return %c0_i32, %c0_i32_0, %c0_i32_1 : i32, i32, i32
  }
  func.func @transform_1(%arg0: i32) -> (i32, i32) {
    %c0_i32 = arith.constant 0 : i32
    %c0_i32_0 = arith.constant 0 : i32
    %c0_i32_1 = arith.constant 0 : i32
    return %c0_i32, %c0_i32_0 : i32, i32
  }
  func.func @transform_2(%arg0: i32) -> (i32, i32) {
    %c0_i32 = arith.constant 0 : i32
    %c0_i32_0 = arith.constant 0 : i32
    %c0_i32_1 = arith.constant 0 : i32
    return %c0_i32, %c0_i32_0 : i32, i32
  }
  func.func @transform_3(%arg0: i32) -> (i32, i32, i32) {
    %c0_i32 = arith.constant 0 : i32
    %c0_i32_0 = arith.constant 0 : i32
    %c0_i32_1 = arith.constant 0 : i32
    %c0_i32_2 = arith.constant 0 : i32
    return %c0_i32, %c0_i32_0, %c0_i32_1 : i32, i32, i32
  }
  func.func @transform_4(%arg0: i32) -> (i32, i32) {
    %c0_i32 = arith.constant 0 : i32
    %c0_i32_0 = arith.constant 0 : i32
    %c0_i32_1 = arith.constant 0 : i32
    return %c0_i32, %c0_i32_0 : i32, i32
  }
  func.func @transform_5(%arg0: i32) -> (i32, i32) {
    %c0_i32 = arith.constant 0 : i32
    %c0_i32_0 = arith.constant 0 : i32
    %c0_i32_1 = arith.constant 0 : i32
    return %c0_i32, %c0_i32_0 : i32, i32
  }
  func.func @transform_6(%arg0: i32) -> (i32, i32) {
    %c0_i32 = arith.constant 0 : i32
    %c0_i32_0 = arith.constant 0 : i32
    %c0_i32_1 = arith.constant 0 : i32
    return %c0_i32, %c0_i32_0 : i32, i32
  }
  func.func @transform_7(%arg0: i32) -> (i32, i32) {
    %c0_i32 = arith.constant 0 : i32
    %c0_i32_0 = arith.constant 0 : i32
    %c0_i32_1 = arith.constant 0 : i32
    return %c0_i32, %c0_i32_0 : i32, i32
  }
  func.func @transform_8(%arg0: i32) -> (i32, i32) {
    %c0_i32 = arith.constant 0 : i32
    %c0_i32_0 = arith.constant 0 : i32
    %c0_i32_1 = arith.constant 0 : i32
    return %c0_i32, %c0_i32_0 : i32, i32
  }
  func.func @transform_9(%arg0: i32) -> (i32, i32) {
    %c0_i32 = arith.constant 0 : i32
    %c0_i32_0 = arith.constant 0 : i32
    %c0_i32_1 = arith.constant 0 : i32
    return %c0_i32, %c0_i32_0 : i32, i32
  }
}

</mosaic_0001>

<llo_original>
// kernel: lenet_forward.2
$region0: #{lenet_forward.2}
  #allocation0 [shape = 'u32[]', space=smem, size = 0x4, offset = 0x4, fixed_abs, tag = 'smem constant byte address 0x4 - core index']
  #allocation1 [shape = 'u32[144,128]{1,0:T(1,128)}', space=vmem, size = 0x12000, scoped, tag = 'internal scratch']
  %s0 = inlined_call_operand.vmem [shape: bf16[4,392,128], index: 0, kind: input, shape index: {}]
  %s1 = inlined_call_operand.vmem [shape: bf16[128,128], index: 1, kind: input, shape index: {}]
  %s2 = inlined_call_operand.vmem [shape: f32[1,128], index: 2, kind: input, shape index: {}]
  %s3 = inlined_call_operand.vmem [shape: f32[392,128], index: 3, kind: output, shape index: {}]
  %s4 = sld [smem:[#allocation0]]
  $region86: #{lenet_forward.2} parent=0
    _
  %s6 = ssub.s32 1, %s4
  %s7 = scalar_select 0, %s6, %s4
  $region1: #{lenet_forward.2} parent=0
    #allocation2 [shape = 'u8[114688]{0}', space=vmem, size = 0x1c000, scoped, tag = 'input window, operand 0']
    loop: start=0, step=1, limit=9
    $region2: #{lenet_forward.2} parent=1 // loop_pre_header
      _
    $region3: #{lenet_forward.2} parent=1 // loop_header
      %s9 = sphi 0, %s13
      %p10 = scmp.ge.s32.totalorder %s9, 9
      %s19 = sphi 0, %s21
      %s22 = sphi 0, %s19
      %s23 = sphi 0, %s22
      %s39 = sphi 0, %s23
      %s43 = sphi 0, %s43
      %s45 = sphi 0, %s43
      %s46 = sphi 0, %s45
      %s60 = sphi 0, %s46
      %s64 = sphi 0, %s64
      %s66 = sphi 0, %s64
      %s67 = sphi 0, %s66
      %s81 = sphi 0, %s67
      %s87 = sphi 0, %s89
      %s90 = sphi 0, %s87
      %s91 = sphi 0, %s90
      %s107 = sphi 0, %s91
    $region4: #{lenet_forward.2} parent=1 // loop_header_branch
      %12 = sbr.rel (%p10) target = $region8
    $region5: #{lenet_forward.2} parent=1 // loop_body
      %s14 = ssub.s32 %s9, 1
      %s15 = ssub.s32 %s9, 2
      %s16 = sadd.s32 %s9, 1
      %s17 = ssub.s32 %s9, %s16
      %p18 = scmp.eq.s32.totalorder %s17, 0
      %s20 = sadd.s32 %s19, 1
      %s21 = scalar_select %p18, %s19, %s20
      %p24 = pneg %p18
      %p25 = scmp.eq.s32.totalorder %s9, 6
      %p26 = por %p24, %p25
      %p27 = scmp.ne.s32.totalorder %s19, %s22
      %p28 = scmp.eq.s32.totalorder %s9, 0
      %p29 = por %p27, %p28
      %p30 = scmp.ne.s32.totalorder %s19, %s22
      %p31 = scmp.eq.s32.totalorder %s14, 6
      %p32 = por %p30, %p31
      %p33 = scmp.ne.s32.totalorder %s22, %s23
      %p34 = scmp.eq.s32.totalorder %s14, 0
      %p35 = por %p33, %p34
      %p36 = scmp.ne.s32.totalorder %s22, %s23
      %p37 = scmp.eq.s32.totalorder %s15, 6
      %p38 = por %p36, %p37
      %p40 = scmp.ne.s32.totalorder %s23, %s39
      %p41 = scmp.eq.s32.totalorder %s15, 0
      %p42 = por %p40, %p41
      %s44 = sadd.s32 %s43, 1
      %p47 = scmp.eq.s32.totalorder %s9, 6
      %p48 = scmp.ne.s32.totalorder %s43, %s45
      %p49 = scmp.eq.s32.totalorder %s9, 0
      %p50 = por %p48, %p49
      %p51 = scmp.ne.s32.totalorder %s43, %s45
      %p52 = scmp.eq.s32.totalorder %s14, 6
      %p53 = por %p51, %p52
      %p54 = scmp.ne.s32.totalorder %s45, %s46
      %p55 = scmp.eq.s32.totalorder %s14, 0
      %p56 = por %p54, %p55
      %p57 = scmp.ne.s32.totalorder %s45, %s46
      %p58 = scmp.eq.s32.totalorder %s15, 6
      %p59 = por %p57, %p58
      %p61 = scmp.ne.s32.totalorder %s46, %s60
      %p62 = scmp.eq.s32.totalorder %s15, 0
      %p63 = por %p61, %p62
      %s65 = sadd.s32 %s64, 1
      %p68 = scmp.eq.s32.totalorder %s9, 6
      %p69 = scmp.ne.s32.totalorder %s64, %s66
      %p70 = scmp.eq.s32.totalorder %s9, 0
      %p71 = por %p69, %p70
      %p72 = scmp.ne.s32.totalorder %s64, %s66
      %p73 = scmp.eq.s32.totalorder %s14, 6
      %p74 = por %p72, %p73
      %p75 = scmp.ne.s32.totalorder %s66, %s67
      %p76 = scmp.eq.s32.totalorder %s14, 0
      %p77 = por %p75, %p76
      %p78 = scmp.ne.s32.totalorder %s66, %s67
      %p79 = scmp.eq.s32.totalorder %s15, 6
      %p80 = por %p78, %p79
      %p82 = scmp.ne.s32.totalorder %s67, %s81
      %p83 = scmp.eq.s32.totalorder %s15, 0
      %p84 = por %p82, %p83
      %s85 = ssub.s32 %s9, %s16
      %p86 = scmp.eq.s32.totalorder %s85, 0
      %s88 = sadd.s32 %s87, 1
      %s89 = scalar_select %p86, %s87, %s88
      %p92 = pneg %p86
      %p93 = scmp.eq.s32.totalorder %s9, 6
      %p94 = por %p92, %p93
      %p95 = scmp.ne.s32.totalorder %s87, %s90
      %p96 = scmp.eq.s32.totalorder %s9, 0
      %p97 = por %p95, %p96
      %p98 = scmp.ne.s32.totalorder %s87, %s90
      %p99 = scmp.eq.s32.totalorder %s14, 6
      %p100 = por %p98, %p99
      %p101 = scmp.ne.s32.totalorder %s90, %s91
      %p102 = scmp.eq.s32.totalorder %s14, 0
      %p103 = por %p101, %p102
      %p104 = scmp.ne.s32.totalorder %s90, %s91
      %p105 = scmp.eq.s32.totalorder %s15, 6
      %p106 = por %p104, %p105
      %p108 = scmp.ne.s32.totalorder %s91, %s107
      %p109 = scmp.eq.s32.totalorder %s15, 0
      %p110 = por %p108, %p109
      %p111 = scmp.le.s32.totalorder 1, %s9
      %p112 = scmp.lt.s32.totalorder %s9, 8
      %p113 = pnand %p111, %p112
      %p114 = pneg %p113
      // Predicated region
      $region9: #{lenet_forward.2} parent=5 // pred_check
        _
      $region10: #{lenet_forward.2} parent=5 // pred_check_branch
        %116 = sbr.rel (%p113) target = $region12
      $region11: #{lenet_forward.2} parent=5 // pred_region
        %s117 = ssub.s32 %s9, 1
        // Predicated region
        $region13: #{lenet_forward.2} parent=11 // pred_check
          %p118 = pneg %p56
        $region14: #{lenet_forward.2} parent=11 // pred_check_branch
          %120 = sbr.rel (%p118) target = $region16
        $region15: #{lenet_forward.2} parent=11 // pred_region
          _
        $region16: #{lenet_forward.2} parent=11 // pred_fallthru
          _
        // Predicated region
        $region17: #{lenet_forward.2} parent=11 // pred_check
          %p121 = pneg %p77
        $region18: #{lenet_forward.2} parent=11 // pred_check_branch
          %123 = sbr.rel (%p121) target = $region20
        $region19: #{lenet_forward.2} parent=11 // pred_region
          _
        $region20: #{lenet_forward.2} parent=11 // pred_fallthru
          _
      $region12: #{lenet_forward.2} parent=5 // pred_fallthru
        _
      %p124 = scmp.lt.s32.totalorder %s9, 7
      // Predicated region
      $region21: #{lenet_forward.2} parent=5 // pred_check
        %p125 = pneg %p124
      $region22: #{lenet_forward.2} parent=5 // pred_check_branch
        %127 = sbr.rel (%p125) target = $region24
      $region23: #{lenet_forward.2} parent=5 // pred_region
        // Predicated region
        $region25: #{lenet_forward.2} parent=23 // pred_check
          %p128 = pneg %p29
        $region26: #{lenet_forward.2} parent=23 // pred_check_branch
          %130 = sbr.rel (%p128) target = $region28
        $region27: #{lenet_forward.2} parent=23 // pred_region
          %s131 = sand.u32 %s19, 1
          %s132 = sand.u32 %s19, 1
          %s133 = smul.addr %s132, 112
          %s134 = scalar_lea.vmem [#allocation2], %s133
          %s135 = smul.u32 7, %s9
          %s136 = smul.addr %s135, 4
          %s137 = scalar_lea.vmem %s0, %s136
          // Predicated region
          $region29: #{lenet_forward.2} parent=27 // pred_check
            _
          $region30: #{lenet_forward.2} parent=27 // pred_check_branch
            %139 = sbr.rel (0) target = $region32
          $region31: #{lenet_forward.2} parent=27 // pred_region
            // Predicated region
            $region33: #{lenet_forward.2} parent=31 // pred_check
              _
            $region34: #{lenet_forward.2} parent=31 // pred_check_branch
              %141 = sbr.rel target = $region36
            $region35: #{lenet_forward.2} parent=31 // pred_region
              // Predicated region
              $region48: #{lenet_forward.2} parent=35 // pred_check
                _
              $region49: #{lenet_forward.2} parent=35 // pred_check_branch
                %210 = sbr.rel (0) target = $region51
              $region50: #{lenet_forward.2} parent=35 // pred_region
                loop: start=0, step=1, limit=1
                $region52: #{lenet_forward.2} parent=50 // loop_pre_header
                  _
                $region53: #{lenet_forward.2} parent=50 // loop_header
                  %s212 = sphi 0, %s216
                  %p213 = scmp.ge.s32.totalorder %s212, 1
                  %s217 = sphi %s137, %s137
                  %s218 = sphi %s134, %s134
                $region54: #{lenet_forward.2} parent=50 // loop_header_branch
                  %215 = sbr.rel (%p213) target = $region58
                $region55: #{lenet_forward.2} parent=50 // loop_body
                  _
                $region56: #{lenet_forward.2} parent=50 // loop_footer
                  %s216 = sadd.s32 1, %s212
                $region57: #{lenet_forward.2} parent=50 // loop_footer_branch
                  %211 = sbr.rel target = $region53
                $region58: #{lenet_forward.2} parent=50 // loop_exit
                  _
                loop: start=0, step=1, limit=1
                $region59: #{lenet_forward.2} parent=50 // loop_pre_header
                  _
                $region60: #{lenet_forward.2} parent=50 // loop_header
                  %s221 = sphi 0, %s225
                  %p222 = scmp.ge.s32.totalorder %s221, 1
                  %s226 = sphi %s137, %s137
                  %s227 = sphi %s134, %s134
                $region61: #{lenet_forward.2} parent=50 // loop_header_branch
                  %224 = sbr.rel (%p222) target = $region65
                $region62: #{lenet_forward.2} parent=50 // loop_body
                  %v228 = vld [vmem:[%s226] sm:$0xf]
                  %229 = vst [vmem:[%s227] sm:$0xf] %v228
                  %v230 = vld [vmem:[%s226 + $0x4] sm:$0xf]
                  %231 = vst [vmem:[%s227 + $0x4] sm:$0xf] %v230
                  %v232 = vld [vmem:[%s226 + $0x8] sm:$0xf]
                  %233 = vst [vmem:[%s227 + $0x8] sm:$0xf] %v232
                  %v234 = vld [vmem:[%s226 + $0xc] sm:$0xf]
                  %235 = vst [vmem:[%s227 + $0xc] sm:$0xf] %v234
                  %v236 = vld [vmem:[%s226 + $0x10] sm:$0xf]
                  %237 = vst [vmem:[%s227 + $0x10] sm:$0xf] %v236
                  %v238 = vld [vmem:[%s226 + $0x14] sm:$0xf]
                  %239 = vst [vmem:[%s227 + $0x14] sm:$0xf] %v238
                  %v240 = vld [vmem:[%s226 + $0x18] sm:$0xf]
                  %241 = vst [vmem:[%s227 + $0x18] sm:$0xf] %v240
                  %v242 = vld [vmem:[%s226 + $0xc4] sm:$0xf]
                  %243 = vst [vmem:[%s227 + $0x1c] sm:$0xf] %v242
                  %v244 = vld [vmem:[%s226 + $0xc8] sm:$0xf]
                  %245 = vst [vmem:[%s227 + $0x20] sm:$0xf] %v244
                  %v246 = vld [vmem:[%s226 + $0xcc] sm:$0xf]
                  %247 = vst [vmem:[%s227 + $0x24] sm:$0xf] %v246
                  %v248 = vld [vmem:[%s226 + $0xd0] sm:$0xf]
                  %249 = vst [vmem:[%s227 + $0x28] sm:$0xf] %v248
                  %v250 = vld [vmem:[%s226 + $0xd4] sm:$0xf]
                  %251 = vst [vmem:[%s227 + $0x2c] sm:$0xf] %v250
                  %v252 = vld [vmem:[%s226 + $0xd8] sm:$0xf]
                  %253 = vst [vmem:[%s227 + $0x30] sm:$0xf] %v252
                  %v254 = vld [vmem:[%s226 + $0xdc] sm:$0xf]
                  %255 = vst [vmem:[%s227 + $0x34] sm:$0xf] %v254
                  %v256 = vld [vmem:[%s226 + $0x188] sm:$0xf]
                  %257 = vst [vmem:[%s227 + $0x38] sm:$0xf] %v256
                  %v258 = vld [vmem:[%s226 + $0x18c] sm:$0xf]
                  %259 = vst [vmem:[%s227 + $0x3c] sm:$0xf] %v258
                  %v260 = vld [vmem:[%s226 + $0x190] sm:$0xf]
                  %261 = vst [vmem:[%s227 + $0x40] sm:$0xf] %v260
                  %v262 = vld [vmem:[%s226 + $0x194] sm:$0xf]
                  %263 = vst [vmem:[%s227 + $0x44] sm:$0xf] %v262
                  %v264 = vld [vmem:[%s226 + $0x198] sm:$0xf]
                  %265 = vst [vmem:[%s227 + $0x48] sm:$0xf] %v264
                  %v266 = vld [vmem:[%s226 + $0x19c] sm:$0xf]
                  %267 = vst [vmem:[%s227 + $0x4c] sm:$0xf] %v266
                  %v268 = vld [vmem:[%s226 + $0x1a0] sm:$0xf]
                  %269 = vst [vmem:[%s227 + $0x50] sm:$0xf] %v268
                  %v270 = vld [vmem:[%s226 + $0x24c] sm:$0xf]
                  %271 = vst [vmem:[%s227 + $0x54] sm:$0xf] %v270
                  %v272 = vld [vmem:[%s226 + $0x250] sm:$0xf]
                  %273 = vst [vmem:[%s227 + $0x58] sm:$0xf] %v272
                  %v274 = vld [vmem:[%s226 + $0x254] sm:$0xf]
                  %275 = vst [vmem:[%s227 + $0x5c] sm:$0xf] %v274
                  %v276 = vld [vmem:[%s226 + $0x258] sm:$0xf]
                  %277 = vst [vmem:[%s227 + $0x60] sm:$0xf] %v276
                  %v278 = vld [vmem:[%s226 + $0x25c] sm:$0xf]
                  %279 = vst [vmem:[%s227 + $0x64] sm:$0xf] %v278
                  %v280 = vld [vmem:[%s226 + $0x260] sm:$0xf]
                  %281 = vst [vmem:[%s227 + $0x68] sm:$0xf] %v280
                  %v282 = vld [vmem:[%s226 + $0x264] sm:$0xf]
                  %283 = vst [vmem:[%s227 + $0x6c] sm:$0xf] %v282
                $region63: #{lenet_forward.2} parent=50 // loop_footer
                  %s225 = sadd.s32 1, %s221
                $region64: #{lenet_forward.2} parent=50 // loop_footer_branch
                  %220 = sbr.rel target = $region60
                $region65: #{lenet_forward.2} parent=50 // loop_exit
                  _
              $region51: #{lenet_forward.2} parent=35 // pred_fallthru
                _
            $region36: #{lenet_forward.2} parent=31 // pred_fallthru
              _
            // Predicated region
            $region37: #{lenet_forward.2} parent=31 // pred_check
              _
            $region38: #{lenet_forward.2} parent=31 // pred_check_branch
              %143 = sbr.rel (0) target = $region40
            $region39: #{lenet_forward.2} parent=31 // pred_region
              loop: start=0, step=1, limit=1
              $region41: #{lenet_forward.2} parent=39 // loop_pre_header
                _
              $region42: #{lenet_forward.2} parent=39 // loop_header
                %s146 = sphi 0, %s150
                %p147 = scmp.ge.s32.totalorder %s146, 1
                %s151 = sphi %s137, %s137
                %s152 = sphi %s134, %s134
              $region43: #{lenet_forward.2} parent=39 // loop_header_branch
                %149 = sbr.rel (%p147) target = $region47
              $region44: #{lenet_forward.2} parent=39 // loop_body
                %v153 = vld [vmem:[%s151] sm:$0xf]
                %154 = vst [vmem:[%s152] sm:$0xf] %v153
                %v155 = vld [vmem:[%s151 + $0x4] sm:$0xf]
                %156 = vst [vmem:[%s152 + $0x4] sm:$0xf] %v155
                %v157 = vld [vmem:[%s151 + $0x8] sm:$0xf]
                %158 = vst [vmem:[%s152 + $0x8] sm:$0xf] %v157
                %v159 = vld [vmem:[%s151 + $0xc] sm:$0xf]
                %160 = vst [vmem:[%s152 + $0xc] sm:$0xf] %v159
                %v161 = vld [vmem:[%s151 + $0x10] sm:$0xf]
                %162 = vst [vmem:[%s152 + $0x10] sm:$0xf] %v161
                %v163 = vld [vmem:[%s151 + $0x14] sm:$0xf]
                %164 = vst [vmem:[%s152 + $0x14] sm:$0xf] %v163
                %v165 = vld [vmem:[%s151 + $0x18] sm:$0xf]
                %166 = vst [vmem:[%s152 + $0x18] sm:$0xf] %v165
                %v167 = vld [vmem:[%s151 + $0xc4] sm:$0xf]
                %168 = vst [vmem:[%s152 + $0x1c] sm:$0xf] %v167
                %v169 = vld [vmem:[%s151 + $0xc8] sm:$0xf]
                %170 = vst [vmem:[%s152 + $0x20] sm:$0xf] %v169
                %v171 = vld [vmem:[%s151 + $0xcc] sm:$0xf]
                %172 = vst [vmem:[%s152 + $0x24] sm:$0xf] %v171
                %v173 = vld [vmem:[%s151 + $0xd0] sm:$0xf]
                %174 = vst [vmem:[%s152 + $0x28] sm:$0xf] %v173
                %v175 = vld [vmem:[%s151 + $0xd4] sm:$0xf]
                %176 = vst [vmem:[%s152 + $0x2c] sm:$0xf] %v175
                %v177 = vld [vmem:[%s151 + $0xd8] sm:$0xf]
                %178 = vst [vmem:[%s152 + $0x30] sm:$0xf] %v177
                %v179 = vld [vmem:[%s151 + $0xdc] sm:$0xf]
                %180 = vst [vmem:[%s152 + $0x34] sm:$0xf] %v179
                %v181 = vld [vmem:[%s151 + $0x188] sm:$0xf]
                %182 = vst [vmem:[%s152 + $0x38] sm:$0xf] %v181
                %v183 = vld [vmem:[%s151 + $0x18c] sm:$0xf]
                %184 = vst [vmem:[%s152 + $0x3c] sm:$0xf] %v183
                %v185 = vld [vmem:[%s151 + $0x190] sm:$0xf]
                %186 = vst [vmem:[%s152 + $0x40] sm:$0xf] %v185
                %v187 = vld [vmem:[%s151 + $0x194] sm:$0xf]
                %188 = vst [vmem:[%s152 + $0x44] sm:$0xf] %v187
                %v189 = vld [vmem:[%s151 + $0x198] sm:$0xf]
                %190 = vst [vmem:[%s152 + $0x48] sm:$0xf] %v189
                %v191 = vld [vmem:[%s151 + $0x19c] sm:$0xf]
                %192 = vst [vmem:[%s152 + $0x4c] sm:$0xf] %v191
                %v193 = vld [vmem:[%s151 + $0x1a0] sm:$0xf]
                %194 = vst [vmem:[%s152 + $0x50] sm:$0xf] %v193
                %v195 = vld [vmem:[%s151 + $0x24c] sm:$0xf]
                %196 = vst [vmem:[%s152 + $0x54] sm:$0xf] %v195
                %v197 = vld [vmem:[%s151 + $0x250] sm:$0xf]
                %198 = vst [vmem:[%s152 + $0x58] sm:$0xf] %v197
                %v199 = vld [vmem:[%s151 + $0x254] sm:$0xf]
                %200 = vst [vmem:[%s152 + $0x5c] sm:$0xf] %v199
                %v201 = vld [vmem:[%s151 + $0x258] sm:$0xf]
                %202 = vst [vmem:[%s152 + $0x60] sm:$0xf] %v201
                %v203 = vld [vmem:[%s151 + $0x25c] sm:$0xf]
                %204 = vst [vmem:[%s152 + $0x64] sm:$0xf] %v203
                %v205 = vld [vmem:[%s151 + $0x260] sm:$0xf]
                %206 = vst [vmem:[%s152 + $0x68] sm:$0xf] %v205
                %v207 = vld [vmem:[%s151 + $0x264] sm:$0xf]
                %208 = vst [vmem:[%s152 + $0x6c] sm:$0xf] %v207
              $region45: #{lenet_forward.2} parent=39 // loop_footer
                %s150 = sadd.s32 1, %s146
              $region46: #{lenet_forward.2} parent=39 // loop_footer_branch
                %145 = sbr.rel target = $region42
              $region47: #{lenet_forward.2} parent=39 // loop_exit
                _
            $region40: #{lenet_forward.2} parent=31 // pred_fallthru
              _
          $region32: #{lenet_forward.2} parent=27 // pred_fallthru
            _
          %284 = vnop
        $region28: #{lenet_forward.2} parent=23 // pred_fallthru
          _
      $region24: #{lenet_forward.2} parent=5 // pred_fallthru
        _
      %p285 = scmp.le.s32.totalorder 1, %s9
      %p286 = scmp.lt.s32.totalorder %s9, 8
      %p287 = pnand %p285, %p286
      %p288 = pneg %p287
      // Predicated region
      $region66: #{lenet_forward.2} parent=5 // pred_check
        _
      $region67: #{lenet_forward.2} parent=5 // pred_check_branch
        %290 = sbr.rel (%p287) target = $region69
      $region68: #{lenet_forward.2} parent=5 // pred_region
        %s291 = ssub.s32 %s9, 1
        %s292 = sand.u32 %s22, 1
        %s293 = sand.u32 %s22, 1
        %s294 = smul.addr %s293, 112
        %s295 = scalar_lea.vmem [#allocation2], %s294
        // Predicated region
        $region70: #{lenet_forward.2} parent=68 // pred_check
          %p296 = pneg %p35
        $region71: #{lenet_forward.2} parent=68 // pred_check_branch
          %298 = sbr.rel (%p296) target = $region73
        $region72: #{lenet_forward.2} parent=68 // pred_region
          _
        $region73: #{lenet_forward.2} parent=68 // pred_fallthru
          _
        %s299 = sand.u32 %s22, 1
        %s300 = sand.u32 %s22, 1
        %s301 = smul.addr %s300, 112
        %s302 = scalar_lea.vmem [#allocation2], %s301
        %p303 = pneg %p35
        %p304 = pneg %p32
        %p305 = pneg %p56
        %p306 = pneg %p53
        %p307 = pneg %p77
        %p308 = pneg %p74
        %p309 = pneg %p103
        %p310 = pneg %p100
        %s311 = smul.u32 7, %s14
        %p312 = scmp.lt.s32.totalorder %s311, 48
        %s313 = scalar_select %p312, %s311, 48
        %s314 = smul.addr %s313, 8
        %s315 = scalar_lea.vmem %s3, %s314
        %s316 = smul.u32 7, %s14
        %s317 = smul.u32 7, %s14
        %p318 = scmp.lt.s32.totalorder %s317, 48
        %s319 = scalar_select %p318, %s317, 48
        %s320 = smul.addr %s319, 8
        %s321 = scalar_lea.vmem %s3, %s320
        %s322 = smul.u32 7, %s14
        %v324 = vld [vmem:[%s295] sm:$0xf]
        %v325 = vld [vmem:[%s295 + $0x4] sm:$0xf]
        %v326 = vld [vmem:[%s295 + $0x8] sm:$0xf]
        %v327 = vld [vmem:[%s295 + $0xc] sm:$0xf]
        %v328 = vld [vmem:[%s295 + $0x10] sm:$0xf]
        %v329 = vld [vmem:[%s295 + $0x14] sm:$0xf]
        %v330 = vld [vmem:[%s295 + $0x18] sm:$0xf]
        %v331 = vld [vmem:[%s1] sm:$0xf]
        %v332 = vld [vmem:[%s1 + $0x4] sm:$0xf]
        %v333 = vld [vmem:[%s1 + $0x8] sm:$0xf]
        %v334 = vld [vmem:[%s1 + $0xc] sm:$0xf]
        %v335 = vld [vmem:[%s1 + $0x10] sm:$0xf]
        %v336 = vld [vmem:[%s1 + $0x14] sm:$0xf]
        %v337 = vld [vmem:[%s1 + $0x18] sm:$0xf]
        %v338 = vld [vmem:[%s1 + $0x1c] sm:$0xf]
        %v339 = vld [vmem:[%s1 + $0x20] sm:$0xf]
        %v340 = vld [vmem:[%s1 + $0x24] sm:$0xf]
        %v341 = vld [vmem:[%s1 + $0x28] sm:$0xf]
        %v342 = vld [vmem:[%s1 + $0x2c] sm:$0xf]
        %v343 = vld [vmem:[%s1 + $0x30] sm:$0xf]
        %v344 = vld [vmem:[%s1 + $0x34] sm:$0xf]
        %v345 = vld [vmem:[%s1 + $0x38] sm:$0xf]
        %v346 = vld [vmem:[%s1 + $0x3c] sm:$0xf]
        %v354 = vunpack.c.l.b16 %v324
        %v355 = vunpack.c.l.b16 %v325
        %v356 = vunpack.c.l.b16 %v326
        %v357 = vunpack.c.l.b16 %v327
        %v358 = vunpack.c.l.b16 %v328
        %v359 = vunpack.c.l.b16 %v329
        %v360 = vunpack.c.l.b16 %v330
        %v361 = vpack.c.b16 %v355, %v354
        %v362 = vpack.c.b16 %v357, %v356
        %v363 = vpack.c.b16 %v359, %v358
        %v364 = vpack.c.b16 %v360, %v360
        %v385 = vunpack.c.l.b16 %v331
        %v386 = vunpack.c.l.b16 %v332
        %v387 = vunpack.c.l.b16 %v333
        %v388 = vunpack.c.l.b16 %v334
        %v389 = vunpack.c.l.b16 %v335
        %v390 = vunpack.c.l.b16 %v336
        %v391 = vunpack.c.l.b16 %v337
        %v392 = vunpack.c.l.b16 %v338
        %v393 = vunpack.c.l.b16 %v339
        %v394 = vunpack.c.l.b16 %v340
        %v395 = vunpack.c.l.b16 %v341
        %v396 = vunpack.c.l.b16 %v342
        %v397 = vunpack.c.l.b16 %v343
        %v398 = vunpack.c.l.b16 %v344
        %v399 = vunpack.c.l.b16 %v345
        %v400 = vunpack.c.l.b16 %v346
        %v401 = vpack.c.b16 %v386, %v385
        %v402 = vpack.c.b16 %v388, %v387
        %v403 = vpack.c.b16 %v390, %v389
        %v404 = vpack.c.b16 %v392, %v391
        %v405 = vpack.c.b16 %v394, %v393
        %v406 = vpack.c.b16 %v396, %v395
        %v407 = vpack.c.b16 %v398, %v397
        %v408 = vpack.c.b16 %v400, %v399
        %417 = vmatprep.subr.bf16.mxu0 0
        %418 = vmatpush1.bf16.msra.mxu0 %v401
        %419 = vmatprep.subr.bf16.mxu0 0
        %420 = vmatpush1.bf16.msra.mxu0 %v402
        %421 = vmatprep.subr.bf16.mxu0 0
        %422 = vmatpush1.bf16.msra.mxu0 %v403
        %423 = vmatprep.subr.bf16.mxu0 0
        %424 = vmatpush1.bf16.msra.mxu0 %v404
        %425 = vmatprep.subr.bf16.mxu0 0
        %426 = vmatpush1.bf16.msra.mxu0 %v405
        %427 = vmatprep.subr.bf16.mxu0 0
        %428 = vmatpush1.bf16.msra.mxu0 %v406
        %429 = vmatprep.subr.bf16.mxu0 0
        %430 = vmatpush1.bf16.msra.mxu0 %v407
        %431 = vmatprep.subr.bf16.mxu0 0
        %432 = vmatpush1.bf16.msra.mxu0 %v408
        %433 = vmatprep.subr.bf16.mxu0 0
        %434 = vmatpush1.bf16.msra.mxu0 0
        %435 = vmatprep.subr.bf16.mxu0 0
        %436 = vmatpush1.bf16.msra.mxu0 0
        %437 = vmatprep.subr.bf16.mxu0 0
        %438 = vmatpush1.bf16.msra.mxu0 0
        %439 = vmatprep.subr.bf16.mxu0 0
        %440 = vmatpush1.bf16.msra.mxu0 0
        %441 = vmatprep.subr.bf16.mxu0 0
        %442 = vmatpush1.bf16.msra.mxu0 0
        %443 = vmatprep.subr.bf16.mxu0 0
        %444 = vmatpush1.bf16.msra.mxu0 0
        %445 = vmatprep.subr.bf16.mxu0 0
        %446 = vmatpush1.bf16.msra.mxu0 0
        %447 = vmatprep.subr.bf16.mxu0 0
        %448 = vmatpush1.bf16.msra.mxu0 0
        %449 = vmatprep.mubr.bf16.mxu0 0
        %450 = vmatmul.mubr.bf16.gmra.mrb[0].mxu0 %v361
        %v451 = vpop.f32.mrb[0].mxu0
        %v452 = vadd.f32 0.0, %v451
        %v453 = vpop.f32.mrb[0].mxu0
        %v454 = vpop.f32.mrb[0].mxu0
        %v455 = vadd.f32 0.0, %v454
        %v456 = vpop.f32.mrb[0].mxu0
        %457 = vmatprep.mubr.bf16.mxu0 0
        %458 = vmatmul.mubr.bf16.gmra.mrb[0].mxu0 %v362
        %v459 = vpop.f32.mrb[0].mxu0
        %v460 = vadd.f32 0.0, %v459
        %v461 = vpop.f32.mrb[0].mxu0
        %v462 = vpop.f32.mrb[0].mxu0
        %v463 = vadd.f32 0.0, %v462
        %v464 = vpop.f32.mrb[0].mxu0
        %465 = vmatprep.mubr.bf16.mxu0 0
        %466 = vmatmul.mubr.bf16.gmra.mrb[0].mxu0 %v363
        %v467 = vpop.f32.mrb[0].mxu0
        %v468 = vadd.f32 0.0, %v467
        %v469 = vpop.f32.mrb[0].mxu0
        %v470 = vpop.f32.mrb[0].mxu0
        %v471 = vadd.f32 0.0, %v470
        %v472 = vpop.f32.mrb[0].mxu0
        %473 = vmatprep.mubr.bf16.mxu0 0
        %474 = vmatmul.mubr.bf16.gmra.mrb[0].mxu0 %v364
        %v475 = vpop.f32.mrb[0].mxu0
        %v476 = vadd.f32 0.0, %v475
        %v477 = vpop.f32.mrb[0].mxu0
        %v478 = vpop.f32.mrb[0].mxu0
        %v479 = vpop.f32.mrb[0].mxu0
        %480 = vdwg.mxu0
        %s481 = scalar_lea.vmem %s295, 28 [#allocation2]
        %v482 = vld [vmem:[%s481] sm:$0xf]
        %v483 = vld [vmem:[%s481 + $0x4] sm:$0xf]
        %v484 = vld [vmem:[%s481 + $0x8] sm:$0xf]
        %v485 = vld [vmem:[%s481 + $0xc] sm:$0xf]
        %v486 = vld [vmem:[%s481 + $0x10] sm:$0xf]
        %v487 = vld [vmem:[%s481 + $0x14] sm:$0xf]
        %v488 = vld [vmem:[%s481 + $0x18] sm:$0xf]
        %v496 = vunpack.c.l.b16 %v482
        %v497 = vunpack.c.l.b16 %v483
        %v498 = vunpack.c.l.b16 %v484
        %v499 = vunpack.c.l.b16 %v485
        %v500 = vunpack.c.l.b16 %v486
        %v501 = vunpack.c.l.b16 %v487
        %v502 = vunpack.c.l.b16 %v488
        %v503 = vpack.c.b16 %v497, %v496
        %v504 = vpack.c.b16 %v499, %v498
        %v505 = vpack.c.b16 %v501, %v500
        %v506 = vpack.c.b16 %v502, %v502
        %511 = vmatprep.subr.bf16.mxu0 0
        %512 = vmatpush1.bf16.msra.mxu0 %v401
        %513 = vmatprep.subr.bf16.mxu0 0
        %514 = vmatpush1.bf16.msra.mxu0 %v402
        %515 = vmatprep.subr.bf16.mxu0 0
        %516 = vmatpush1.bf16.msra.mxu0 %v403
        %517 = vmatprep.subr.bf16.mxu0 0
        %518 = vmatpush1.bf16.msra.mxu0 %v404
        %519 = vmatprep.subr.bf16.mxu0 0
        %520 = vmatpush1.bf16.msra.mxu0 %v405
        %521 = vmatprep.subr.bf16.mxu0 0
        %522 = vmatpush1.bf16.msra.mxu0 %v406
        %523 = vmatprep.subr.bf16.mxu0 0
        %524 = vmatpush1.bf16.msra.mxu0 %v407
        %525 = vmatprep.subr.bf16.mxu0 0
        %526 = vmatpush1.bf16.msra.mxu0 %v408
        %527 = vmatprep.subr.bf16.mxu0 0
        %528 = vmatpush1.bf16.msra.mxu0 0
        %529 = vmatprep.subr.bf16.mxu0 0
        %530 = vmatpush1.bf16.msra.mxu0 0
        %531 = vmatprep.subr.bf16.mxu0 0
        %532 = vmatpush1.bf16.msra.mxu0 0
        %533 = vmatprep.subr.bf16.mxu0 0
        %534 = vmatpush1.bf16.msra.mxu0 0
        %535 = vmatprep.subr.bf16.mxu0 0
        %536 = vmatpush1.bf16.msra.mxu0 0
        %537 = vmatprep.subr.bf16.mxu0 0
        %538 = vmatpush1.bf16.msra.mxu0 0
        %539 = vmatprep.subr.bf16.mxu0 0
        %540 = vmatpush1.bf16.msra.mxu0 0
        %541 = vmatprep.subr.bf16.mxu0 0
        %542 = vmatpush1.bf16.msra.mxu0 0
        %543 = vmatprep.mubr.bf16.mxu0 0
        %544 = vmatmul.mubr.bf16.gmra.mrb[0].mxu0 %v503
        %v545 = vpop.f32.mrb[0].mxu0
        %v546 = vadd.f32 0.0, %v545
        %v547 = vpop.f32.mrb[0].mxu0
        %v548 = vpop.f32.mrb[0].mxu0
        %v549 = vadd.f32 0.0, %v548
        %v550 = vpop.f32.mrb[0].mxu0
        %551 = vmatprep.mubr.bf16.mxu0 0
        %552 = vmatmul.mubr.bf16.gmra.mrb[0].mxu0 %v504
        %v553 = vpop.f32.mrb[0].mxu0
        %v554 = vadd.f32 0.0, %v553
        %v555 = vpop.f32.mrb[0].mxu0
        %v556 = vpop.f32.mrb[0].mxu0
        %v557 = vadd.f32 0.0, %v556
        %v558 = vpop.f32.mrb[0].mxu0
        %559 = vmatprep.mubr.bf16.mxu0 0
        %560 = vmatmul.mubr.bf16.gmra.mrb[0].mxu0 %v505
        %v561 = vpop.f32.mrb[0].mxu0
        %v562 = vadd.f32 0.0, %v561
        %v563 = vpop.f32.mrb[0].mxu0
        %v564 = vpop.f32.mrb[0].mxu0
        %v565 = vadd.f32 0.0, %v564
        %v566 = vpop.f32.mrb[0].mxu0
        %567 = vmatprep.mubr.bf16.mxu0 0
        %568 = vmatmul.mubr.bf16.gmra.mrb[0].mxu0 %v506
        %v569 = vpop.f32.mrb[0].mxu0
        %v570 = vadd.f32 0.0, %v569
        %v571 = vpop.f32.mrb[0].mxu0
        %v572 = vpop.f32.mrb[0].mxu0
        %v573 = vpop.f32.mrb[0].mxu0
        %574 = vdwg.mxu0
        %v575 = vmax.f32 %v452, %v546
        %v576 = vmax.f32 %v455, %v549
        %v577 = vmax.f32 %v460, %v554
        %v578 = vmax.f32 %v463, %v557
        %v579 = vmax.f32 %v468, %v562
        %v580 = vmax.f32 %v471, %v565
        %v581 = vmax.f32 %v476, %v570
        %s582 = scalar_lea.vmem %s295, 56 [#allocation2]
        %v583 = vld [vmem:[%s582] sm:$0xf]
        %v584 = vld [vmem:[%s582 + $0x4] sm:$0xf]
        %v585 = vld [vmem:[%s582 + $0x8] sm:$0xf]
        %v586 = vld [vmem:[%s582 + $0xc] sm:$0xf]
        %v587 = vld [vmem:[%s582 + $0x10] sm:$0xf]
        %v588 = vld [vmem:[%s582 + $0x14] sm:$0xf]
        %v589 = vld [vmem:[%s582 + $0x18] sm:$0xf]
        %v597 = vunpack.c.l.b16 %v583
        %v598 = vunpack.c.l.b16 %v584
        %v599 = vunpack.c.l.b16 %v585
        %v600 = vunpack.c.l.b16 %v586
        %v601 = vunpack.c.l.b16 %v587
        %v602 = vunpack.c.l.b16 %v588
        %v603 = vunpack.c.l.b16 %v589
        %v604 = vpack.c.b16 %v598, %v597
        %v605 = vpack.c.b16 %v600, %v599
        %v606 = vpack.c.b16 %v602, %v601
        %v607 = vpack.c.b16 %v603, %v603
        %612 = vmatprep.subr.bf16.mxu0 0
        %613 = vmatpush1.bf16.msra.mxu0 %v401
        %614 = vmatprep.subr.bf16.mxu0 0
        %615 = vmatpush1.bf16.msra.mxu0 %v402
        %616 = vmatprep.subr.bf16.mxu0 0
        %617 = vmatpush1.bf16.msra.mxu0 %v403
        %618 = vmatprep.subr.bf16.mxu0 0
        %619 = vmatpush1.bf16.msra.mxu0 %v404
        %620 = vmatprep.subr.bf16.mxu0 0
        %621 = vmatpush1.bf16.msra.mxu0 %v405
        %622 = vmatprep.subr.bf16.mxu0 0
        %623 = vmatpush1.bf16.msra.mxu0 %v406
        %624 = vmatprep.subr.bf16.mxu0 0
        %625 = vmatpush1.bf16.msra.mxu0 %v407
        %626 = vmatprep.subr.bf16.mxu0 0
        %627 = vmatpush1.bf16.msra.mxu0 %v408
        %628 = vmatprep.subr.bf16.mxu0 0
        %629 = vmatpush1.bf16.msra.mxu0 0
        %630 = vmatprep.subr.bf16.mxu0 0
        %631 = vmatpush1.bf16.msra.mxu0 0
        %632 = vmatprep.subr.bf16.mxu0 0
        %633 = vmatpush1.bf16.msra.mxu0 0
        %634 = vmatprep.subr.bf16.mxu0 0
        %635 = vmatpush1.bf16.msra.mxu0 0
        %636 = vmatprep.subr.bf16.mxu0 0
        %637 = vmatpush1.bf16.msra.mxu0 0
        %638 = vmatprep.subr.bf16.mxu0 0
        %639 = vmatpush1.bf16.msra.mxu0 0
        %640 = vmatprep.subr.bf16.mxu0 0
        %641 = vmatpush1.bf16.msra.mxu0 0
        %642 = vmatprep.subr.bf16.mxu0 0
        %643 = vmatpush1.bf16.msra.mxu0 0
        %644 = vmatprep.mubr.bf16.mxu0 0
        %645 = vmatmul.mubr.bf16.gmra.mrb[0].mxu0 %v604
        %v646 = vpop.f32.mrb[0].mxu0
        %v647 = vadd.f32 0.0, %v646
        %v648 = vpop.f32.mrb[0].mxu0
        %v649 = vpop.f32.mrb[0].mxu0
        %v650 = vadd.f32 0.0, %v649
        %v651 = vpop.f32.mrb[0].mxu0
        %652 = vmatprep.mubr.bf16.mxu0 0
        %653 = vmatmul.mubr.bf16.gmra.mrb[0].mxu0 %v605
        %v654 = vpop.f32.mrb[0].mxu0
        %v655 = vadd.f32 0.0, %v654
        %v656 = vpop.f32.mrb[0].mxu0
        %v657 = vpop.f32.mrb[0].mxu0
        %v658 = vadd.f32 0.0, %v657
        %v659 = vpop.f32.mrb[0].mxu0
        %660 = vmatprep.mubr.bf16.mxu0 0
        %661 = vmatmul.mubr.bf16.gmra.mrb[0].mxu0 %v606
        %v662 = vpop.f32.mrb[0].mxu0
        %v663 = vadd.f32 0.0, %v662
        %v664 = vpop.f32.mrb[0].mxu0
        %v665 = vpop.f32.mrb[0].mxu0
        %v666 = vadd.f32 0.0, %v665
        %v667 = vpop.f32.mrb[0].mxu0
        %668 = vmatprep.mubr.bf16.mxu0 0
        %669 = vmatmul.mubr.bf16.gmra.mrb[0].mxu0 %v607
        %v670 = vpop.f32.mrb[0].mxu0
        %v671 = vadd.f32 0.0, %v670
        %v672 = vpop.f32.mrb[0].mxu0
        %v673 = vpop.f32.mrb[0].mxu0
        %v674 = vpop.f32.mrb[0].mxu0
        %675 = vdwg.mxu0
        %v676 = vmax.f32 %v575, %v647
        %v677 = vmax.f32 %v576, %v650
        %v678 = vmax.f32 %v577, %v655
        %v679 = vmax.f32 %v578, %v658
        %v680 = vmax.f32 %v579, %v663
        %v681 = vmax.f32 %v580, %v666
        %v682 = vmax.f32 %v581, %v671
        %s683 = scalar_lea.vmem %s295, 84 [#allocation2]
        %v684 = vld [vmem:[%s683] sm:$0xf]
        %v685 = vld [vmem:[%s683 + $0x4] sm:$0xf]
        %v686 = vld [vmem:[%s683 + $0x8] sm:$0xf]
        %v687 = vld [vmem:[%s683 + $0xc] sm:$0xf]
        %v688 = vld [vmem:[%s683 + $0x10] sm:$0xf]
        %v689 = vld [vmem:[%s683 + $0x14] sm:$0xf]
        %v690 = vld [vmem:[%s683 + $0x18] sm:$0xf]
        %v698 = vunpack.c.l.b16 %v684
        %v699 = vunpack.c.l.b16 %v685
        %v700 = vunpack.c.l.b16 %v686
        %v701 = vunpack.c.l.b16 %v687
        %v702 = vunpack.c.l.b16 %v688
        %v703 = vunpack.c.l.b16 %v689
        %v704 = vunpack.c.l.b16 %v690
        %v705 = vpack.c.b16 %v699, %v698
        %v706 = vpack.c.b16 %v701, %v700
        %v707 = vpack.c.b16 %v703, %v702
        %v708 = vpack.c.b16 %v704, %v704
        %713 = vmatprep.subr.bf16.mxu0 0
        %714 = vmatpush1.bf16.msra.mxu0 %v401
        %715 = vmatprep.subr.bf16.mxu0 0
        %716 = vmatpush1.bf16.msra.mxu0 %v402
        %717 = vmatprep.subr.bf16.mxu0 0
        %718 = vmatpush1.bf16.msra.mxu0 %v403
        %719 = vmatprep.subr.bf16.mxu0 0
        %720 = vmatpush1.bf16.msra.mxu0 %v404
        %721 = vmatprep.subr.bf16.mxu0 0
        %722 = vmatpush1.bf16.msra.mxu0 %v405
        %723 = vmatprep.subr.bf16.mxu0 0
        %724 = vmatpush1.bf16.msra.mxu0 %v406
        %725 = vmatprep.subr.bf16.mxu0 0
        %726 = vmatpush1.bf16.msra.mxu0 %v407
        %727 = vmatprep.subr.bf16.mxu0 0
        %728 = vmatpush1.bf16.msra.mxu0 %v408
        %729 = vmatprep.subr.bf16.mxu0 0
        %730 = vmatpush1.bf16.msra.mxu0 0
        %731 = vmatprep.subr.bf16.mxu0 0
        %732 = vmatpush1.bf16.msra.mxu0 0
        %733 = vmatprep.subr.bf16.mxu0 0
        %734 = vmatpush1.bf16.msra.mxu0 0
        %735 = vmatprep.subr.bf16.mxu0 0
        %736 = vmatpush1.bf16.msra.mxu0 0
        %737 = vmatprep.subr.bf16.mxu0 0
        %738 = vmatpush1.bf16.msra.mxu0 0
        %739 = vmatprep.subr.bf16.mxu0 0
        %740 = vmatpush1.bf16.msra.mxu0 0
        %741 = vmatprep.subr.bf16.mxu0 0
        %742 = vmatpush1.bf16.msra.mxu0 0
        %743 = vmatprep.subr.bf16.mxu0 0
        %744 = vmatpush1.bf16.msra.mxu0 0
        %745 = vmatprep.mubr.bf16.mxu0 0
        %746 = vmatmul.mubr.bf16.gmra.mrb[0].mxu0 %v705
        %v747 = vpop.f32.mrb[0].mxu0
        %v748 = vadd.f32 0.0, %v747
        %v749 = vpop.f32.mrb[0].mxu0
        %v750 = vpop.f32.mrb[0].mxu0
        %v751 = vadd.f32 0.0, %v750
        %v752 = vpop.f32.mrb[0].mxu0
        %753 = vmatprep.mubr.bf16.mxu0 0
        %754 = vmatmul.mubr.bf16.gmra.mrb[0].mxu0 %v706
        %v755 = vpop.f32.mrb[0].mxu0
        %v756 = vadd.f32 0.0, %v755
        %v757 = vpop.f32.mrb[0].mxu0
        %v758 = vpop.f32.mrb[0].mxu0
        %v759 = vadd.f32 0.0, %v758
        %v760 = vpop.f32.mrb[0].mxu0
        %761 = vmatprep.mubr.bf16.mxu0 0
        %762 = vmatmul.mubr.bf16.gmra.mrb[0].mxu0 %v707
        %v763 = vpop.f32.mrb[0].mxu0
        %v764 = vadd.f32 0.0, %v763
        %v765 = vpop.f32.mrb[0].mxu0
        %v766 = vpop.f32.mrb[0].mxu0
        %v767 = vadd.f32 0.0, %v766
        %v768 = vpop.f32.mrb[0].mxu0
        %769 = vmatprep.mubr.bf16.mxu0 0
        %770 = vmatmul.mubr.bf16.gmra.mrb[0].mxu0 %v708
        %v771 = vpop.f32.mrb[0].mxu0
        %v772 = vadd.f32 0.0, %v771
        %v773 = vpop.f32.mrb[0].mxu0
        %v774 = vpop.f32.mrb[0].mxu0
        %v775 = vpop.f32.mrb[0].mxu0
        %776 = vdwg.mxu0
        %v777 = vmax.f32 %v676, %v748
        %v778 = vmax.f32 %v677, %v751
        %v779 = vmax.f32 %v678, %v756
        %v780 = vmax.f32 %v679, %v759
        %v781 = vmax.f32 %v680, %v764
        %v782 = vmax.f32 %v681, %v767
        %v783 = vmax.f32 %v682, %v772
        %v784 = vld [vmem:[%s2] sm:$0x1]
        %v786 = vlaneseq
        %v787 = vshrl.u32 %v786, 7
        %v788 = vsub.s32 0, %v787
        %v789 = vrot.slane %v784, %v788
        %v791 = vadd.f32 %v777, %v789
        %v792 = vadd.f32 %v778, %v789
        %v793 = vadd.f32 %v779, %v789
        %v794 = vadd.f32 %v780, %v789
        %v795 = vadd.f32 %v781, %v789
        %v796 = vadd.f32 %v782, %v789
        %v797 = vadd.f32 %v783, %v789
        %v798 = vmax.f32 %v791, 0.0
        %v799 = vmax.f32 %v792, 0.0
        %v800 = vmax.f32 %v793, 0.0
        %v801 = vmax.f32 %v794, 0.0
        %v802 = vmax.f32 %v795, 0.0
        %v803 = vmax.f32 %v796, 0.0
        %v804 = vmax.f32 %v797, 0.0
        %805 = vst [vmem:[%s321] sm:$0xff] %v798
        %806 = vst [vmem:[%s321 + $0x8] sm:$0xff] %v799
        %807 = vst [vmem:[%s321 + $0x10] sm:$0xff] %v800
        %808 = vst [vmem:[%s321 + $0x18] sm:$0xff] %v801
        %809 = vst [vmem:[%s321 + $0x20] sm:$0xff] %v802
        %810 = vst [vmem:[%s321 + $0x28] sm:$0xff] %v803
        %811 = vst [vmem:[%s321 + $0x30] sm:$0xff] %v804
        %s812 = smul.u32 7, %s14
        %p813 = scmp.lt.s32.totalorder %s812, 48
        %s814 = scalar_select %p813, %s812, 48
        %s815 = smul.addr %s814, 8
        %s816 = scalar_lea.vmem %s3, %s815
        // Predicated region
        $region74: #{lenet_forward.2} parent=68 // pred_check
          %p817 = pneg %p100
        $region75: #{lenet_forward.2} parent=68 // pred_check_branch
          %819 = sbr.rel (%p817) target = $region77
        $region76: #{lenet_forward.2} parent=68 // pred_region
          %s820 = smul.u32 7, %s14
        $region77: #{lenet_forward.2} parent=68 // pred_fallthru
          _
      $region69: #{lenet_forward.2} parent=5 // pred_fallthru
        _
      %p821 = scmp.le.s32.totalorder 2, %s9
      // Predicated region
      $region78: #{lenet_forward.2} parent=5 // pred_check
        %p822 = pneg %p821
      $region79: #{lenet_forward.2} parent=5 // pred_check_branch
        %824 = sbr.rel (%p822) target = $region81
      $region80: #{lenet_forward.2} parent=5 // pred_region
        %s825 = ssub.s32 %s9, 2
        // Predicated region
        $region82: #{lenet_forward.2} parent=80 // pred_check
          %p826 = pneg %p106
        $region83: #{lenet_forward.2} parent=80 // pred_check_branch
          %828 = sbr.rel (%p826) target = $region85
        $region84: #{lenet_forward.2} parent=80 // pred_region
          %s829 = smul.u32 7, %s15
          %p830 = scmp.lt.s32.totalorder %s829, 48
          %s831 = scalar_select %p830, %s829, 48
          %s832 = smul.addr %s831, 8
          %s833 = scalar_lea.vmem %s3, %s832
        $region85: #{lenet_forward.2} parent=80 // pred_fallthru
          _
      $region81: #{lenet_forward.2} parent=5 // pred_fallthru
        _
    $region6: #{lenet_forward.2} parent=1 // loop_footer
      %s13 = sadd.s32 1, %s9
    $region7: #{lenet_forward.2} parent=1 // loop_footer_branch
      %8 = sbr.rel target = $region3
    $region8: #{lenet_forward.2} parent=1 // loop_exit
      _

// kernel: lenet_forward.3
$region0: #{lenet_forward.3}
  #allocation0 [shape = 'u32[]', space=smem, size = 0x4, offset = 0x4, fixed_abs, tag = 'smem constant byte address 0x4 - core index']
  #allocation1 [shape = 'u32[144,128]{1,0:T(1,128)}', space=vmem, size = 0x12000, scoped, tag = 'internal scratch']
  %s0 = inlined_call_operand.vmem [shape: bf16[4,200,256], index: 0, kind: input, shape index: {}]
  %s1 = inlined_call_operand.vmem [shape: bf16[256,128], index: 1, kind: input, shape index: {}]
  %s2 = inlined_call_operand.vmem [shape: f32[1,128], index: 2, kind: input, shape index: {}]
  %s3 = inlined_call_operand.vmem [shape: bf16[25,128,128], index: 3, kind: input, shape index: {}]
  %s4 = inlined_call_operand.vmem [shape: f32[1,128], index: 4, kind: input, shape index: {}]
  %s5 = inlined_call_operand.vmem [shape: bf16[128,128], index: 5, kind: input, shape index: {}]
  %s6 = inlined_call_operand.vmem [shape: f32[1,128], index: 6, kind: input, shape index: {}]
  %s7 = inlined_call_operand.vmem [shape: bf16[128,128], index: 7, kind: input, shape index: {}]
  %s8 = inlined_call_operand.vmem [shape: f32[1,128], index: 8, kind: input, shape index: {}]
  %s9 = inlined_call_operand.vmem [shape: f32[8,128], index: 9, kind: output, shape index: {}]
  %s10 = sld [smem:[#allocation0]]
  $region46: #{lenet_forward.3} parent=0
    _
  %s12 = ssub.s32 1, %s10
  %s13 = scalar_select 0, %s12, %s10
  // Predicated region
  $region2: #{lenet_forward.3} parent=0 // pred_check
    _
  $region3: #{lenet_forward.3} parent=0 // pred_check_branch
    %15 = sbr.rel (0) target = $region5
  $region4: #{lenet_forward.3} parent=0 // pred_region
    _
  $region5: #{lenet_forward.3} parent=0 // pred_fallthru
    _
  // Predicated region
  $region6: #{lenet_forward.3} parent=0 // pred_check
    _
  $region7: #{lenet_forward.3} parent=0 // pred_check_branch
    %17 = sbr.rel (0) target = $region9
  $region8: #{lenet_forward.3} parent=0 // pred_region
    _
  $region9: #{lenet_forward.3} parent=0 // pred_fallthru
    _
  // Predicated region
  $region10: #{lenet_forward.3} parent=0 // pred_check
    _
  $region11: #{lenet_forward.3} parent=0 // pred_check_branch
    %19 = sbr.rel (0) target = $region13
  $region12: #{lenet_forward.3} parent=0 // pred_region
    _
  $region13: #{lenet_forward.3} parent=0 // pred_fallthru
    _
  // Predicated region
  $region14: #{lenet_forward.3} parent=0 // pred_check
    _
  $region15: #{lenet_forward.3} parent=0 // pred_check_branch
    %21 = sbr.rel (0) target = $region17
  $region16: #{lenet_forward.3} parent=0 // pred_region
    _
  $region17: #{lenet_forward.3} parent=0 // pred_fallthru
    _
  // Predicated region
  $region18: #{lenet_forward.3} parent=0 // pred_check
    _
  $region19: #{lenet_forward.3} parent=0 // pred_check_branch
    %23 = sbr.rel (0) target = $region21
  $region20: #{lenet_forward.3} parent=0 // pred_region
    _
  $region21: #{lenet_forward.3} parent=0 // pred_fallthru
    _
  // Predicated region
  $region22: #{lenet_forward.3} parent=0 // pred_check
    _
  $region23: #{lenet_forward.3} parent=0 // pred_check_branch
    %25 = sbr.rel (0) target = $region25
  $region24: #{lenet_forward.3} parent=0 // pred_region
    _
  $region25: #{lenet_forward.3} parent=0 // pred_fallthru
    _
  // Predicated region
  $region26: #{lenet_forward.3} parent=0 // pred_check
    _
  $region27: #{lenet_forward.3} parent=0 // pred_check_branch
    %27 = sbr.rel (0) target = $region29
  $region28: #{lenet_forward.3} parent=0 // pred_region
    _
  $region29: #{lenet_forward.3} parent=0 // pred_fallthru
    _
  // Predicated region
  $region30: #{lenet_forward.3} parent=0 // pred_check
    _
  $region31: #{lenet_forward.3} parent=0 // pred_check_branch
    %29 = sbr.rel (0) target = $region33
  $region32: #{lenet_forward.3} parent=0 // pred_region
    _
  $region33: #{lenet_forward.3} parent=0 // pred_fallthru
    _
  // Predicated region
  $region34: #{lenet_forward.3} parent=0 // pred_check
    _
  $region35: #{lenet_forward.3} parent=0 // pred_check_branch
    %31 = sbr.rel (0) target = $region37
  $region36: #{lenet_forward.3} parent=0 // pred_region
    _
  $region37: #{lenet_forward.3} parent=0 // pred_fallthru
    _
  %v33 = vld [vmem:[%s0] sm:$0xff]
  %v34 = vld [vmem:[%s0 + $0x8] sm:$0xff]
  %v35 = vld [vmem:[%s0 + $0x10] sm:$0xff]
  %v36 = vld [vmem:[%s0 + $0x18] sm:$0xff]
  %v37 = vld [vmem:[%s0 + $0x20] sm:$0xff]
  %v38 = vld [vmem:[%s0 + $0x28] sm:$0xff]
  %v39 = vld [vmem:[%s0 + $0x30] sm:$0xff]
  %v40 = vld [vmem:[%s0 + $0x38] sm:$0xff]
  %v41 = vld [vmem:[%s0 + $0x40] sm:$0xff]
  %v42 = vld [vmem:[%s0 + $0x48] sm:$0xff]
  %v43 = vld [vmem:[%s0 + $0x50] sm:$0xff]
  %v44 = vld [vmem:[%s0 + $0x58] sm:$0xff]
  %v45 = vld [vmem:[%s0 + $0x60] sm:$0xff]
  %v46 = vld [vmem:[%s0 + $0x68] sm:$0xff]
  %v47 = vld [vmem:[%s0 + $0x70] sm:$0xff]
  %v48 = vld [vmem:[%s0 + $0x78] sm:$0xff]
  %v49 = vld [vmem:[%s0 + $0x80] sm:$0xff]
  %v50 = vld [vmem:[%s0 + $0x88] sm:$0xff]
  %v51 = vld [vmem:[%s0 + $0x90] sm:$0xff]
  %v52 = vld [vmem:[%s0 + $0x98] sm:$0xff]
  %v53 = vld [vmem:[%s0 + $0xa0] sm:$0xff]
  %v54 = vld [vmem:[%s0 + $0xa8] sm:$0xff]
  %v55 = vld [vmem:[%s0 + $0xb0] sm:$0xff]
  %v56 = vld [vmem:[%s0 + $0xb8] sm:$0xff]
  %v57 = vld [vmem:[%s0 + $0xc0] sm:$0xff]
  %v58 = vld [vmem:[%s1] sm:$0xf]
  %v59 = vld [vmem:[%s1 + $0x4] sm:$0xf]
  %v60 = vld [vmem:[%s1 + $0x8] sm:$0xf]
  %v61 = vld [vmem:[%s1 + $0xc] sm:$0xf]
  %v62 = vld [vmem:[%s1 + $0x10] sm:$0xf]
  %v63 = vld [vmem:[%s1 + $0x14] sm:$0xf]
  %v64 = vld [vmem:[%s1 + $0x18] sm:$0xf]
  %v65 = vld [vmem:[%s1 + $0x1c] sm:$0xf]
  %v66 = vld [vmem:[%s1 + $0x20] sm:$0xf]
  %v67 = vld [vmem:[%s1 + $0x24] sm:$0xf]
  %v68 = vld [vmem:[%s1 + $0x28] sm:$0xf]
  %v69 = vld [vmem:[%s1 + $0x2c] sm:$0xf]
  %v70 = vld [vmem:[%s1 + $0x30] sm:$0xf]
  %v71 = vld [vmem:[%s1 + $0x34] sm:$0xf]
  %v72 = vld [vmem:[%s1 + $0x38] sm:$0xf]
  %v73 = vld [vmem:[%s1 + $0x3c] sm:$0xf]
  %v74 = vld [vmem:[%s1 + $0x40] sm:$0xf]
  %v75 = vld [vmem:[%s1 + $0x44] sm:$0xf]
  %v76 = vld [vmem:[%s1 + $0x48] sm:$0xf]
  %v77 = vld [vmem:[%s1 + $0x4c] sm:$0xf]
  %v78 = vld [vmem:[%s1 + $0x50] sm:$0xf]
  %v79 = vld [vmem:[%s1 + $0x54] sm:$0xf]
  %v80 = vld [vmem:[%s1 + $0x58] sm:$0xf]
  %v81 = vld [vmem:[%s1 + $0x5c] sm:$0xf]
  %v82 = vld [vmem:[%s1 + $0x60] sm:$0xf]
  %v83 = vld [vmem:[%s1 + $0x64] sm:$0xf]
  %v84 = vld [vmem:[%s1 + $0x68] sm:$0xf]
  %v85 = vld [vmem:[%s1 + $0x6c] sm:$0xf]
  %v86 = vld [vmem:[%s1 + $0x70] sm:$0xf]
  %v87 = vld [vmem:[%s1 + $0x74] sm:$0xf]
  %v88 = vld [vmem:[%s1 + $0x78] sm:$0xf]
  %v89 = vld [vmem:[%s1 + $0x7c] sm:$0xf]
  %v115 = vunpack.c.l.b16 %v33
  %v116 = vunpack.c.h.b16 %v33
  %v117 = vunpack.c.l.b16 %v34
  %v118 = vunpack.c.h.b16 %v34
  %v119 = vunpack.c.l.b16 %v35
  %v120 = vunpack.c.h.b16 %v35
  %v121 = vunpack.c.l.b16 %v36
  %v122 = vunpack.c.h.b16 %v36
  %v123 = vunpack.c.l.b16 %v37
  %v124 = vunpack.c.h.b16 %v37
  %v125 = vunpack.c.l.b16 %v38
  %v126 = vunpack.c.h.b16 %v38
  %v127 = vunpack.c.l.b16 %v39
  %v128 = vunpack.c.h.b16 %v39
  %v129 = vunpack.c.l.b16 %v40
  %v130 = vunpack.c.h.b16 %v40
  %v131 = vunpack.c.l.b16 %v41
  %v132 = vunpack.c.h.b16 %v41
  %v133 = vunpack.c.l.b16 %v42
  %v134 = vunpack.c.h.b16 %v42
  %v135 = vunpack.c.l.b16 %v43
  %v136 = vunpack.c.h.b16 %v43
  %v137 = vunpack.c.l.b16 %v44
  %v138 = vunpack.c.h.b16 %v44
  %v139 = vunpack.c.l.b16 %v45
  %v140 = vunpack.c.h.b16 %v45
  %v141 = vunpack.c.l.b16 %v46
  %v142 = vunpack.c.h.b16 %v46
  %v143 = vunpack.c.l.b16 %v47
  %v144 = vunpack.c.h.b16 %v47
  %v145 = vunpack.c.l.b16 %v48
  %v146 = vunpack.c.h.b16 %v48
  %v147 = vunpack.c.l.b16 %v49
  %v148 = vunpack.c.h.b16 %v49
  %v149 = vunpack.c.l.b16 %v50
  %v150 = vunpack.c.h.b16 %v50
  %v151 = vunpack.c.l.b16 %v51
  %v152 = vunpack.c.h.b16 %v51
  %v153 = vunpack.c.l.b16 %v52
  %v154 = vunpack.c.h.b16 %v52
  %v155 = vunpack.c.l.b16 %v53
  %v156 = vunpack.c.h.b16 %v53
  %v157 = vunpack.c.l.b16 %v54
  %v158 = vunpack.c.h.b16 %v54
  %v159 = vunpack.c.l.b16 %v55
  %v160 = vunpack.c.h.b16 %v55
  %v161 = vunpack.c.l.b16 %v56
  %v162 = vunpack.c.h.b16 %v56
  %v163 = vunpack.c.l.b16 %v57
  %v164 = vunpack.c.h.b16 %v57
  %v165 = vpack.c.b16 %v117, %v115
  %v166 = vpack.c.b16 %v118, %v116
  %v167 = vpack.c.b16 %v121, %v119
  %v168 = vpack.c.b16 %v122, %v120
  %v169 = vpack.c.b16 %v125, %v123
  %v170 = vpack.c.b16 %v126, %v124
  %v171 = vpack.c.b16 %v129, %v127
  %v172 = vpack.c.b16 %v130, %v128
  %v173 = vpack.c.b16 %v133, %v131
  %v174 = vpack.c.b16 %v134, %v132
  %v175 = vpack.c.b16 %v137, %v135
  %v176 = vpack.c.b16 %v138, %v136
  %v177 = vpack.c.b16 %v141, %v139
  %v178 = vpack.c.b16 %v142, %v140
  %v179 = vpack.c.b16 %v145, %v143
  %v180 = vpack.c.b16 %v146, %v144
  %v181 = vpack.c.b16 %v149, %v147
  %v182 = vpack.c.b16 %v150, %v148
  %v183 = vpack.c.b16 %v153, %v151
  %v184 = vpack.c.b16 %v154, %v152
  %v185 = vpack.c.b16 %v157, %v155
  %v186 = vpack.c.b16 %v158, %v156
  %v187 = vpack.c.b16 %v161, %v159
  %v188 = vpack.c.b16 %v162, %v160
  %v189 = vpack.c.b16 %v163, %v163
  %v190 = vpack.c.b16 %v164, %v164
  %v249 = vunpack.c.l.b16 %v58
  %v250 = vunpack.c.l.b16 %v59
  %v251 = vunpack.c.l.b16 %v60
  %v252 = vunpack.c.l.b16 %v61
  %v253 = vunpack.c.l.b16 %v62
  %v254 = vunpack.c.l.b16 %v63
  %v255 = vunpack.c.l.b16 %v64
  %v256 = vunpack.c.l.b16 %v65
  %v257 = vunpack.c.l.b16 %v66
  %v258 = vunpack.c.l.b16 %v67
  %v259 = vunpack.c.l.b16 %v68
  %v260 = vunpack.c.l.b16 %v69
  %v261 = vunpack.c.l.b16 %v70
  %v262 = vunpack.c.l.b16 %v71
  %v263 = vunpack.c.l.b16 %v72
  %v264 = vunpack.c.l.b16 %v73
  %v265 = vunpack.c.l.b16 %v74
  %v266 = vunpack.c.l.b16 %v75
  %v267 = vunpack.c.l.b16 %v76
  %v268 = vunpack.c.l.b16 %v77
  %v269 = vunpack.c.l.b16 %v78
  %v270 = vunpack.c.l.b16 %v79
  %v271 = vunpack.c.l.b16 %v80
  %v272 = vunpack.c.l.b16 %v81
  %v273 = vunpack.c.l.b16 %v82
  %v274 = vunpack.c.l.b16 %v83
  %v275 = vunpack.c.l.b16 %v84
  %v276 = vunpack.c.l.b16 %v85
  %v277 = vunpack.c.l.b16 %v86
  %v278 = vunpack.c.l.b16 %v87
  %v279 = vunpack.c.l.b16 %v88
  %v280 = vunpack.c.l.b16 %v89
  %v281 = vpack.c.b16 %v250, %v249
  %v282 = vpack.c.b16 %v252, %v251
  %v283 = vpack.c.b16 %v254, %v253
  %v284 = vpack.c.b16 %v256, %v255
  %v285 = vpack.c.b16 %v258, %v257
  %v286 = vpack.c.b16 %v260, %v259
  %v287 = vpack.c.b16 %v262, %v261
  %v288 = vpack.c.b16 %v264, %v263
  %v289 = vpack.c.b16 %v266, %v265
  %v290 = vpack.c.b16 %v268, %v267
  %v291 = vpack.c.b16 %v270, %v269
  %v292 = vpack.c.b16 %v272, %v271
  %v293 = vpack.c.b16 %v274, %v273
  %v294 = vpack.c.b16 %v276, %v275
  %v295 = vpack.c.b16 %v278, %v277
  %v296 = vpack.c.b16 %v280, %v279
  %313 = vmatprep.subr.bf16.mxu0 0
  %314 = vmatpush1.bf16.msra.mxu0 %v281
  %315 = vmatprep.subr.bf16.mxu0 0
  %316 = vmatpush1.bf16.msra.mxu0 %v282
  %317 = vmatprep.subr.bf16.mxu0 0
  %318 = vmatpush1.bf16.msra.mxu0 %v283
  %319 = vmatprep.subr.bf16.mxu0 0
  %320 = vmatpush1.bf16.msra.mxu0 %v284
  %321 = vmatprep.subr.bf16.mxu0 0
  %322 = vmatpush1.bf16.msra.mxu0 %v285
  %323 = vmatprep.subr.bf16.mxu0 0
  %324 = vmatpush1.bf16.msra.mxu0 %v286
  %325 = vmatprep.subr.bf16.mxu0 0
  %326 = vmatpush1.bf16.msra.mxu0 %v287
  %327 = vmatprep.subr.bf16.mxu0 0
  %328 = vmatpush1.bf16.msra.mxu0 %v288
  %329 = vmatprep.subr.bf16.mxu0 0
  %330 = vmatpush1.bf16.msra.mxu0 %v289
  %331 = vmatprep.subr.bf16.mxu0 0
  %332 = vmatpush1.bf16.msra.mxu0 %v290
  %333 = vmatprep.subr.bf16.mxu0 0
  %334 = vmatpush1.bf16.msra.mxu0 %v291
  %335 = vmatprep.subr.bf16.mxu0 0
  %336 = vmatpush1.bf16.msra.mxu0 %v292
  %337 = vmatprep.subr.bf16.mxu0 0
  %338 = vmatpush1.bf16.msra.mxu0 %v293
  %339 = vmatprep.subr.bf16.mxu0 0
  %340 = vmatpush1.bf16.msra.mxu0 %v294
  %341 = vmatprep.subr.bf16.mxu0 0
  %342 = vmatpush1.bf16.msra.mxu0 %v295
  %343 = vmatprep.subr.bf16.mxu0 0
  %344 = vmatpush1.bf16.msra.mxu0 %v296
  %345 = vmatprep.mubr.bf16.mxu0 %v166
  %346 = vmatmul.mubr.bf16.gmra.mrb[0].mxu0 %v165
  %v347 = vpop.f32.mrb[0].mxu0
  %v348 = vadd.f32 0.0, %v347
  %v349 = vpop.f32.mrb[0].mxu0
  %v350 = vpop.f32.mrb[0].mxu0
  %v351 = vadd.f32 0.0, %v350
  %v352 = vpop.f32.mrb[0].mxu0
  %353 = vmatprep.mubr.bf16.mxu0 %v168
  %354 = vmatmul.mubr.bf16.gmra.mrb[0].mxu0 %v167
  %v355 = vpop.f32.mrb[0].mxu0
  %v356 = vadd.f32 0.0, %v355
  %v357 = vpop.f32.mrb[0].mxu0
  %v358 = vpop.f32.mrb[0].mxu0
  %v359 = vadd.f32 0.0, %v358
  %v360 = vpop.f32.mrb[0].mxu0
  %361 = vmatprep.mubr.bf16.mxu0 %v170
  %362 = vmatmul.mubr.bf16.gmra.mrb[0].mxu0 %v169
  %v363 = vpop.f32.mrb[0].mxu0
  %v364 = vadd.f32 0.0, %v363
  %v365 = vpop.f32.mrb[0].mxu0
  %v366 = vpop.f32.mrb[0].mxu0
  %v367 = vadd.f32 0.0, %v366
  %v368 = vpop.f32.mrb[0].mxu0
  %369 = vmatprep.mubr.bf16.mxu0 %v172
  %370 = vmatmul.mubr.bf16.gmra.mrb[0].mxu0 %v171
  %v371 = vpop.f32.mrb[0].mxu0
  %v372 = vadd.f32 0.0, %v371
  %v373 = vpop.f32.mrb[0].mxu0
  %v374 = vpop.f32.mrb[0].mxu0
  %v375 = vadd.f32 0.0, %v374
  %v376 = vpop.f32.mrb[0].mxu0
  %377 = vmatprep.mubr.bf16.mxu0 %v174
  %378 = vmatmul.mubr.bf16.gmra.mrb[0].mxu0 %v173
  %v379 = vpop.f32.mrb[0].mxu0
  %v380 = vadd.f32 0.0, %v379
  %v381 = vpop.f32.mrb[0].mxu0
  %v382 = vpop.f32.mrb[0].mxu0
  %v383 = vadd.f32 0.0, %v382
  %v384 = vpop.f32.mrb[0].mxu0
  %385 = vmatprep.mubr.bf16.mxu0 %v176
  %386 = vmatmul.mubr.bf16.gmra.mrb[0].mxu0 %v175
  %v387 = vpop.f32.mrb[0].mxu0
  %v388 = vadd.f32 0.0, %v387
  %v389 = vpop.f32.mrb[0].mxu0
  %v390 = vpop.f32.mrb[0].mxu0
  %v391 = vadd.f32 0.0, %v390
  %v392 = vpop.f32.mrb[0].mxu0
  %393 = vmatprep.mubr.bf16.mxu0 %v178
  %394 = vmatmul.mubr.bf16.gmra.mrb[0].mxu0 %v177
  %v395 = vpop.f32.mrb[0].mxu0
  %v396 = vadd.f32 0.0, %v395
  %v397 = vpop.f32.mrb[0].mxu0
  %v398 = vpop.f32.mrb[0].mxu0
  %v399 = vadd.f32 0.0, %v398
  %v400 = vpop.f32.mrb[0].mxu0
  %401 = vmatprep.mubr.bf16.mxu0 %v180
  %402 = vmatmul.mubr.bf16.gmra.mrb[0].mxu0 %v179
  %v403 = vpop.f32.mrb[0].mxu0
  %v404 = vadd.f32 0.0, %v403
  %v405 = vpop.f32.mrb[0].mxu0
  %v406 = vpop.f32.mrb[0].mxu0
  %v407 = vadd.f32 0.0, %v406
  %v408 = vpop.f32.mrb[0].mxu0
  %409 = vmatprep.mubr.bf16.mxu0 %v182
  %410 = vmatmul.mubr.bf16.gmra.mrb[0].mxu0 %v181
  %v411 = vpop.f32.mrb[0].mxu0
  %v412 = vadd.f32 0.0, %v411
  %v413 = vpop.f32.mrb[0].mxu0
  %v414 = vpop.f32.mrb[0].mxu0
  %v415 = vadd.f32 0.0, %v414
  %v416 = vpop.f32.mrb[0].mxu0
  %417 = vmatprep.mubr.bf16.mxu0 %v184
  %418 = vmatmul.mubr.bf16.gmra.mrb[0].mxu0 %v183
  %v419 = vpop.f32.mrb[0].mxu0
  %v420 = vadd.f32 0.0, %v419
  %v421 = vpop.f32.mrb[0].mxu0
  %v422 = vpop.f32.mrb[0].mxu0
  %v423 = vadd.f32 0.0, %v422
  %v424 = vpop.f32.mrb[0].mxu0
  %425 = vmatprep.mubr.bf16.mxu0 %v186
  %426 = vmatmul.mubr.bf16.gmra.mrb[0].mxu0 %v185
  %v427 = vpop.f32.mrb[0].mxu0
  %v428 = vadd.f32 0.0, %v427
  %v429 = vpop.f32.mrb[0].mxu0
  %v430 = vpop.f32.mrb[0].mxu0
  %v431 = vadd.f32 0.0, %v430
  %v432 = vpop.f32.mrb[0].mxu0
  %433 = vmatprep.mubr.bf16.mxu0 %v188
  %434 = vmatmul.mubr.bf16.gmra.mrb[0].mxu0 %v187
  %v435 = vpop.f32.mrb[0].mxu0
  %v436 = vadd.f32 0.0, %v435
  %v437 = vpop.f32.mrb[0].mxu0
  %v438 = vpop.f32.mrb[0].mxu0
  %v439 = vadd.f32 0.0, %v438
  %v440 = vpop.f32.mrb[0].mxu0
  %441 = vmatprep.mubr.bf16.mxu0 %v190
  %442 = vmatmul.mubr.bf16.gmra.mrb[0].mxu0 %v189
  %v443 = vpop.f32.mrb[0].mxu0
  %v444 = vadd.f32 0.0, %v443
  %v445 = vpop.f32.mrb[0].mxu0
  %v446 = vpop.f32.mrb[0].mxu0
  %v447 = vpop.f32.mrb[0].mxu0
  %448 = vdwg.mxu0
  %s449 = scalar_lea.vmem %s0, 200
  %v450 = vld [vmem:[%s449] sm:$0xff]
  %v451 = vld [vmem:[%s449 + $0x8] sm:$0xff]
  %v452 = vld [vmem:[%s449 + $0x10] sm:$0xff]
  %v453 = vld [vmem:[%s449 + $0x18] sm:$0xff]
  %v454 = vld [vmem:[%s449 + $0x20] sm:$0xff]
  %v455 = vld [vmem:[%s449 + $0x28] sm:$0xff]
  %v456 = vld [vmem:[%s449 + $0x30] sm:$0xff]
  %v457 = vld [vmem:[%s449 + $0x38] sm:$0xff]
  %v458 = vld [vmem:[%s449 + $0x40] sm:$0xff]
  %v459 = vld [vmem:[%s449 + $0x48] sm:$0xff]
  %v460 = vld [vmem:[%s449 + $0x50] sm:$0xff]
  %v461 = vld [vmem:[%s449 + $0x58] sm:$0xff]
  %v462 = vld [vmem:[%s449 + $0x60] sm:$0xff]
  %v463 = vld [vmem:[%s449 + $0x68] sm:$0xff]
  %v464 = vld [vmem:[%s449 + $0x70] sm:$0xff]
  %v465 = vld [vmem:[%s449 + $0x78] sm:$0xff]
  %v466 = vld [vmem:[%s449 + $0x80] sm:$0xff]
  %v467 = vld [vmem:[%s449 + $0x88] sm:$0xff]
  %v468 = vld [vmem:[%s449 + $0x90] sm:$0xff]
  %v469 = vld [vmem:[%s449 + $0x98] sm:$0xff]
  %v470 = vld [vmem:[%s449 + $0xa0] sm:$0xff]
  %v471 = vld [vmem:[%s449 + $0xa8] sm:$0xff]
  %v472 = vld [vmem:[%s449 + $0xb0] sm:$0xff]
  %v473 = vld [vmem:[%s449 + $0xb8] sm:$0xff]
  %v474 = vld [vmem:[%s449 + $0xc0] sm:$0xff]
  %v500 = vunpack.c.l.b16 %v450
  %v501 = vunpack.c.h.b16 %v450
  %v502 = vunpack.c.l.b16 %v451
  %v503 = vunpack.c.h.b16 %v451
  %v504 = vunpack.c.l.b16 %v452
  %v505 = vunpack.c.h.b16 %v452
  %v506 = vunpack.c.l.b16 %v453
  %v507 = vunpack.c.h.b16 %v453
  %v508 = vunpack.c.l.b16 %v454
  %v509 = vunpack.c.h.b16 %v454
  %v510 = vunpack.c.l.b16 %v455
  %v511 = vunpack.c.h.b16 %v455
  %v512 = vunpack.c.l.b16 %v456
  %v513 = vunpack.c.h.b16 %v456
  %v514 = vunpack.c.l.b16 %v457
  %v515 = vunpack.c.h.b16 %v457
  %v516 = vunpack.c.l.b16 %v458
  %v517 = vunpack.c.h.b16 %v458
  %v518 = vunpack.c.l.b16 %v459
  %v519 = vunpack.c.h.b16 %v459
  %v520 = vunpack.c.l.b16 %v460
  %v521 = vunpack.c.h.b16 %v460
  %v522 = vunpack.c.l.b16 %v461
  %v523 = vunpack.c.h.b16 %v461
  %v524 = vunpack.c.l.b16 %v462
  %v525 = vunpack.c.h.b16 %v462
  %v526 = vunpack.c.l.b16 %v463
  %v527 = vunpack.c.h.b16 %v463
  %v528 = vunpack.c.l.b16 %v464
  %v529 = vunpack.c.h.b16 %v464
  %v530 = vunpack.c.l.b16 %v465
  %v531 = vunpack.c.h.b16 %v465
  %v532 = vunpack.c.l.b16 %v466
  %v533 = vunpack.c.h.b16 %v466
  %v534 = vunpack.c.l.b16 %v467
  %v535 = vunpack.c.h.b16 %v467
  %v536 = vunpack.c.l.b16 %v468
  %v537 = vunpack.c.h.b16 %v468
  %v538 = vunpack.c.l.b16 %v469
  %v539 = vunpack.c.h.b16 %v469
  %v540 = vunpack.c.l.b16 %v470
  %v541 = vunpack.c.h.b16 %v470
  %v542 = vunpack.c.l.b16 %v471
  %v543 = vunpack.c.h.b16 %v471
  %v544 = vunpack.c.l.b16 %v472
  %v545 = vunpack.c.h.b16 %v472
  %v546 = vunpack.c.l.b16 %v473
  %v547 = vunpack.c.h.b16 %v473
  %v548 = vunpack.c.l.b16 %v474
  %v549 = vunpack.c.h.b16 %v474
  %v550 = vpack.c.b16 %v502, %v500
  %v551 = vpack.c.b16 %v503, %v501
  %v552 = vpack.c.b16 %v506, %v504
  %v553 = vpack.c.b16 %v507, %v505
  %v554 = vpack.c.b16 %v510, %v508
  %v555 = vpack.c.b16 %v511, %v509
  %v556 = vpack.c.b16 %v514, %v512
  %v557 = vpack.c.b16 %v515, %v513
  %v558 = vpack.c.b16 %v518, %v516
  %v559 = vpack.c.b16 %v519, %v517
  %v560 = vpack.c.b16 %v522, %v520
  %v561 = vpack.c.b16 %v523, %v521
  %v562 = vpack.c.b16 %v526, %v524
  %v563 = vpack.c.b16 %v527, %v525
  %v564 = vpack.c.b16 %v530, %v528
  %v565 = vpack.c.b16 %v531, %v529
  %v566 = vpack.c.b16 %v534, %v532
  %v567 = vpack.c.b16 %v535, %v533
  %v568 = vpack.c.b16 %v538, %v536
  %v569 = vpack.c.b16 %v539, %v537
  %v570 = vpack.c.b16 %v542, %v540
  %v571 = vpack.c.b16 %v543, %v541
  %v572 = vpack.c.b16 %v546, %v544
  %v573 = vpack.c.b16 %v547, %v545
  %v574 = vpack.c.b16 %v548, %v548
  %v575 = vpack.c.b16 %v549, %v549
  %602 = vmatprep.subr.bf16.mxu0 0
  %603 = vmatpush1.bf16.msra.mxu0 %v281
  %604 = vmatprep.subr.bf16.mxu0 0
  %605 = vmatpush1.bf16.msra.mxu0 %v282
  %606 = vmatprep.subr.bf16.mxu0 0
  %607 = vmatpush1.bf16.msra.mxu0 %v283
  %608 = vmatprep.subr.bf16.mxu0 0
  %609 = vmatpush1.bf16.msra.mxu0 %v284
  %610 = vmatprep.subr.bf16.mxu0 0
  %611 = vmatpush1.bf16.msra.mxu0 %v285
  %612 = vmatprep.subr.bf16.mxu0 0
  %613 = vmatpush1.bf16.msra.mxu0 %v286
  %614 = vmatprep.subr.bf16.mxu0 0
  %615 = vmatpush1.bf16.msra.mxu0 %v287
  %616 = vmatprep.subr.bf16.mxu0 0
  %617 = vmatpush1.bf16.msra.mxu0 %v288
  %618 = vmatprep.subr.bf16.mxu0 0
  %619 = vmatpush1.bf16.msra.mxu0 %v289
  %620 = vmatprep.subr.bf16.mxu0 0
  %621 = vmatpush1.bf16.msra.mxu0 %v290
  %622 = vmatprep.subr.bf16.mxu0 0
  %623 = vmatpush1.bf16.msra.mxu0 %v291
  %624 = vmatprep.subr.bf16.mxu0 0
  %625 = vmatpush1.bf16.msra.mxu0 %v292
  %626 = vmatprep.subr.bf16.mxu0 0
  %627 = vmatpush1.bf16.msra.mxu0 %v293
  %628 = vmatprep.subr.bf16.mxu0 0
  %629 = vmatpush1.bf16.msra.mxu0 %v294
  %630 = vmatprep.subr.bf16.mxu0 0
  %631 = vmatpush1.bf16.msra.mxu0 %v295
  %632 = vmatprep.subr.bf16.mxu0 0
  %633 = vmatpush1.bf16.msra.mxu0 %v296
  %634 = vmatprep.mubr.bf16.mxu0 %v551
  %635 = vmatmul.mubr.bf16.gmra.mrb[0].mxu0 %v550
  %v636 = vpop.f32.mrb[0].mxu0
  %v637 = vadd.f32 0.0, %v636
  %v638 = vpop.f32.mrb[0].mxu0
  %v639 = vpop.f32.mrb[0].mxu0
  %v640 = vadd.f32 0.0, %v639
  %v641 = vpop.f32.mrb[0].mxu0
  %642 = vmatprep.mubr.bf16.mxu0 %v553
  %643 = vmatmul.mubr.bf16.gmra.mrb[0].mxu0 %v552
  %v644 = vpop.f32.mrb[0].mxu0
  %v645 = vadd.f32 0.0, %v644
  %v646 = vpop.f32.mrb[0].mxu0
  %v647 = vpop.f32.mrb[0].mxu0
  %v648 = vadd.f32 0.0, %v647
  %v649 = vpop.f32.mrb[0].mxu0
  %650 = vmatprep.mubr.bf16.mxu0 %v555
  %651 = vmatmul.mubr.bf16.gmra.mrb[0].mxu0 %v554
  %v652 = vpop.f32.mrb[0].mxu0
  %v653 = vadd.f32 0.0, %v652
  %v654 = vpop.f32.mrb[0].mxu0
  %v655 = vpop.f32.mrb[0].mxu0
  %v656 = vadd.f32 0.0, %v655
  %v657 = vpop.f32.mrb[0].mxu0
  %658 = vmatprep.mubr.bf16.mxu0 %v557
  %659 = vmatmul.mubr.bf16.gmra.mrb[0].mxu0 %v556
  %v660 = vpop.f32.mrb[0].mxu0
  %v661 = vadd.f32 0.0, %v660
  %v662 = vpop.f32.mrb[0].mxu0
  %v663 = vpop.f32.mrb[0].mxu0
  %v664 = vadd.f32 0.0, %v663
  %v665 = vpop.f32.mrb[0].mxu0
  %666 = vmatprep.mubr.bf16.mxu0 %v559
  %667 = vmatmul.mubr.bf16.gmra.mrb[0].mxu0 %v558
  %v668 = vpop.f32.mrb[0].mxu0
  %v669 = vadd.f32 0.0, %v668
  %v670 = vpop.f32.mrb[0].mxu0
  %v671 = vpop.f32.mrb[0].mxu0
  %v672 = vadd.f32 0.0, %v671
  %v673 = vpop.f32.mrb[0].mxu0
  %674 = vmatprep.mubr.bf16.mxu0 %v561
  %675 = vmatmul.mubr.bf16.gmra.mrb[0].mxu0 %v560
  %v676 = vpop.f32.mrb[0].mxu0
  %v677 = vadd.f32 0.0, %v676
  %v678 = vpop.f32.mrb[0].mxu0
  %v679 = vpop.f32.mrb[0].mxu0
  %v680 = vadd.f32 0.0, %v679
  %v681 = vpop.f32.mrb[0].mxu0
  %682 = vmatprep.mubr.bf16.mxu0 %v563
  %683 = vmatmul.mubr.bf16.gmra.mrb[0].mxu0 %v562
  %v684 = vpop.f32.mrb[0].mxu0
  %v685 = vadd.f32 0.0, %v684
  %v686 = vpop.f32.mrb[0].mxu0
  %v687 = vpop.f32.mrb[0].mxu0
  %v688 = vadd.f32 0.0, %v687
  %v689 = vpop.f32.mrb[0].mxu0
  %690 = vmatprep.mubr.bf16.mxu0 %v565
  %691 = vmatmul.mubr.bf16.gmra.mrb[0].mxu0 %v564
  %v692 = vpop.f32.mrb[0].mxu0
  %v693 = vadd.f32 0.0, %v692
  %v694 = vpop.f32.mrb[0].mxu0
  %v695 = vpop.f32.mrb[0].mxu0
  %v696 = vadd.f32 0.0, %v695
  %v697 = vpop.f32.mrb[0].mxu0
  %698 = vmatprep.mubr.bf16.mxu0 %v567
  %699 = vmatmul.mubr.bf16.gmra.mrb[0].mxu0 %v566
  %v700 = vpop.f32.mrb[0].mxu0
  %v701 = vadd.f32 0.0, %v700
  %v702 = vpop.f32.mrb[0].mxu0
  %v703 = vpop.f32.mrb[0].mxu0
  %v704 = vadd.f32 0.0, %v703
  %v705 = vpop.f32.mrb[0].mxu0
  %706 = vmatprep.mubr.bf16.mxu0 %v569
  %707 = vmatmul.mubr.bf16.gmra.mrb[0].mxu0 %v568
  %v708 = vpop.f32.mrb[0].mxu0
  %v709 = vadd.f32 0.0, %v708
  %v710 = vpop.f32.mrb[0].mxu0
  %v711 = vpop.f32.mrb[0].mxu0
  %v712 = vadd.f32 0.0, %v711
  %v713 = vpop.f32.mrb[0].mxu0
  %714 = vmatprep.mubr.bf16.mxu0 %v571
  %715 = vmatmul.mubr.bf16.gmra.mrb[0].mxu0 %v570
  %v716 = vpop.f32.mrb[0].mxu0
  %v717 = vadd.f32 0.0, %v716
  %v718 = vpop.f32.mrb[0].mxu0
  %v719 = vpop.f32.mrb[0].mxu0
  %v720 = vadd.f32 0.0, %v719
  %v721 = vpop.f32.mrb[0].mxu0
  %722 = vmatprep.mubr.bf16.mxu0 %v573
  %723 = vmatmul.mubr.bf16.gmra.mrb[0].mxu0 %v572
  %v724 = vpop.f32.mrb[0].mxu0
  %v725 = vadd.f32 0.0, %v724
  %v726 = vpop.f32.mrb[0].mxu0
  %v727 = vpop.f32.mrb[0].mxu0
  %v728 = vadd.f32 0.0, %v727
  %v729 = vpop.f32.mrb[0].mxu0
  %730 = vmatprep.mubr.bf16.mxu0 %v575
  %731 = vmatmul.mubr.bf16.gmra.mrb[0].mxu0 %v574
  %v732 = vpop.f32.mrb[0].mxu0
  %v733 = vadd.f32 0.0, %v732
  %v734 = vpop.f32.mrb[0].mxu0
  %v735 = vpop.f32.mrb[0].mxu0
  %v736 = vpop.f32.mrb[0].mxu0
  %737 = vdwg.mxu0
  %v738 = vmax.f32 %v348, %v637
  %v739 = vmax.f32 %v351, %v640
  %v740 = vmax.f32 %v356, %v645
  %v741 = vmax.f32 %v359, %v648
  %v742 = vmax.f32 %v364, %v653
  %v743 = vmax.f32 %v367, %v656
  %v744 = vmax.f32 %v372, %v661
  %v745 = vmax.f32 %v375, %v664
  %v746 = vmax.f32 %v380, %v669
  %v747 = vmax.f32 %v383, %v672
  %v748 = vmax.f32 %v388, %v677
  %v749 = vmax.f32 %v391, %v680
  %v750 = vmax.f32 %v396, %v685
  %v751 = vmax.f32 %v399, %v688
  %v752 = vmax.f32 %v404, %v693
  %v753 = vmax.f32 %v407, %v696
  %v754 = vmax.f32 %v412, %v701
  %v755 = vmax.f32 %v415, %v704
  %v756 = vmax.f32 %v420, %v709
  %v757 = vmax.f32 %v423, %v712
  %v758 = vmax.f32 %v428, %v717
  %v759 = vmax.f32 %v431, %v720
  %v760 = vmax.f32 %v436, %v725
  %v761 = vmax.f32 %v439, %v728
  %v762 = vmax.f32 %v444, %v733
  %s763 = scalar_lea.vmem %s0, 400
  %v764 = vld [vmem:[%s763] sm:$0xff]
  %v765 = vld [vmem:[%s763 + $0x8] sm:$0xff]
  %v766 = vld [vmem:[%s763 + $0x10] sm:$0xff]
  %v767 = vld [vmem:[%s763 + $0x18] sm:$0xff]
  %v768 = vld [vmem:[%s763 + $0x20] sm:$0xff]
  %v769 = vld [vmem:[%s763 + $0x28] sm:$0xff]
  %v770 = vld [vmem:[%s763 + $0x30] sm:$0xff]
  %v771 = vld [vmem:[%s763 + $0x38] sm:$0xff]
  %v772 = vld [vmem:[%s763 + $0x40] sm:$0xff]
  %v773 = vld [vmem:[%s763 + $0x48] sm:$0xff]
  %v774 = vld [vmem:[%s763 + $0x50] sm:$0xff]
  %v775 = vld [vmem:[%s763 + $0x58] sm:$0xff]
  %v776 = vld [vmem:[%s763 + $0x60] sm:$0xff]
  %v777 = vld [vmem:[%s763 + $0x68] sm:$0xff]
  %v778 = vld [vmem:[%s763 + $0x70] sm:$0xff]
  %v779 = vld [vmem:[%s763 + $0x78] sm:$0xff]
  %v780 = vld [vmem:[%s763 + $0x80] sm:$0xff]
  %v781 = vld [vmem:[%s763 + $0x88] sm:$0xff]
  %v782 = vld [vmem:[%s763 + $0x90] sm:$0xff]
  %v783 = vld [vmem:[%s763 + $0x98] sm:$0xff]
  %v784 = vld [vmem:[%s763 + $0xa0] sm:$0xff]
  %v785 = vld [vmem:[%s763 + $0xa8] sm:$0xff]
  %v786 = vld [vmem:[%s763 + $0xb0] sm:$0xff]
  %v787 = vld [vmem:[%s763 + $0xb8] sm:$0xff]
  %v788 = vld [vmem:[%s763 + $0xc0] sm:$0xff]
  %v814 = vunpack.c.l.b16 %v764
  %v815 = vunpack.c.h.b16 %v764
  %v816 = vunpack.c.l.b16 %v765
  %v817 = vunpack.c.h.b16 %v765
  %v818 = vunpack.c.l.b16 %v766
  %v819 = vunpack.c.h.b16 %v766
  %v820 = vunpack.c.l.b16 %v767
  %v821 = vunpack.c.h.b16 %v767
  %v822 = vunpack.c.l.b16 %v768
  %v823 = vunpack.c.h.b16 %v768
  %v824 = vunpack.c.l.b16 %v769
  %v825 = vunpack.c.h.b16 %v769
  %v826 = vunpack.c.l.b16 %v770
  %v827 = vunpack.c.h.b16 %v770
  %v828 = vunpack.c.l.b16 %v771
  %v829 = vunpack.c.h.b16 %v771
  %v830 = vunpack.c.l.b16 %v772
  %v831 = vunpack.c.h.b16 %v772
  %v832 = vunpack.c.l.b16 %v773
  %v833 = vunpack.c.h.b16 %v773
  %v834 = vunpack.c.l.b16 %v774
  %v835 = vunpack.c.h.b16 %v774
  %v836 = vunpack.c.l.b16 %v775
  %v837 = vunpack.c.h.b16 %v775
  %v838 = vunpack.c.l.b16 %v776
  %v839 = vunpack.c.h.b16 %v776
  %v840 = vunpack.c.l.b16 %v777
  %v841 = vunpack.c.h.b16 %v777
  %v842 = vunpack.c.l.b16 %v778
  %v843 = vunpack.c.h.b16 %v778
  %v844 = vunpack.c.l.b16 %v779
  %v845 = vunpack.c.h.b16 %v779
  %v846 = vunpack.c.l.b16 %v780
  %v847 = vunpack.c.h.b16 %v780
  %v848 = vunpack.c.l.b16 %v781
  %v849 = vunpack.c.h.b16 %v781
  %v850 = vunpack.c.l.b16 %v782
  %v851 = vunpack.c.h.b16 %v782
  %v852 = vunpack.c.l.b16 %v783
  %v853 = vunpack.c.h.b16 %v783
  %v854 = vunpack.c.l.b16 %v784
  %v855 = vunpack.c.h.b16 %v784
  %v856 = vunpack.c.l.b16 %v785
  %v857 = vunpack.c.h.b16 %v785
  %v858 = vunpack.c.l.b16 %v786
  %v859 = vunpack.c.h.b16 %v786
  %v860 = vunpack.c.l.b16 %v787
  %v861 = vunpack.c.h.b16 %v787
  %v862 = vunpack.c.l.b16 %v788
  %v863 = vunpack.c.h.b16 %v788
  %v864 = vpack.c.b16 %v816, %v814
  %v865 = vpack.c.b16 %v817, %v815
  %v866 = vpack.c.b16 %v820, %v818
  %v867 = vpack.c.b16 %v821, %v819
  %v868 = vpack.c.b16 %v824, %v822
  %v869 = vpack.c.b16 %v825, %v823
  %v870 = vpack.c.b16 %v828, %v826
  %v871 = vpack.c.b16 %v829, %v827
  %v872 = vpack.c.b16 %v832, %v830
  %v873 = vpack.c.b16 %v833, %v831
  %v874 = vpack.c.b16 %v836, %v834
  %v875 = vpack.c.b16 %v837, %v835
  %v876 = vpack.c.b16 %v840, %v838
  %v877 = vpack.c.b16 %v841, %v839
  %v878 = vpack.c.b16 %v844, %v842
  %v879 = vpack.c.b16 %v845, %v843
  %v880 = vpack.c.b16 %v848, %v846
  %v881 = vpack.c.b16 %v849, %v847
  %v882 = vpack.c.b16 %v852, %v850
  %v883 = vpack.c.b16 %v853, %v851
  %v884 = vpack.c.b16 %v856, %v854
  %v885 = vpack.c.b16 %v857, %v855
  %v886 = vpack.c.b16 %v860, %v858
  %v887 = vpack.c.b16 %v861, %v859
  %v888 = vpack.c.b16 %v862, %v862
  %v889 = vpack.c.b16 %v863, %v863
  %916 = vmatprep.subr.bf16.mxu0 0
  %917 = vmatpush1.bf16.msra.mxu0 %v281
  %918 = vmatprep.subr.bf16.mxu0 0
  %919 = vmatpush1.bf16.msra.mxu0 %v282
  %920 = vmatprep.subr.bf16.mxu0 0
  %921 = vmatpush1.bf16.msra.mxu0 %v283
  %922 = vmatprep.subr.bf16.mxu0 0
  %923 = vmatpush1.bf16.msra.mxu0 %v284
  %924 = vmatprep.subr.bf16.mxu0 0
  %925 = vmatpush1.bf16.msra.mxu0 %v285
  %926 = vmatprep.subr.bf16.mxu0 0
  %927 = vmatpush1.bf16.msra.mxu0 %v286
  %928 = vmatprep.subr.bf16.mxu0 0
  %929 = vmatpush1.bf16.msra.mxu0 %v287
  %930 = vmatprep.subr.bf16.mxu0 0
  %931 = vmatpush1.bf16.msra.mxu0 %v288
  %932 = vmatprep.subr.bf16.mxu0 0
  %933 = vmatpush1.bf16.msra.mxu0 %v289
  %934 = vmatprep.subr.bf16.mxu0 0
  %935 = vmatpush1.bf16.msra.mxu0 %v290
  %936 = vmatprep.subr.bf16.mxu0 0
  %937 = vmatpush1.bf16.msra.mxu0 %v291
  %938 = vmatprep.subr.bf16.mxu0 0
  %939 = vmatpush1.bf16.msra.mxu0 %v292
  %940 = vmatprep.subr.bf16.mxu0 0
  %941 = vmatpush1.bf16.msra.mxu0 %v293
  %942 = vmatprep.subr.bf16.mxu0 0
  %943 = vmatpush1.bf16.msra.mxu0 %v294
  %944 = vmatprep.subr.bf16.mxu0 0
  %945 = vmatpush1.bf16.msra.mxu0 %v295
  %946 = vmatprep.subr.bf16.mxu0 0
  %947 = vmatpush1.bf16.msra.mxu0 %v296
  %948 = vmatprep.mubr.bf16.mxu0 %v865
  %949 = vmatmul.mubr.bf16.gmra.mrb[0].mxu0 %v864
  %v950 = vpop.f32.mrb[0].mxu0
  %v951 = vadd.f32 0.0, %v950
  %v952 = vpop.f32.mrb[0].mxu0
  %v953 = vpop.f32.mrb[0].mxu0
  %v954 = vadd.f32 0.0, %v953
  %v955 = vpop.f32.mrb[0].mxu0
  %956 = vmatprep.mubr.bf16.mxu0 %v867
  %957 = vmatmul.mubr.bf16.gmra.mrb[0].mxu0 %v866
  %v958 = vpop.f32.mrb[0].mxu0
  %v959 = vadd.f32 0.0, %v958
  %v960 = vpop.f32.mrb[0].mxu0
  %v961 = vpop.f32.mrb[0].mxu0
  %v962 = vadd.f32 0.0, %v961
  %v963 = vpop.f32.mrb[0].mxu0
  %964 = vmatprep.mubr.bf16.mxu0 %v869
  %965 = vmatmul.mubr.bf16.gmra.mrb[0].mxu0 %v868
  %v966 = vpop.f32.mrb[0].mxu0
  %v967 = vadd.f32 0.0, %v966
  %v968 = vpop.f32.mrb[0].mxu0
  %v969 = vpop.f32.mrb[0].mxu0
  %v970 = vadd.f32 0.0, %v969
  %v971 = vpop.f32.mrb[0].mxu0
  %972 = vmatprep.mubr.bf16.mxu0 %v871
  %973 = vmatmul.mubr.bf16.gmra.mrb[0].mxu0 %v870
  %v974 = vpop.f32.mrb[0].mxu0
  %v975 = vadd.f32 0.0, %v974
  %v976 = vpop.f32.mrb[0].mxu0
  %v977 = vpop.f32.mrb[0].mxu0
  %v978 = vadd.f32 0.0, %v977
  %v979 = vpop.f32.mrb[0].mxu0
  %980 = vmatprep.mubr.bf16.mxu0 %v873
  %981 = vmatmul.mubr.bf16.gmra.mrb[0].mxu0 %v872
  %v982 = vpop.f32.mrb[0].mxu0
  %v983 = vadd.f32 0.0, %v982
  %v984 = vpop.f32.mrb[0].mxu0
  %v985 = vpop.f32.mrb[0].mxu0
  %v986 = vadd.f32 0.0, %v985
  %v987 = vpop.f32.mrb[0].mxu0
  %988 = vmatprep.mubr.bf16.mxu0 %v875
  %989 = vmatmul.mubr.bf16.gmra.mrb[0].mxu0 %v874
  %v990 = vpop.f32.mrb[0].mxu0
  %v991 = vadd.f32 0.0, %v990
  %v992 = vpop.f32.mrb[0].mxu0
  %v993 = vpop.f32.mrb[0].mxu0
  %v994 = vadd.f32 0.0, %v993
  %v995 = vpop.f32.mrb[0].mxu0
  %996 = vmatprep.mubr.bf16.mxu0 %v877
  %997 = vmatmul.mubr.bf16.gmra.mrb[0].mxu0 %v876
  %v998 = vpop.f32.mrb[0].mxu0
  %v999 = vadd.f32 0.0, %v998
  %v1000 = vpop.f32.mrb[0].mxu0
  %v1001 = vpop.f32.mrb[0].mxu0
  %v1002 = vadd.f32 0.0, %v1001
  %v1003 = vpop.f32.mrb[0].mxu0
  %1004 = vmatprep.mubr.bf16.mxu0 %v879
  %1005 = vmatmul.mubr.bf16.gmra.mrb[0].mxu0 %v878
  %v1006 = vpop.f32.mrb[0].mxu0
  %v1007 = vadd.f32 0.0, %v1006
  %v1008 = vpop.f32.mrb[0].mxu0
  %v1009 = vpop.f32.mrb[0].mxu0
  %v1010 = vadd.f32 0.0, %v1009
  %v1011 = vpop.f32.mrb[0].mxu0
  %1012 = vmatprep.mubr.bf16.mxu0 %v881
  %1013 = vmatmul.mubr.bf16.gmra.mrb[0].mxu0 %v880
  %v1014 = vpop.f32.mrb[0].mxu0
  %v1015 = vadd.f32 0.0, %v1014
  %v1016 = vpop.f32.mrb[0].mxu0
  %v1017 = vpop.f32.mrb[0].mxu0
  %v1018 = vadd.f32 0.0, %v1017
  %v1019 = vpop.f32.mrb[0].mxu0
  %1020 = vmatprep.mubr.bf16.mxu0 %v883
  %1021 = vmatmul.mubr.bf16.gmra.mrb[0].mxu0 %v882
  %v1022 = vpop.f32.mrb[0].mxu0
  %v1023 = vadd.f32 0.0, %v1022
  %v1024 = vpop.f32.mrb[0].mxu0
  %v1025 = vpop.f32.mrb[0].mxu0
  %v1026 = vadd.f32 0.0, %v1025
  %v1027 = vpop.f32.mrb[0].mxu0
  %1028 = vmatprep.mubr.bf16.mxu0 %v885
  %1029 = vmatmul.mubr.bf16.gmra.mrb[0].mxu0 %v884
  %v1030 = vpop.f32.mrb[0].mxu0
  %v1031 = vadd.f32 0.0, %v1030
  %v1032 = vpop.f32.mrb[0].mxu0
  %v1033 = vpop.f32.mrb[0].mxu0
  %v1034 = vadd.f32 0.0, %v1033
  %v1035 = vpop.f32.mrb[0].mxu0
  %1036 = vmatprep.mubr.bf16.mxu0 %v887
  %1037 = vmatmul.mubr.bf16.gmra.mrb[0].mxu0 %v886
  %v1038 = vpop.f32.mrb[0].mxu0
  %v1039 = vadd.f32 0.0, %v1038
  %v1040 = vpop.f32.mrb[0].mxu0
  %v1041 = vpop.f32.mrb[0].mxu0
  %v1042 = vadd.f32 0.0, %v1041
  %v1043 = vpop.f32.mrb[0].mxu0
  %1044 = vmatprep.mubr.bf16.mxu0 %v889
  %1045 = vmatmul.mubr.bf16.gmra.mrb[0].mxu0 %v888
  %v1046 = vpop.f32.mrb[0].mxu0
  %v1047 = vadd.f32 0.0, %v1046
  %v1048 = vpop.f32.mrb[0].mxu0
  %v1049 = vpop.f32.mrb[0].mxu0
  %v1050 = vpop.f32.mrb[0].mxu0
  %1051 = vdwg.mxu0
  %v1052 = vmax.f32 %v738, %v951
  %v1053 = vmax.f32 %v739, %v954
  %v1054 = vmax.f32 %v740, %v959
  %v1055 = vmax.f32 %v741, %v962
  %v1056 = vmax.f32 %v742, %v967
  %v1057 = vmax.f32 %v743, %v970
  %v1058 = vmax.f32 %v744, %v975
  %v1059 = vmax.f32 %v745, %v978
  %v1060 = vmax.f32 %v746, %v983
  %v1061 = vmax.f32 %v747, %v986
  %v1062 = vmax.f32 %v748, %v991
  %v1063 = vmax.f32 %v749, %v994
  %v1064 = vmax.f32 %v750, %v999
  %v1065 = vmax.f32 %v751, %v1002
  %v1066 = vmax.f32 %v752, %v1007
  %v1067 = vmax.f32 %v753, %v1010
  %v1068 = vmax.f32 %v754, %v1015
  %v1069 = vmax.f32 %v755, %v1018
  %v1070 = vmax.f32 %v756, %v1023
  %v1071 = vmax.f32 %v757, %v1026
  %v1072 = vmax.f32 %v758, %v1031
  %v1073 = vmax.f32 %v759, %v1034
  %v1074 = vmax.f32 %v760, %v1039
  %v1075 = vmax.f32 %v761, %v1042
  %v1076 = vmax.f32 %v762, %v1047
  %s1077 = scalar_lea.vmem %s0, 600
  %v1078 = vld [vmem:[%s1077] sm:$0xff]
  %v1079 = vld [vmem:[%s1077 + $0x8] sm:$0xff]
  %v1080 = vld [vmem:[%s1077 + $0x10] sm:$0xff]
  %v1081 = vld [vmem:[%s1077 + $0x18] sm:$0xff]
  %v1082 = vld [vmem:[%s1077 + $0x20] sm:$0xff]
  %v1083 = vld [vmem:[%s1077 + $0x28] sm:$0xff]
  %v1084 = vld [vmem:[%s1077 + $0x30] sm:$0xff]
  %v1085 = vld [vmem:[%s1077 + $0x38] sm:$0xff]
  %v1086 = vld [vmem:[%s1077 + $0x40] sm:$0xff]
  %v1087 = vld [vmem:[%s1077 + $0x48] sm:$0xff]
  %v1088 = vld [vmem:[%s1077 + $0x50] sm:$0xff]
  %v1089 = vld [vmem:[%s1077 + $0x58] sm:$0xff]
  %v1090 = vld [vmem:[%s1077 + $0x60] sm:$0xff]
  %v1091 = vld [vmem:[%s1077 + $0x68] sm:$0xff]
  %v1092 = vld [vmem:[%s1077 + $0x70] sm:$0xff]
  %v1093 = vld [vmem:[%s1077 + $0x78] sm:$0xff]
  %v1094 = vld [vmem:[%s1077 + $0x80] sm:$0xff]
  %v1095 = vld [vmem:[%s1077 + $0x88] sm:$0xff]
  %v1096 = vld [vmem:[%s1077 + $0x90] sm:$0xff]
  %v1097 = vld [vmem:[%s1077 + $0x98] sm:$0xff]
  %v1098 = vld [vmem:[%s1077 + $0xa0] sm:$0xff]
  %v1099 = vld [vmem:[%s1077 + $0xa8] sm:$0xff]
  %v1100 = vld [vmem:[%s1077 + $0xb0] sm:$0xff]
  %v1101 = vld [vmem:[%s1077 + $0xb8] sm:$0xff]
  %v1102 = vld [vmem:[%s1077 + $0xc0] sm:$0xff]
  %v1128 = vunpack.c.l.b16 %v1078
  %v1129 = vunpack.c.h.b16 %v1078
  %v1130 = vunpack.c.l.b16 %v1079
  %v1131 = vunpack.c.h.b16 %v1079
  %v1132 = vunpack.c.l.b16 %v1080
  %v1133 = vunpack.c.h.b16 %v1080
  %v1134 = vunpack.c.l.b16 %v1081
  %v1135 = vunpack.c.h.b16 %v1081
  %v1136 = vunpack.c.l.b16 %v1082
  %v1137 = vunpack.c.h.b16 %v1082
  %v1138 = vunpack.c.l.b16 %v1083
  %v1139 = vunpack.c.h.b16 %v1083
  %v1140 = vunpack.c.l.b16 %v1084
  %v1141 = vunpack.c.h.b16 %v1084
  %v1142 = vunpack.c.l.b16 %v1085
  %v1143 = vunpack.c.h.b16 %v1085
  %v1144 = vunpack.c.l.b16 %v1086
  %v1145 = vunpack.c.h.b16 %v1086
  %v1146 = vunpack.c.l.b16 %v1087
  %v1147 = vunpack.c.h.b16 %v1087
  %v1148 = vunpack.c.l.b16 %v1088
  %v1149 = vunpack.c.h.b16 %v1088
  %v1150 = vunpack.c.l.b16 %v1089
  %v1151 = vunpack.c.h.b16 %v1089
  %v1152 = vunpack.c.l.b16 %v1090
  %v1153 = vunpack.c.h.b16 %v1090
  %v1154 = vunpack.c.l.b16 %v1091
  %v1155 = vunpack.c.h.b16 %v1091
  %v1156 = vunpack.c.l.b16 %v1092
  %v1157 = vunpack.c.h.b16 %v1092
  %v1158 = vunpack.c.l.b16 %v1093
  %v1159 = vunpack.c.h.b16 %v1093
  %v1160 = vunpack.c.l.b16 %v1094
  %v1161 = vunpack.c.h.b16 %v1094
  %v1162 = vunpack.c.l.b16 %v1095
  %v1163 = vunpack.c.h.b16 %v1095
  %v1164 = vunpack.c.l.b16 %v1096
  %v1165 = vunpack.c.h.b16 %v1096
  %v1166 = vunpack.c.l.b16 %v1097
  %v1167 = vunpack.c.h.b16 %v1097
  %v1168 = vunpack.c.l.b16 %v1098
  %v1169 = vunpack.c.h.b16 %v1098
  %v1170 = vunpack.c.l.b16 %v1099
  %v1171 = vunpack.c.h.b16 %v1099
  %v1172 = vunpack.c.l.b16 %v1100
  %v1173 = vunpack.c.h.b16 %v1100
  %v1174 = vunpack.c.l.b16 %v1101
  %v1175 = vunpack.c.h.b16 %v1101
  %v1176 = vunpack.c.l.b16 %v1102
  %v1177 = vunpack.c.h.b16 %v1102
  %v1178 = vpack.c.b16 %v1130, %v1128
  %v1179 = vpack.c.b16 %v1131, %v1129
  %v1180 = vpack.c.b16 %v1134, %v1132
  %v1181 = vpack.c.b16 %v1135, %v1133
  %v1182 = vpack.c.b16 %v1138, %v1136
  %v1183 = vpack.c.b16 %v1139, %v1137
  %v1184 = vpack.c.b16 %v1142, %v1140
  %v1185 = vpack.c.b16 %v1143, %v1141
  %v1186 = vpack.c.b16 %v1146, %v1144
  %v1187 = vpack.c.b16 %v1147, %v1145
  %v1188 = vpack.c.b16 %v1150, %v1148
  %v1189 = vpack.c.b16 %v1151, %v1149
  %v1190 = vpack.c.b16 %v1154, %v1152
  %v1191 = vpack.c.b16 %v1155, %v1153
  %v1192 = vpack.c.b16 %v1158, %v1156
  %v1193 = vpack.c.b16 %v1159, %v1157
  %v1194 = vpack.c.b16 %v1162, %v1160
  %v1195 = vpack.c.b16 %v1163, %v1161
  %v1196 = vpack.c.b16 %v1166, %v1164
  %v1197 = vpack.c.b16 %v1167, %v1165
  %v1198 = vpack.c.b16 %v1170, %v1168
  %v1199 = vpack.c.b16 %v1171, %v1169
  %v1200 = vpack.c.b16 %v1174, %v1172
  %v1201 = vpack.c.b16 %v1175, %v1173
  %v1202 = vpack.c.b16 %v1176, %v1176
  %v1203 = vpack.c.b16 %v1177, %v1177
  %1230 = vmatprep.subr.bf16.mxu0 0
  %1231 = vmatpush1.bf16.msra.mxu0 %v281
  %1232 = vmatprep.subr.bf16.mxu0 0
  %1233 = vmatpush1.bf16.msra.mxu0 %v282
  %1234 = vmatprep.subr.bf16.mxu0 0
  %1235 = vmatpush1.bf16.msra.mxu0 %v283
  %1236 = vmatprep.subr.bf16.mxu0 0
  %1237 = vmatpush1.bf16.msra.mxu0 %v284
  %1238 = vmatprep.subr.bf16.mxu0 0
  %1239 = vmatpush1.bf16.msra.mxu0 %v285
  %1240 = vmatprep.subr.bf16.mxu0 0
  %1241 = vmatpush1.bf16.msra.mxu0 %v286
  %1242 = vmatprep.subr.bf16.mxu0 0
  %1243 = vmatpush1.bf16.msra.mxu0 %v287
  %1244 = vmatprep.subr.bf16.mxu0 0
  %1245 = vmatpush1.bf16.msra.mxu0 %v288
  %1246 = vmatprep.subr.bf16.mxu0 0
  %1247 = vmatpush1.bf16.msra.mxu0 %v289
  %1248 = vmatprep.subr.bf16.mxu0 0
  %1249 = vmatpush1.bf16.msra.mxu0 %v290
  %1250 = vmatprep.subr.bf16.mxu0 0
  %1251 = vmatpush1.bf16.msra.mxu0 %v291
  %1252 = vmatprep.subr.bf16.mxu0 0
  %1253 = vmatpush1.bf16.msra.mxu0 %v292
  %1254 = vmatprep.subr.bf16.mxu0 0
  %1255 = vmatpush1.bf16.msra.mxu0 %v293
  %1256 = vmatprep.subr.bf16.mxu0 0
  %1257 = vmatpush1.bf16.msra.mxu0 %v294
  %1258 = vmatprep.subr.bf16.mxu0 0
  %1259 = vmatpush1.bf16.msra.mxu0 %v295
  %1260 = vmatprep.subr.bf16.mxu0 0
  %1261 = vmatpush1.bf16.msra.mxu0 %v296
  %1262 = vmatprep.mubr.bf16.mxu0 %v1179
  %1263 = vmatmul.mubr.bf16.gmra.mrb[0].mxu0 %v1178
  %v1264 = vpop.f32.mrb[0].mxu0
  %v1265 = vadd.f32 0.0, %v1264
  %v1266 = vpop.f32.mrb[0].mxu0
  %v1267 = vpop.f32.mrb[0].mxu0
  %v1268 = vadd.f32 0.0, %v1267
  %v1269 = vpop.f32.mrb[0].mxu0
  %1270 = vmatprep.mubr.bf16.mxu0 %v1181
  %1271 = vmatmul.mubr.bf16.gmra.mrb[0].mxu0 %v1180
  %v1272 = vpop.f32.mrb[0].mxu0
  %v1273 = vadd.f32 0.0, %v1272
  %v1274 = vpop.f32.mrb[0].mxu0
  %v1275 = vpop.f32.mrb[0].mxu0
  %v1276 = vadd.f32 0.0, %v1275
  %v1277 = vpop.f32.mrb[0].mxu0
  %1278 = vmatprep.mubr.bf16.mxu0 %v1183
  %1279 = vmatmul.mubr.bf16.gmra.mrb[0].mxu0 %v1182
  %v1280 = vpop.f32.mrb[0].mxu0
  %v1281 = vadd.f32 0.0, %v1280
  %v1282 = vpop.f32.mrb[0].mxu0
  %v1283 = vpop.f32.mrb[0].mxu0
  %v1284 = vadd.f32 0.0, %v1283
  %v1285 = vpop.f32.mrb[0].mxu0
  %1286 = vmatprep.mubr.bf16.mxu0 %v1185
  %1287 = vmatmul.mubr.bf16.gmra.mrb[0].mxu0 %v1184
  %v1288 = vpop.f32.mrb[0].mxu0
  %v1289 = vadd.f32 0.0, %v1288
  %v1290 = vpop.f32.mrb[0].mxu0
  %v1291 = vpop.f32.mrb[0].mxu0
  %v1292 = vadd.f32 0.0, %v1291
  %v1293 = vpop.f32.mrb[0].mxu0
  %1294 = vmatprep.mubr.bf16.mxu0 %v1187
  %1295 = vmatmul.mubr.bf16.gmra.mrb[0].mxu0 %v1186
  %v1296 = vpop.f32.mrb[0].mxu0
  %v1297 = vadd.f32 0.0, %v1296
  %v1298 = vpop.f32.mrb[0].mxu0
  %v1299 = vpop.f32.mrb[0].mxu0
  %v1300 = vadd.f32 0.0, %v1299
  %v1301 = vpop.f32.mrb[0].mxu0
  %1302 = vmatprep.mubr.bf16.mxu0 %v1189
  %1303 = vmatmul.mubr.bf16.gmra.mrb[0].mxu0 %v1188
  %v1304 = vpop.f32.mrb[0].mxu0
  %v1305 = vadd.f32 0.0, %v1304
  %v1306 = vpop.f32.mrb[0].mxu0
  %v1307 = vpop.f32.mrb[0].mxu0
  %v1308 = vadd.f32 0.0, %v1307
  %v1309 = vpop.f32.mrb[0].mxu0
  %1310 = vmatprep.mubr.bf16.mxu0 %v1191
  %1311 = vmatmul.mubr.bf16.gmra.mrb[0].mxu0 %v1190
  %v1312 = vpop.f32.mrb[0].mxu0
  %v1313 = vadd.f32 0.0, %v1312
  %v1314 = vpop.f32.mrb[0].mxu0
  %v1315 = vpop.f32.mrb[0].mxu0
  %v1316 = vadd.f32 0.0, %v1315
  %v1317 = vpop.f32.mrb[0].mxu0
  %1318 = vmatprep.mubr.bf16.mxu0 %v1193
  %1319 = vmatmul.mubr.bf16.gmra.mrb[0].mxu0 %v1192
  %v1320 = vpop.f32.mrb[0].mxu0
  %v1321 = vadd.f32 0.0, %v1320
  %v1322 = vpop.f32.mrb[0].mxu0
  %v1323 = vpop.f32.mrb[0].mxu0
  %v1324 = vadd.f32 0.0, %v1323
  %v1325 = vpop.f32.mrb[0].mxu0
  %1326 = vmatprep.mubr.bf16.mxu0 %v1195
  %1327 = vmatmul.mubr.bf16.gmra.mrb[0].mxu0 %v1194
  %v1328 = vpop.f32.mrb[0].mxu0
  %v1329 = vadd.f32 0.0, %v1328
  %v1330 = vpop.f32.mrb[0].mxu0
  %v1331 = vpop.f32.mrb[0].mxu0
  %v1332 = vadd.f32 0.0, %v1331
  %v1333 = vpop.f32.mrb[0].mxu0
  %1334 = vmatprep.mubr.bf16.mxu0 %v1197
  %1335 = vmatmul.mubr.bf16.gmra.mrb[0].mxu0 %v1196
  %v1336 = vpop.f32.mrb[0].mxu0
  %v1337 = vadd.f32 0.0, %v1336
  %v1338 = vpop.f32.mrb[0].mxu0
  %v1339 = vpop.f32.mrb[0].mxu0
  %v1340 = vadd.f32 0.0, %v1339
  %v1341 = vpop.f32.mrb[0].mxu0
  %1342 = vmatprep.mubr.bf16.mxu0 %v1199
  %1343 = vmatmul.mubr.bf16.gmra.mrb[0].mxu0 %v1198
  %v1344 = vpop.f32.mrb[0].mxu0
  %v1345 = vadd.f32 0.0, %v1344
  %v1346 = vpop.f32.mrb[0].mxu0
  %v1347 = vpop.f32.mrb[0].mxu0
  %v1348 = vadd.f32 0.0, %v1347
  %v1349 = vpop.f32.mrb[0].mxu0
  %1350 = vmatprep.mubr.bf16.mxu0 %v1201
  %1351 = vmatmul.mubr.bf16.gmra.mrb[0].mxu0 %v1200
  %v1352 = vpop.f32.mrb[0].mxu0
  %v1353 = vadd.f32 0.0, %v1352
  %v1354 = vpop.f32.mrb[0].mxu0
  %v1355 = vpop.f32.mrb[0].mxu0
  %v1356 = vadd.f32 0.0, %v1355
  %v1357 = vpop.f32.mrb[0].mxu0
  %1358 = vmatprep.mubr.bf16.mxu0 %v1203
  %1359 = vmatmul.mubr.bf16.gmra.mrb[0].mxu0 %v1202
  %v1360 = vpop.f32.mrb[0].mxu0
  %v1361 = vadd.f32 0.0, %v1360
  %v1362 = vpop.f32.mrb[0].mxu0
  %v1363 = vpop.f32.mrb[0].mxu0
  %v1364 = vpop.f32.mrb[0].mxu0
  %1365 = vdwg.mxu0
  %v1366 = vmax.f32 %v1052, %v1265
  %v1367 = vmax.f32 %v1053, %v1268
  %v1368 = vmax.f32 %v1054, %v1273
  %v1369 = vmax.f32 %v1055, %v1276
  %v1370 = vmax.f32 %v1056, %v1281
  %v1371 = vmax.f32 %v1057, %v1284
  %v1372 = vmax.f32 %v1058, %v1289
  %v1373 = vmax.f32 %v1059, %v1292
  %v1374 = vmax.f32 %v1060, %v1297
  %v1375 = vmax.f32 %v1061, %v1300
  %v1376 = vmax.f32 %v1062, %v1305
  %v1377 = vmax.f32 %v1063, %v1308
  %v1378 = vmax.f32 %v1064, %v1313
  %v1379 = vmax.f32 %v1065, %v1316
  %v1380 = vmax.f32 %v1066, %v1321
  %v1381 = vmax.f32 %v1067, %v1324
  %v1382 = vmax.f32 %v1068, %v1329
  %v1383 = vmax.f32 %v1069, %v1332
  %v1384 = vmax.f32 %v1070, %v1337
  %v1385 = vmax.f32 %v1071, %v1340
  %v1386 = vmax.f32 %v1072, %v1345
  %v1387 = vmax.f32 %v1073, %v1348
  %v1388 = vmax.f32 %v1074, %v1353
  %v1389 = vmax.f32 %v1075, %v1356
  %v1390 = vmax.f32 %v1076, %v1361
  %v1391 = vld [vmem:[%s2] sm:$0x1]
  %v1393 = vlaneseq
  %v1394 = vshrl.u32 %v1393, 7
  %v1395 = vsub.s32 0, %v1394
  %v1396 = vrot.slane %v1391, %v1395
  %v1398 = vadd.f32 %v1366, %v1396
  %v1399 = vadd.f32 %v1367, %v1396
  %v1400 = vadd.f32 %v1368, %v1396
  %v1401 = vadd.f32 %v1369, %v1396
  %v1402 = vadd.f32 %v1370, %v1396
  %v1403 = vadd.f32 %v1371, %v1396
  %v1404 = vadd.f32 %v1372, %v1396
  %v1405 = vadd.f32 %v1373, %v1396
  %v1406 = vadd.f32 %v1374, %v1396
  %v1407 = vadd.f32 %v1375, %v1396
  %v1408 = vadd.f32 %v1376, %v1396
  %v1409 = vadd.f32 %v1377, %v1396
  %v1410 = vadd.f32 %v1378, %v1396
  %v1411 = vadd.f32 %v1379, %v1396
  %v1412 = vadd.f32 %v1380, %v1396
  %v1413 = vadd.f32 %v1381, %v1396
  %v1414 = vadd.f32 %v1382, %v1396
  %v1415 = vadd.f32 %v1383, %v1396
  %v1416 = vadd.f32 %v1384, %v1396
  %v1417 = vadd.f32 %v1385, %v1396
  %v1418 = vadd.f32 %v1386, %v1396
  %v1419 = vadd.f32 %v1387, %v1396
  %v1420 = vadd.f32 %v1388, %v1396
  %v1421 = vadd.f32 %v1389, %v1396
  %v1422 = vadd.f32 %v1390, %v1396
  %v1423 = vmax.f32 %v1398, 0.0
  %v1424 = vmax.f32 %v1399, 0.0
  %v1425 = vmax.f32 %v1400, 0.0
  %v1426 = vmax.f32 %v1401, 0.0
  %v1427 = vmax.f32 %v1402, 0.0
  %v1428 = vmax.f32 %v1403, 0.0
  %v1429 = vmax.f32 %v1404, 0.0
  %v1430 = vmax.f32 %v1405, 0.0
  %v1431 = vmax.f32 %v1406, 0.0
  %v1432 = vmax.f32 %v1407, 0.0
  %v1433 = vmax.f32 %v1408, 0.0
  %v1434 = vmax.f32 %v1409, 0.0
  %v1435 = vmax.f32 %v1410, 0.0
  %v1436 = vmax.f32 %v1411, 0.0
  %v1437 = vmax.f32 %v1412, 0.0
  %v1438 = vmax.f32 %v1413, 0.0
  %v1439 = vmax.f32 %v1414, 0.0
  %v1440 = vmax.f32 %v1415, 0.0
  %v1441 = vmax.f32 %v1416, 0.0
  %v1442 = vmax.f32 %v1417, 0.0
  %v1443 = vmax.f32 %v1418, 0.0
  %v1444 = vmax.f32 %v1419, 0.0
  %v1445 = vmax.f32 %v1420, 0.0
  %v1446 = vmax.f32 %v1421, 0.0
  %v1447 = vmax.f32 %v1422, 0.0
  %v1448 = vpack.c.bf16 %v1424, %v1423
  %v1449 = vpack.c.bf16 %v1426, %v1425
  %v1450 = vpack.c.bf16 %v1428, %v1427
  %v1451 = vpack.c.bf16 %v1430, %v1429
  %v1452 = vpack.c.bf16 %v1432, %v1431
  %v1453 = vpack.c.bf16 %v1434, %v1433
  %v1454 = vpack.c.bf16 %v1436, %v1435
  %v1455 = vpack.c.bf16 %v1438, %v1437
  %v1456 = vpack.c.bf16 %v1440, %v1439
  %v1457 = vpack.c.bf16 %v1442, %v1441
  %v1458 = vpack.c.bf16 %v1444, %v1443
  %v1459 = vpack.c.bf16 %v1446, %v1445
  %v1460 = vpack.c.bf16 %v1447, %v1447
  %v1461 = vld [vmem:[%s3] sm:$0xf]
  %v1462 = vld [vmem:[%s3 + $0x4] sm:$0xf]
  %v1463 = vld [vmem:[%s3 + $0x8] sm:$0xf]
  %v1464 = vld [vmem:[%s3 + $0xc] sm:$0xf]
  %v1465 = vld [vmem:[%s3 + $0x10] sm:$0xf]
  %v1466 = vld [vmem:[%s3 + $0x14] sm:$0xf]
  %v1467 = vld [vmem:[%s3 + $0x18] sm:$0xf]
  %v1468 = vld [vmem:[%s3 + $0x1c] sm:$0xf]
  %v1469 = vld [vmem:[%s3 + $0x20] sm:$0xf]
  %v1470 = vld [vmem:[%s3 + $0x24] sm:$0xf]
  %v1471 = vld [vmem:[%s3 + $0x28] sm:$0xf]
  %v1472 = vld [vmem:[%s3 + $0x2c] sm:$0xf]
  %v1473 = vld [vmem:[%s3 + $0x30] sm:$0xf]
  %v1474 = vld [vmem:[%s3 + $0x34] sm:$0xf]
  %v1475 = vld [vmem:[%s3 + $0x38] sm:$0xf]
  %v1476 = vld [vmem:[%s3 + $0x3c] sm:$0xf]
  %s1477 = scalar_lea.vmem %s3, 64
  %v1478 = vld [vmem:[%s1477] sm:$0xf]
  %v1479 = vld [vmem:[%s1477 + $0x4] sm:$0xf]
  %v1480 = vld [vmem:[%s1477 + $0x8] sm:$0xf]
  %v1481 = vld [vmem:[%s1477 + $0xc] sm:$0xf]
  %v1482 = vld [vmem:[%s1477 + $0x10] sm:$0xf]
  %v1483 = vld [vmem:[%s1477 + $0x14] sm:$0xf]
  %v1484 = vld [vmem:[%s1477 + $0x18] sm:$0xf]
  %v1485 = vld [vmem:[%s1477 + $0x1c] sm:$0xf]
  %v1486 = vld [vmem:[%s1477 + $0x20] sm:$0xf]
  %v1487 = vld [vmem:[%s1477 + $0x24] sm:$0xf]
  %v1488 = vld [vmem:[%s1477 + $0x28] sm:$0xf]
  %v1489 = vld [vmem:[%s1477 + $0x2c] sm:$0xf]
  %v1490 = vld [vmem:[%s1477 + $0x30] sm:$0xf]
  %v1491 = vld [vmem:[%s1477 + $0x34] sm:$0xf]
  %v1492 = vld [vmem:[%s1477 + $0x38] sm:$0xf]
  %v1493 = vld [vmem:[%s1477 + $0x3c] sm:$0xf]
  %v1495 = vrot.slane %v1448, 4
  %v1513 = vunpack.c.l.b16 %v1478
  %v1514 = vunpack.c.l.b16 %v1479
  %v1515 = vunpack.c.l.b16 %v1480
  %v1516 = vunpack.c.l.b16 %v1481
  %v1517 = vunpack.c.l.b16 %v1482
  %v1518 = vunpack.c.l.b16 %v1483
  %v1519 = vunpack.c.l.b16 %v1484
  %v1520 = vunpack.c.l.b16 %v1485
  %v1521 = vunpack.c.l.b16 %v1486
  %v1522 = vunpack.c.l.b16 %v1487
  %v1523 = vunpack.c.l.b16 %v1488
  %v1524 = vunpack.c.l.b16 %v1489
  %v1525 = vunpack.c.l.b16 %v1490
  %v1526 = vunpack.c.l.b16 %v1491
  %v1527 = vunpack.c.l.b16 %v1492
  %v1528 = vunpack.c.l.b16 %v1493
  %v1529 = vpack.c.b16 %v1514, %v1513
  %v1530 = vpack.c.b16 %v1516, %v1515
  %v1531 = vpack.c.b16 %v1518, %v1517
  %v1532 = vpack.c.b16 %v1520, %v1519
  %v1533 = vpack.c.b16 %v1522, %v1521
  %v1534 = vpack.c.b16 %v1524, %v1523
  %v1535 = vpack.c.b16 %v1526, %v1525
  %v1536 = vpack.c.b16 %v1528, %v1527
  %1545 = vmatprep.subr.bf16.mxu0 0
  %1546 = vmatpush1.bf16.msra.mxu0 %v1529
  %1547 = vmatprep.subr.bf16.mxu0 0
  %1548 = vmatpush1.bf16.msra.mxu0 %v1530
  %1549 = vmatprep.subr.bf16.mxu0 0
  %1550 = vmatpush1.bf16.msra.mxu0 %v1531
  %1551 = vmatprep.subr.bf16.mxu0 0
  %1552 = vmatpush1.bf16.msra.mxu0 %v1532
  %1553 = vmatprep.subr.bf16.mxu0 0
  %1554 = vmatpush1.bf16.msra.mxu0 %v1533
  %1555 = vmatprep.subr.bf16.mxu0 0
  %1556 = vmatpush1.bf16.msra.mxu0 %v1534
  %1557 = vmatprep.subr.bf16.mxu0 0
  %1558 = vmatpush1.bf16.msra.mxu0 %v1535
  %1559 = vmatprep.subr.bf16.mxu0 0
  %1560 = vmatpush1.bf16.msra.mxu0 %v1536
  %1561 = vmatprep.subr.bf16.mxu0 0
  %1562 = vmatpush1.bf16.msra.mxu0 0
  %1563 = vmatprep.subr.bf16.mxu0 0
  %1564 = vmatpush1.bf16.msra.mxu0 0
  %1565 = vmatprep.subr.bf16.mxu0 0
  %1566 = vmatpush1.bf16.msra.mxu0 0
  %1567 = vmatprep.subr.bf16.mxu0 0
  %1568 = vmatpush1.bf16.msra.mxu0 0
  %1569 = vmatprep.subr.bf16.mxu0 0
  %1570 = vmatpush1.bf16.msra.mxu0 0
  %1571 = vmatprep.subr.bf16.mxu0 0
  %1572 = vmatpush1.bf16.msra.mxu0 0
  %1573 = vmatprep.subr.bf16.mxu0 0
  %1574 = vmatpush1.bf16.msra.mxu0 0
  %1575 = vmatprep.subr.bf16.mxu0 0
  %1576 = vmatpush1.bf16.msra.mxu0 0
  %1577 = vmatprep.mubr.bf16.mxu0 0
  %1578 = vmatmul.mubr.bf16.gmra.mrb[0].mxu0 %v1495
  %v1579 = vpop.f32.mrb[0].mxu0
  %v1580 = vadd.f32 0.0, %v1579
  %v1581 = vpop.f32.mrb[0].mxu0
  %v1582 = vpop.f32.mrb[0].mxu0
  %v1583 = vpop.f32.mrb[0].mxu0
  %1584 = vdwg.mxu0
  %v1601 = vunpack.c.l.b16 %v1461
  %v1602 = vunpack.c.l.b16 %v1462
  %v1603 = vunpack.c.l.b16 %v1463
  %v1604 = vunpack.c.l.b16 %v1464
  %v1605 = vunpack.c.l.b16 %v1465
  %v1606 = vunpack.c.l.b16 %v1466
  %v1607 = vunpack.c.l.b16 %v1467
  %v1608 = vunpack.c.l.b16 %v1468
  %v1609 = vunpack.c.l.b16 %v1469
  %v1610 = vunpack.c.l.b16 %v1470
  %v1611 = vunpack.c.l.b16 %v1471
  %v1612 = vunpack.c.l.b16 %v1472
  %v1613 = vunpack.c.l.b16 %v1473
  %v1614 = vunpack.c.l.b16 %v1474
  %v1615 = vunpack.c.l.b16 %v1475
  %v1616 = vunpack.c.l.b16 %v1476
  %v1617 = vpack.c.b16 %v1602, %v1601
  %v1618 = vpack.c.b16 %v1604, %v1603
  %v1619 = vpack.c.b16 %v1606, %v1605
  %v1620 = vpack.c.b16 %v1608, %v1607
  %v1621 = vpack.c.b16 %v1610, %v1609
  %v1622 = vpack.c.b16 %v1612, %v1611
  %v1623 = vpack.c.b16 %v1614, %v1613
  %v1624 = vpack.c.b16 %v1616, %v1615
  %1633 = vmatprep.subr.bf16.mxu0 0
  %1634 = vmatpush1.bf16.msra.mxu0 %v1617
  %1635 = vmatprep.subr.bf16.mxu0 0
  %1636 = vmatpush1.bf16.msra.mxu0 %v1618
  %1637 = vmatprep.subr.bf16.mxu0 0
  %1638 = vmatpush1.bf16.msra.mxu0 %v1619
  %1639 = vmatprep.subr.bf16.mxu0 0
  %1640 = vmatpush1.bf16.msra.mxu0 %v1620
  %1641 = vmatprep.subr.bf16.mxu0 0
  %1642 = vmatpush1.bf16.msra.mxu0 %v1621
  %1643 = vmatprep.subr.bf16.mxu0 0
  %1644 = vmatpush1.bf16.msra.mxu0 %v1622
  %1645 = vmatprep.subr.bf16.mxu0 0
  %1646 = vmatpush1.bf16.msra.mxu0 %v1623
  %1647 = vmatprep.subr.bf16.mxu0 0
  %1648 = vmatpush1.bf16.msra.mxu0 %v1624
  %1649 = vmatprep.subr.bf16.mxu0 0
  %1650 = vmatpush1.bf16.msra.mxu0 0
  %1651 = vmatprep.subr.bf16.mxu0 0
  %1652 = vmatpush1.bf16.msra.mxu0 0
  %1653 = vmatprep.subr.bf16.mxu0 0
  %1654 = vmatpush1.bf16.msra.mxu0 0
  %1655 = vmatprep.subr.bf16.mxu0 0
  %1656 = vmatpush1.bf16.msra.mxu0 0
  %1657 = vmatprep.subr.bf16.mxu0 0
  %1658 = vmatpush1.bf16.msra.mxu0 0
  %1659 = vmatprep.subr.bf16.mxu0 0
  %1660 = vmatpush1.bf16.msra.mxu0 0
  %1661 = vmatprep.subr.bf16.mxu0 0
  %1662 = vmatpush1.bf16.msra.mxu0 0
  %1663 = vmatprep.subr.bf16.mxu0 0
  %1664 = vmatpush1.bf16.msra.mxu0 0
  %1665 = vmatprep.mubr.bf16.mxu0 0
  %1666 = vmatmul.mubr.bf16.gmra.mrb[0].mxu0 %v1448
  %v1667 = vpop.f32.mrb[0].mxu0
  %v1668 = vadd.f32 %v1580, %v1667
  %v1669 = vpop.f32.mrb[0].mxu0
  %v1670 = vpop.f32.mrb[0].mxu0
  %v1671 = vpop.f32.mrb[0].mxu0
  %1672 = vdwg.mxu0
  %s1673 = scalar_lea.vmem %s3, 128
  %v1674 = vld [vmem:[%s1673] sm:$0xf]
  %v1675 = vld [vmem:[%s1673 + $0x4] sm:$0xf]
  %v1676 = vld [vmem:[%s1673 + $0x8] sm:$0xf]
  %v1677 = vld [vmem:[%s1673 + $0xc] sm:$0xf]
  %v1678 = vld [vmem:[%s1673 + $0x10] sm:$0xf]
  %v1679 = vld [vmem:[%s1673 + $0x14] sm:$0xf]
  %v1680 = vld [vmem:[%s1673 + $0x18] sm:$0xf]
  %v1681 = vld [vmem:[%s1673 + $0x1c] sm:$0xf]
  %v1682 = vld [vmem:[%s1673 + $0x20] sm:$0xf]
  %v1683 = vld [vmem:[%s1673 + $0x24] sm:$0xf]
  %v1684 = vld [vmem:[%s1673 + $0x28] sm:$0xf]
  %v1685 = vld [vmem:[%s1673 + $0x2c] sm:$0xf]
  %v1686 = vld [vmem:[%s1673 + $0x30] sm:$0xf]
  %v1687 = vld [vmem:[%s1673 + $0x34] sm:$0xf]
  %v1688 = vld [vmem:[%s1673 + $0x38] sm:$0xf]
  %v1689 = vld [vmem:[%s1673 + $0x3c] sm:$0xf]
  %v1706 = vunpack.c.l.b16 %v1674
  %v1707 = vunpack.c.l.b16 %v1675
  %v1708 = vunpack.c.l.b16 %v1676
  %v1709 = vunpack.c.l.b16 %v1677
  %v1710 = vunpack.c.l.b16 %v1678
  %v1711 = vunpack.c.l.b16 %v1679
  %v1712 = vunpack.c.l.b16 %v1680
  %v1713 = vunpack.c.l.b16 %v1681
  %v1714 = vunpack.c.l.b16 %v1682
  %v1715 = vunpack.c.l.b16 %v1683
  %v1716 = vunpack.c.l.b16 %v1684
  %v1717 = vunpack.c.l.b16 %v1685
  %v1718 = vunpack.c.l.b16 %v1686
  %v1719 = vunpack.c.l.b16 %v1687
  %v1720 = vunpack.c.l.b16 %v1688
  %v1721 = vunpack.c.l.b16 %v1689
  %v1722 = vpack.c.b16 %v1707, %v1706
  %v1723 = vpack.c.b16 %v1709, %v1708
  %v1724 = vpack.c.b16 %v1711, %v1710
  %v1725 = vpack.c.b16 %v1713, %v1712
  %v1726 = vpack.c.b16 %v1715, %v1714
  %v1727 = vpack.c.b16 %v1717, %v1716
  %v1728 = vpack.c.b16 %v1719, %v1718
  %v1729 = vpack.c.b16 %v1721, %v1720
  %1738 = vmatprep.subr.bf16.mxu0 0
  %1739 = vmatpush1.bf16.msra.mxu0 %v1722
  %1740 = vmatprep.subr.bf16.mxu0 0
  %1741 = vmatpush1.bf16.msra.mxu0 %v1723
  %1742 = vmatprep.subr.bf16.mxu0 0
  %1743 = vmatpush1.bf16.msra.mxu0 %v1724
  %1744 = vmatprep.subr.bf16.mxu0 0
  %1745 = vmatpush1.bf16.msra.mxu0 %v1725
  %1746 = vmatprep.subr.bf16.mxu0 0
  %1747 = vmatpush1.bf16.msra.mxu0 %v1726
  %1748 = vmatprep.subr.bf16.mxu0 0
  %1749 = vmatpush1.bf16.msra.mxu0 %v1727
  %1750 = vmatprep.subr.bf16.mxu0 0
  %1751 = vmatpush1.bf16.msra.mxu0 %v1728
  %1752 = vmatprep.subr.bf16.mxu0 0
  %1753 = vmatpush1.bf16.msra.mxu0 %v1729
  %1754 = vmatprep.subr.bf16.mxu0 0
  %1755 = vmatpush1.bf16.msra.mxu0 0
  %1756 = vmatprep.subr.bf16.mxu0 0
  %1757 = vmatpush1.bf16.msra.mxu0 0
  %1758 = vmatprep.subr.bf16.mxu0 0
  %1759 = vmatpush1.bf16.msra.mxu0 0
  %1760 = vmatprep.subr.bf16.mxu0 0
  %1761 = vmatpush1.bf16.msra.mxu0 0
  %1762 = vmatprep.subr.bf16.mxu0 0
  %1763 = vmatpush1.bf16.msra.mxu0 0
  %1764 = vmatprep.subr.bf16.mxu0 0
  %1765 = vmatpush1.bf16.msra.mxu0 0
  %1766 = vmatprep.subr.bf16.mxu0 0
  %1767 = vmatpush1.bf16.msra.mxu0 0
  %1768 = vmatprep.subr.bf16.mxu0 0
  %1769 = vmatpush1.bf16.msra.mxu0 0
  %1770 = vmatprep.mubr.bf16.mxu0 0
  %1771 = vmatmul.mubr.bf16.gmra.mrb[0].mxu0 %v1449
  %v1772 = vpop.f32.mrb[0].mxu0
  %v1773 = vadd.f32 0.0, %v1772
  %v1774 = vpop.f32.mrb[0].mxu0
  %v1775 = vpop.f32.mrb[0].mxu0
  %v1776 = vpop.f32.mrb[0].mxu0
  %1777 = vdwg.mxu0
  %v1778 = vadd.f32 %v1668, %v1773
  %s1779 = scalar_lea.vmem %s3, 192
  %v1780 = vld [vmem:[%s1779] sm:$0xf]
  %v1781 = vld [vmem:[%s1779 + $0x4] sm:$0xf]
  %v1782 = vld [vmem:[%s1779 + $0x8] sm:$0xf]
  %v1783 = vld [vmem:[%s1779 + $0xc] sm:$0xf]
  %v1784 = vld [vmem:[%s1779 + $0x10] sm:$0xf]
  %v1785 = vld [vmem:[%s1779 + $0x14] sm:$0xf]
  %v1786 = vld [vmem:[%s1779 + $0x18] sm:$0xf]
  %v1787 = vld [vmem:[%s1779 + $0x1c] sm:$0xf]
  %v1788 = vld [vmem:[%s1779 + $0x20] sm:$0xf]
  %v1789 = vld [vmem:[%s1779 + $0x24] sm:$0xf]
  %v1790 = vld [vmem:[%s1779 + $0x28] sm:$0xf]
  %v1791 = vld [vmem:[%s1779 + $0x2c] sm:$0xf]
  %v1792 = vld [vmem:[%s1779 + $0x30] sm:$0xf]
  %v1793 = vld [vmem:[%s1779 + $0x34] sm:$0xf]
  %v1794 = vld [vmem:[%s1779 + $0x38] sm:$0xf]
  %v1795 = vld [vmem:[%s1779 + $0x3c] sm:$0xf]
  %v1797 = vrot.slane %v1449, 4
  %v1815 = vunpack.c.l.b16 %v1780
  %v1816 = vunpack.c.l.b16 %v1781
  %v1817 = vunpack.c.l.b16 %v1782
  %v1818 = vunpack.c.l.b16 %v1783
  %v1819 = vunpack.c.l.b16 %v1784
  %v1820 = vunpack.c.l.b16 %v1785
  %v1821 = vunpack.c.l.b16 %v1786
  %v1822 = vunpack.c.l.b16 %v1787
  %v1823 = vunpack.c.l.b16 %v1788
  %v1824 = vunpack.c.l.b16 %v1789
  %v1825 = vunpack.c.l.b16 %v1790
  %v1826 = vunpack.c.l.b16 %v1791
  %v1827 = vunpack.c.l.b16 %v1792
  %v1828 = vunpack.c.l.b16 %v1793
  %v1829 = vunpack.c.l.b16 %v1794
  %v1830 = vunpack.c.l.b16 %v1795
  %v1831 = vpack.c.b16 %v1816, %v1815
  %v1832 = vpack.c.b16 %v1818, %v1817
  %v1833 = vpack.c.b16 %v1820, %v1819
  %v1834 = vpack.c.b16 %v1822, %v1821
  %v1835 = vpack.c.b16 %v1824, %v1823
  %v1836 = vpack.c.b16 %v1826, %v1825
  %v1837 = vpack.c.b16 %v1828, %v1827
  %v1838 = vpack.c.b16 %v1830, %v1829
  %1847 = vmatprep.subr.bf16.mxu0 0
  %1848 = vmatpush1.bf16.msra.mxu0 %v1831
  %1849 = vmatprep.subr.bf16.mxu0 0
  %1850 = vmatpush1.bf16.msra.mxu0 %v1832
  %1851 = vmatprep.subr.bf16.mxu0 0
  %1852 = vmatpush1.bf16.msra.mxu0 %v1833
  %1853 = vmatprep.subr.bf16.mxu0 0
  %1854 = vmatpush1.bf16.msra.mxu0 %v1834
  %1855 = vmatprep.subr.bf16.mxu0 0
  %1856 = vmatpush1.bf16.msra.mxu0 %v1835
  %1857 = vmatprep.subr.bf16.mxu0 0
  %1858 = vmatpush1.bf16.msra.mxu0 %v1836
  %1859 = vmatprep.subr.bf16.mxu0 0
  %1860 = vmatpush1.bf16.msra.mxu0 %v1837
  %1861 = vmatprep.subr.bf16.mxu0 0
  %1862 = vmatpush1.bf16.msra.mxu0 %v1838
  %1863 = vmatprep.subr.bf16.mxu0 0
  %1864 = vmatpush1.bf16.msra.mxu0 0
  %1865 = vmatprep.subr.bf16.mxu0 0
  %1866 = vmatpush1.bf16.msra.mxu0 0
  %1867 = vmatprep.subr.bf16.mxu0 0
  %1868 = vmatpush1.bf16.msra.mxu0 0
  %1869 = vmatprep.subr.bf16.mxu0 0
  %1870 = vmatpush1.bf16.msra.mxu0 0
  %1871 = vmatprep.subr.bf16.mxu0 0
  %1872 = vmatpush1.bf16.msra.mxu0 0
  %1873 = vmatprep.subr.bf16.mxu0 0
  %1874 = vmatpush1.bf16.msra.mxu0 0
  %1875 = vmatprep.subr.bf16.mxu0 0
  %1876 = vmatpush1.bf16.msra.mxu0 0
  %1877 = vmatprep.subr.bf16.mxu0 0
  %1878 = vmatpush1.bf16.msra.mxu0 0
  %1879 = vmatprep.mubr.bf16.mxu0 0
  %1880 = vmatmul.mubr.bf16.gmra.mrb[0].mxu0 %v1797
  %v1881 = vpop.f32.mrb[0].mxu0
  %v1882 = vadd.f32 0.0, %v1881
  %v1883 = vpop.f32.mrb[0].mxu0
  %v1884 = vpop.f32.mrb[0].mxu0
  %v1885 = vpop.f32.mrb[0].mxu0
  %1886 = vdwg.mxu0
  %v1887 = vadd.f32 %v1778, %v1882
  %s1888 = scalar_lea.vmem %s3, 256
  %v1889 = vld [vmem:[%s1888] sm:$0xf]
  %v1890 = vld [vmem:[%s1888 + $0x4] sm:$0xf]
  %v1891 = vld [vmem:[%s1888 + $0x8] sm:$0xf]
  %v1892 = vld [vmem:[%s1888 + $0xc] sm:$0xf]
  %v1893 = vld [vmem:[%s1888 + $0x10] sm:$0xf]
  %v1894 = vld [vmem:[%s1888 + $0x14] sm:$0xf]
  %v1895 = vld [vmem:[%s1888 + $0x18] sm:$0xf]
  %v1896 = vld [vmem:[%s1888 + $0x1c] sm:$0xf]
  %v1897 = vld [vmem:[%s1888 + $0x20] sm:$0xf]
  %v1898 = vld [vmem:[%s1888 + $0x24] sm:$0xf]
  %v1899 = vld [vmem:[%s1888 + $0x28] sm:$0xf]
  %v1900 = vld [vmem:[%s1888 + $0x2c] sm:$0xf]
  %v1901 = vld [vmem:[%s1888 + $0x30] sm:$0xf]
  %v1902 = vld [vmem:[%s1888 + $0x34] sm:$0xf]
  %v1903 = vld [vmem:[%s1888 + $0x38] sm:$0xf]
  %v1904 = vld [vmem:[%s1888 + $0x3c] sm:$0xf]
  %v1921 = vunpack.c.l.b16 %v1889
  %v1922 = vunpack.c.l.b16 %v1890
  %v1923 = vunpack.c.l.b16 %v1891
  %v1924 = vunpack.c.l.b16 %v1892
  %v1925 = vunpack.c.l.b16 %v1893
  %v1926 = vunpack.c.l.b16 %v1894
  %v1927 = vunpack.c.l.b16 %v1895
  %v1928 = vunpack.c.l.b16 %v1896
  %v1929 = vunpack.c.l.b16 %v1897
  %v1930 = vunpack.c.l.b16 %v1898
  %v1931 = vunpack.c.l.b16 %v1899
  %v1932 = vunpack.c.l.b16 %v1900
  %v1933 = vunpack.c.l.b16 %v1901
  %v1934 = vunpack.c.l.b16 %v1902
  %v1935 = vunpack.c.l.b16 %v1903
  %v1936 = vunpack.c.l.b16 %v1904
  %v1937 = vpack.c.b16 %v1922, %v1921
  %v1938 = vpack.c.b16 %v1924, %v1923
  %v1939 = vpack.c.b16 %v1926, %v1925
  %v1940 = vpack.c.b16 %v1928, %v1927
  %v1941 = vpack.c.b16 %v1930, %v1929
  %v1942 = vpack.c.b16 %v1932, %v1931
  %v1943 = vpack.c.b16 %v1934, %v1933
  %v1944 = vpack.c.b16 %v1936, %v1935
  %1953 = vmatprep.subr.bf16.mxu0 0
  %1954 = vmatpush1.bf16.msra.mxu0 %v1937
  %1955 = vmatprep.subr.bf16.mxu0 0
  %1956 = vmatpush1.bf16.msra.mxu0 %v1938
  %1957 = vmatprep.subr.bf16.mxu0 0
  %1958 = vmatpush1.bf16.msra.mxu0 %v1939
  %1959 = vmatprep.subr.bf16.mxu0 0
  %1960 = vmatpush1.bf16.msra.mxu0 %v1940
  %1961 = vmatprep.subr.bf16.mxu0 0
  %1962 = vmatpush1.bf16.msra.mxu0 %v1941
  %1963 = vmatprep.subr.bf16.mxu0 0
  %1964 = vmatpush1.bf16.msra.mxu0 %v1942
  %1965 = vmatprep.subr.bf16.mxu0 0
  %1966 = vmatpush1.bf16.msra.mxu0 %v1943
  %1967 = vmatprep.subr.bf16.mxu0 0
  %1968 = vmatpush1.bf16.msra.mxu0 %v1944
  %1969 = vmatprep.subr.bf16.mxu0 0
  %1970 = vmatpush1.bf16.msra.mxu0 0
  %1971 = vmatprep.subr.bf16.mxu0 0
  %1972 = vmatpush1.bf16.msra.mxu0 0
  %1973 = vmatprep.subr.bf16.mxu0 0
  %1974 = vmatpush1.bf16.msra.mxu0 0
  %1975 = vmatprep.subr.bf16.mxu0 0
  %1976 = vmatpush1.bf16.msra.mxu0 0
  %1977 = vmatprep.subr.bf16.mxu0 0
  %1978 = vmatpush1.bf16.msra.mxu0 0
  %1979 = vmatprep.subr.bf16.mxu0 0
  %1980 = vmatpush1.bf16.msra.mxu0 0
  %1981 = vmatprep.subr.bf16.mxu0 0
  %1982 = vmatpush1.bf16.msra.mxu0 0
  %1983 = vmatprep.subr.bf16.mxu0 0
  %1984 = vmatpush1.bf16.msra.mxu0 0
  %1985 = vmatprep.mubr.bf16.mxu0 0
  %1986 = vmatmul.mubr.bf16.gmra.mrb[0].mxu0 %v1450
  %v1987 = vpop.f32.mrb[0].mxu0
  %v1988 = vadd.f32 0.0, %v1987
  %v1989 = vpop.f32.mrb[0].mxu0
  %v1990 = vpop.f32.mrb[0].mxu0
  %v1991 = vpop.f32.mrb[0].mxu0
  %1992 = vdwg.mxu0
  %v1993 = vadd.f32 %v1887, %v1988
  %s1994 = scalar_lea.vmem %s3, 320
  %v1995 = vld [vmem:[%s1994] sm:$0xf]
  %v1996 = vld [vmem:[%s1994 + $0x4] sm:$0xf]
  %v1997 = vld [vmem:[%s1994 + $0x8] sm:$0xf]
  %v1998 = vld [vmem:[%s1994 + $0xc] sm:$0xf]
  %v1999 = vld [vmem:[%s1994 + $0x10] sm:$0xf]
  %v2000 = vld [vmem:[%s1994 + $0x14] sm:$0xf]
  %v2001 = vld [vmem:[%s1994 + $0x18] sm:$0xf]
  %v2002 = vld [vmem:[%s1994 + $0x1c] sm:$0xf]
  %v2003 = vld [vmem:[%s1994 + $0x20] sm:$0xf]
  %v2004 = vld [vmem:[%s1994 + $0x24] sm:$0xf]
  %v2005 = vld [vmem:[%s1994 + $0x28] sm:$0xf]
  %v2006 = vld [vmem:[%s1994 + $0x2c] sm:$0xf]
  %v2007 = vld [vmem:[%s1994 + $0x30] sm:$0xf]
  %v2008 = vld [vmem:[%s1994 + $0x34] sm:$0xf]
  %v2009 = vld [vmem:[%s1994 + $0x38] sm:$0xf]
  %v2010 = vld [vmem:[%s1994 + $0x3c] sm:$0xf]
  %v2012 = vrot.slane %v1450, 4
  %v2030 = vunpack.c.l.b16 %v1995
  %v2031 = vunpack.c.l.b16 %v1996
  %v2032 = vunpack.c.l.b16 %v1997
  %v2033 = vunpack.c.l.b16 %v1998
  %v2034 = vunpack.c.l.b16 %v1999
  %v2035 = vunpack.c.l.b16 %v2000
  %v2036 = vunpack.c.l.b16 %v2001
  %v2037 = vunpack.c.l.b16 %v2002
  %v2038 = vunpack.c.l.b16 %v2003
  %v2039 = vunpack.c.l.b16 %v2004
  %v2040 = vunpack.c.l.b16 %v2005
  %v2041 = vunpack.c.l.b16 %v2006
  %v2042 = vunpack.c.l.b16 %v2007
  %v2043 = vunpack.c.l.b16 %v2008
  %v2044 = vunpack.c.l.b16 %v2009
  %v2045 = vunpack.c.l.b16 %v2010
  %v2046 = vpack.c.b16 %v2031, %v2030
  %v2047 = vpack.c.b16 %v2033, %v2032
  %v2048 = vpack.c.b16 %v2035, %v2034
  %v2049 = vpack.c.b16 %v2037, %v2036
  %v2050 = vpack.c.b16 %v2039, %v2038
  %v2051 = vpack.c.b16 %v2041, %v2040
  %v2052 = vpack.c.b16 %v2043, %v2042
  %v2053 = vpack.c.b16 %v2045, %v2044
  %2062 = vmatprep.subr.bf16.mxu0 0
  %2063 = vmatpush1.bf16.msra.mxu0 %v2046
  %2064 = vmatprep.subr.bf16.mxu0 0
  %2065 = vmatpush1.bf16.msra.mxu0 %v2047
  %2066 = vmatprep.subr.bf16.mxu0 0
  %2067 = vmatpush1.bf16.msra.mxu0 %v2048
  %2068 = vmatprep.subr.bf16.mxu0 0
  %2069 = vmatpush1.bf16.msra.mxu0 %v2049
  %2070 = vmatprep.subr.bf16.mxu0 0
  %2071 = vmatpush1.bf16.msra.mxu0 %v2050
  %2072 = vmatprep.subr.bf16.mxu0 0
  %2073 = vmatpush1.bf16.msra.mxu0 %v2051
  %2074 = vmatprep.subr.bf16.mxu0 0
  %2075 = vmatpush1.bf16.msra.mxu0 %v2052
  %2076 = vmatprep.subr.bf16.mxu0 0
  %2077 = vmatpush1.bf16.msra.mxu0 %v2053
  %2078 = vmatprep.subr.bf16.mxu0 0
  %2079 = vmatpush1.bf16.msra.mxu0 0
  %2080 = vmatprep.subr.bf16.mxu0 0
  %2081 = vmatpush1.bf16.msra.mxu0 0
  %2082 = vmatprep.subr.bf16.mxu0 0
  %2083 = vmatpush1.bf16.msra.mxu0 0
  %2084 = vmatprep.subr.bf16.mxu0 0
  %2085 = vmatpush1.bf16.msra.mxu0 0
  %2086 = vmatprep.subr.bf16.mxu0 0
  %2087 = vmatpush1.bf16.msra.mxu0 0
  %2088 = vmatprep.subr.bf16.mxu0 0
  %2089 = vmatpush1.bf16.msra.mxu0 0
  %2090 = vmatprep.subr.bf16.mxu0 0
  %2091 = vmatpush1.bf16.msra.mxu0 0
  %2092 = vmatprep.subr.bf16.mxu0 0
  %2093 = vmatpush1.bf16.msra.mxu0 0
  %2094 = vmatprep.mubr.bf16.mxu0 0
  %2095 = vmatmul.mubr.bf16.gmra.mrb[0].mxu0 %v2012
  %v2096 = vpop.f32.mrb[0].mxu0
  %v2097 = vadd.f32 0.0, %v2096
  %v2098 = vpop.f32.mrb[0].mxu0
  %v2099 = vpop.f32.mrb[0].mxu0
  %v2100 = vpop.f32.mrb[0].mxu0
  %2101 = vdwg.mxu0
  %v2102 = vadd.f32 %v1993, %v2097
  %s2103 = scalar_lea.vmem %s3, 384
  %v2104 = vld [vmem:[%s2103] sm:$0xf]
  %v2105 = vld [vmem:[%s2103 + $0x4] sm:$0xf]
  %v2106 = vld [vmem:[%s2103 + $0x8] sm:$0xf]
  %v2107 = vld [vmem:[%s2103 + $0xc] sm:$0xf]
  %v2108 = vld [vmem:[%s2103 + $0x10] sm:$0xf]
  %v2109 = vld [vmem:[%s2103 + $0x14] sm:$0xf]
  %v2110 = vld [vmem:[%s2103 + $0x18] sm:$0xf]
  %v2111 = vld [vmem:[%s2103 + $0x1c] sm:$0xf]
  %v2112 = vld [vmem:[%s2103 + $0x20] sm:$0xf]
  %v2113 = vld [vmem:[%s2103 + $0x24] sm:$0xf]
  %v2114 = vld [vmem:[%s2103 + $0x28] sm:$0xf]
  %v2115 = vld [vmem:[%s2103 + $0x2c] sm:$0xf]
  %v2116 = vld [vmem:[%s2103 + $0x30] sm:$0xf]
  %v2117 = vld [vmem:[%s2103 + $0x34] sm:$0xf]
  %v2118 = vld [vmem:[%s2103 + $0x38] sm:$0xf]
  %v2119 = vld [vmem:[%s2103 + $0x3c] sm:$0xf]
  %v2136 = vunpack.c.l.b16 %v2104
  %v2137 = vunpack.c.l.b16 %v2105
  %v2138 = vunpack.c.l.b16 %v2106
  %v2139 = vunpack.c.l.b16 %v2107
  %v2140 = vunpack.c.l.b16 %v2108
  %v2141 = vunpack.c.l.b16 %v2109
  %v2142 = vunpack.c.l.b16 %v2110
  %v2143 = vunpack.c.l.b16 %v2111
  %v2144 = vunpack.c.l.b16 %v2112
  %v2145 = vunpack.c.l.b16 %v2113
  %v2146 = vunpack.c.l.b16 %v2114
  %v2147 = vunpack.c.l.b16 %v2115
  %v2148 = vunpack.c.l.b16 %v2116
  %v2149 = vunpack.c.l.b16 %v2117
  %v2150 = vunpack.c.l.b16 %v2118
  %v2151 = vunpack.c.l.b16 %v2119
  %v2152 = vpack.c.b16 %v2137, %v2136
  %v2153 = vpack.c.b16 %v2139, %v2138
  %v2154 = vpack.c.b16 %v2141, %v2140
  %v2155 = vpack.c.b16 %v2143, %v2142
  %v2156 = vpack.c.b16 %v2145, %v2144
  %v2157 = vpack.c.b16 %v2147, %v2146
  %v2158 = vpack.c.b16 %v2149, %v2148
  %v2159 = vpack.c.b16 %v2151, %v2150
  %2168 = vmatprep.subr.bf16.mxu0 0
  %2169 = vmatpush1.bf16.msra.mxu0 %v2152
  %2170 = vmatprep.subr.bf16.mxu0 0
  %2171 = vmatpush1.bf16.msra.mxu0 %v2153
  %2172 = vmatprep.subr.bf16.mxu0 0
  %2173 = vmatpush1.bf16.msra.mxu0 %v2154
  %2174 = vmatprep.subr.bf16.mxu0 0
  %2175 = vmatpush1.bf16.msra.mxu0 %v2155
  %2176 = vmatprep.subr.bf16.mxu0 0
  %2177 = vmatpush1.bf16.msra.mxu0 %v2156
  %2178 = vmatprep.subr.bf16.mxu0 0
  %2179 = vmatpush1.bf16.msra.mxu0 %v2157
  %2180 = vmatprep.subr.bf16.mxu0 0
  %2181 = vmatpush1.bf16.msra.mxu0 %v2158
  %2182 = vmatprep.subr.bf16.mxu0 0
  %2183 = vmatpush1.bf16.msra.mxu0 %v2159
  %2184 = vmatprep.subr.bf16.mxu0 0
  %2185 = vmatpush1.bf16.msra.mxu0 0
  %2186 = vmatprep.subr.bf16.mxu0 0
  %2187 = vmatpush1.bf16.msra.mxu0 0
  %2188 = vmatprep.subr.bf16.mxu0 0
  %2189 = vmatpush1.bf16.msra.mxu0 0
  %2190 = vmatprep.subr.bf16.mxu0 0
  %2191 = vmatpush1.bf16.msra.mxu0 0
  %2192 = vmatprep.subr.bf16.mxu0 0
  %2193 = vmatpush1.bf16.msra.mxu0 0
  %2194 = vmatprep.subr.bf16.mxu0 0
  %2195 = vmatpush1.bf16.msra.mxu0 0
  %2196 = vmatprep.subr.bf16.mxu0 0
  %2197 = vmatpush1.bf16.msra.mxu0 0
  %2198 = vmatprep.subr.bf16.mxu0 0
  %2199 = vmatpush1.bf16.msra.mxu0 0
  %2200 = vmatprep.mubr.bf16.mxu0 0
  %2201 = vmatmul.mubr.bf16.gmra.mrb[0].mxu0 %v1451
  %v2202 = vpop.f32.mrb[0].mxu0
  %v2203 = vadd.f32 0.0, %v2202
  %v2204 = vpop.f32.mrb[0].mxu0
  %v2205 = vpop.f32.mrb[0].mxu0
  %v2206 = vpop.f32.mrb[0].mxu0
  %2207 = vdwg.mxu0
  %v2208 = vadd.f32 %v2102, %v2203
  %s2209 = scalar_lea.vmem %s3, 448
  %v2210 = vld [vmem:[%s2209] sm:$0xf]
  %v2211 = vld [vmem:[%s2209 + $0x4] sm:$0xf]
  %v2212 = vld [vmem:[%s2209 + $0x8] sm:$0xf]
  %v2213 = vld [vmem:[%s2209 + $0xc] sm:$0xf]
  %v2214 = vld [vmem:[%s2209 + $0x10] sm:$0xf]
  %v2215 = vld [vmem:[%s2209 + $0x14] sm:$0xf]
  %v2216 = vld [vmem:[%s2209 + $0x18] sm:$0xf]
  %v2217 = vld [vmem:[%s2209 + $0x1c] sm:$0xf]
  %v2218 = vld [vmem:[%s2209 + $0x20] sm:$0xf]
  %v2219 = vld [vmem:[%s2209 + $0x24] sm:$0xf]
  %v2220 = vld [vmem:[%s2209 + $0x28] sm:$0xf]
  %v2221 = vld [vmem:[%s2209 + $0x2c] sm:$0xf]
  %v2222 = vld [vmem:[%s2209 + $0x30] sm:$0xf]
  %v2223 = vld [vmem:[%s2209 + $0x34] sm:$0xf]
  %v2224 = vld [vmem:[%s2209 + $0x38] sm:$0xf]
  %v2225 = vld [vmem:[%s2209 + $0x3c] sm:$0xf]
  %v2227 = vrot.slane %v1451, 4
  %v2245 = vunpack.c.l.b16 %v2210
  %v2246 = vunpack.c.l.b16 %v2211
  %v2247 = vunpack.c.l.b16 %v2212
  %v2248 = vunpack.c.l.b16 %v2213
  %v2249 = vunpack.c.l.b16 %v2214
  %v2250 = vunpack.c.l.b16 %v2215
  %v2251 = vunpack.c.l.b16 %v2216
  %v2252 = vunpack.c.l.b16 %v2217
  %v2253 = vunpack.c.l.b16 %v2218
  %v2254 = vunpack.c.l.b16 %v2219
  %v2255 = vunpack.c.l.b16 %v2220
  %v2256 = vunpack.c.l.b16 %v2221
  %v2257 = vunpack.c.l.b16 %v2222
  %v2258 = vunpack.c.l.b16 %v2223
  %v2259 = vunpack.c.l.b16 %v2224
  %v2260 = vunpack.c.l.b16 %v2225
  %v2261 = vpack.c.b16 %v2246, %v2245
  %v2262 = vpack.c.b16 %v2248, %v2247
  %v2263 = vpack.c.b16 %v2250, %v2249
  %v2264 = vpack.c.b16 %v2252, %v2251
  %v2265 = vpack.c.b16 %v2254, %v2253
  %v2266 = vpack.c.b16 %v2256, %v2255
  %v2267 = vpack.c.b16 %v2258, %v2257
  %v2268 = vpack.c.b16 %v2260, %v2259
  %2277 = vmatprep.subr.bf16.mxu0 0
  %2278 = vmatpush1.bf16.msra.mxu0 %v2261
  %2279 = vmatprep.subr.bf16.mxu0 0
  %2280 = vmatpush1.bf16.msra.mxu0 %v2262
  %2281 = vmatprep.subr.bf16.mxu0 0
  %2282 = vmatpush1.bf16.msra.mxu0 %v2263
  %2283 = vmatprep.subr.bf16.mxu0 0
  %2284 = vmatpush1.bf16.msra.mxu0 %v2264
  %2285 = vmatprep.subr.bf16.mxu0 0
  %2286 = vmatpush1.bf16.msra.mxu0 %v2265
  %2287 = vmatprep.subr.bf16.mxu0 0
  %2288 = vmatpush1.bf16.msra.mxu0 %v2266
  %2289 = vmatprep.subr.bf16.mxu0 0
  %2290 = vmatpush1.bf16.msra.mxu0 %v2267
  %2291 = vmatprep.subr.bf16.mxu0 0
  %2292 = vmatpush1.bf16.msra.mxu0 %v2268
  %2293 = vmatprep.subr.bf16.mxu0 0
  %2294 = vmatpush1.bf16.msra.mxu0 0
  %2295 = vmatprep.subr.bf16.mxu0 0
  %2296 = vmatpush1.bf16.msra.mxu0 0
  %2297 = vmatprep.subr.bf16.mxu0 0
  %2298 = vmatpush1.bf16.msra.mxu0 0
  %2299 = vmatprep.subr.bf16.mxu0 0
  %2300 = vmatpush1.bf16.msra.mxu0 0
  %2301 = vmatprep.subr.bf16.mxu0 0
  %2302 = vmatpush1.bf16.msra.mxu0 0
  %2303 = vmatprep.subr.bf16.mxu0 0
  %2304 = vmatpush1.bf16.msra.mxu0 0
  %2305 = vmatprep.subr.bf16.mxu0 0
  %2306 = vmatpush1.bf16.msra.mxu0 0
  %2307 = vmatprep.subr.bf16.mxu0 0
  %2308 = vmatpush1.bf16.msra.mxu0 0
  %2309 = vmatprep.mubr.bf16.mxu0 0
  %2310 = vmatmul.mubr.bf16.gmra.mrb[0].mxu0 %v2227
  %v2311 = vpop.f32.mrb[0].mxu0
  %v2312 = vadd.f32 0.0, %v2311
  %v2313 = vpop.f32.mrb[0].mxu0
  %v2314 = vpop.f32.mrb[0].mxu0
  %v2315 = vpop.f32.mrb[0].mxu0
  %2316 = vdwg.mxu0
  %v2317 = vadd.f32 %v2208, %v2312
  %s2318 = scalar_lea.vmem %s3, 512
  %v2319 = vld [vmem:[%s2318] sm:$0xf]
  %v2320 = vld [vmem:[%s2318 + $0x4] sm:$0xf]
  %v2321 = vld [vmem:[%s2318 + $0x8] sm:$0xf]
  %v2322 = vld [vmem:[%s2318 + $0xc] sm:$0xf]
  %v2323 = vld [vmem:[%s2318 + $0x10] sm:$0xf]
  %v2324 = vld [vmem:[%s2318 + $0x14] sm:$0xf]
  %v2325 = vld [vmem:[%s2318 + $0x18] sm:$0xf]
  %v2326 = vld [vmem:[%s2318 + $0x1c] sm:$0xf]
  %v2327 = vld [vmem:[%s2318 + $0x20] sm:$0xf]
  %v2328 = vld [vmem:[%s2318 + $0x24] sm:$0xf]
  %v2329 = vld [vmem:[%s2318 + $0x28] sm:$0xf]
  %v2330 = vld [vmem:[%s2318 + $0x2c] sm:$0xf]
  %v2331 = vld [vmem:[%s2318 + $0x30] sm:$0xf]
  %v2332 = vld [vmem:[%s2318 + $0x34] sm:$0xf]
  %v2333 = vld [vmem:[%s2318 + $0x38] sm:$0xf]
  %v2334 = vld [vmem:[%s2318 + $0x3c] sm:$0xf]
  %v2351 = vunpack.c.l.b16 %v2319
  %v2352 = vunpack.c.l.b16 %v2320
  %v2353 = vunpack.c.l.b16 %v2321
  %v2354 = vunpack.c.l.b16 %v2322
  %v2355 = vunpack.c.l.b16 %v2323
  %v2356 = vunpack.c.l.b16 %v2324
  %v2357 = vunpack.c.l.b16 %v2325
  %v2358 = vunpack.c.l.b16 %v2326
  %v2359 = vunpack.c.l.b16 %v2327
  %v2360 = vunpack.c.l.b16 %v2328
  %v2361 = vunpack.c.l.b16 %v2329
  %v2362 = vunpack.c.l.b16 %v2330
  %v2363 = vunpack.c.l.b16 %v2331
  %v2364 = vunpack.c.l.b16 %v2332
  %v2365 = vunpack.c.l.b16 %v2333
  %v2366 = vunpack.c.l.b16 %v2334
  %v2367 = vpack.c.b16 %v2352, %v2351
  %v2368 = vpack.c.b16 %v2354, %v2353
  %v2369 = vpack.c.b16 %v2356, %v2355
  %v2370 = vpack.c.b16 %v2358, %v2357
  %v2371 = vpack.c.b16 %v2360, %v2359
  %v2372 = vpack.c.b16 %v2362, %v2361
  %v2373 = vpack.c.b16 %v2364, %v2363
  %v2374 = vpack.c.b16 %v2366, %v2365
  %2383 = vmatprep.subr.bf16.mxu0 0
  %2384 = vmatpush1.bf16.msra.mxu0 %v2367
  %2385 = vmatprep.subr.bf16.mxu0 0
  %2386 = vmatpush1.bf16.msra.mxu0 %v2368
  %2387 = vmatprep.subr.bf16.mxu0 0
  %2388 = vmatpush1.bf16.msra.mxu0 %v2369
  %2389 = vmatprep.subr.bf16.mxu0 0
  %2390 = vmatpush1.bf16.msra.mxu0 %v2370
  %2391 = vmatprep.subr.bf16.mxu0 0
  %2392 = vmatpush1.bf16.msra.mxu0 %v2371
  %2393 = vmatprep.subr.bf16.mxu0 0
  %2394 = vmatpush1.bf16.msra.mxu0 %v2372
  %2395 = vmatprep.subr.bf16.mxu0 0
  %2396 = vmatpush1.bf16.msra.mxu0 %v2373
  %2397 = vmatprep.subr.bf16.mxu0 0
  %2398 = vmatpush1.bf16.msra.mxu0 %v2374
  %2399 = vmatprep.subr.bf16.mxu0 0
  %2400 = vmatpush1.bf16.msra.mxu0 0
  %2401 = vmatprep.subr.bf16.mxu0 0
  %2402 = vmatpush1.bf16.msra.mxu0 0
  %2403 = vmatprep.subr.bf16.mxu0 0
  %2404 = vmatpush1.bf16.msra.mxu0 0
  %2405 = vmatprep.subr.bf16.mxu0 0
  %2406 = vmatpush1.bf16.msra.mxu0 0
  %2407 = vmatprep.subr.bf16.mxu0 0
  %2408 = vmatpush1.bf16.msra.mxu0 0
  %2409 = vmatprep.subr.bf16.mxu0 0
  %2410 = vmatpush1.bf16.msra.mxu0 0
  %2411 = vmatprep.subr.bf16.mxu0 0
  %2412 = vmatpush1.bf16.msra.mxu0 0
  %2413 = vmatprep.subr.bf16.mxu0 0
  %2414 = vmatpush1.bf16.msra.mxu0 0
  %2415 = vmatprep.mubr.bf16.mxu0 0
  %2416 = vmatmul.mubr.bf16.gmra.mrb[0].mxu0 %v1452
  %v2417 = vpop.f32.mrb[0].mxu0
  %v2418 = vadd.f32 0.0, %v2417
  %v2419 = vpop.f32.mrb[0].mxu0
  %v2420 = vpop.f32.mrb[0].mxu0
  %v2421 = vpop.f32.mrb[0].mxu0
  %2422 = vdwg.mxu0
  %v2423 = vadd.f32 %v2317, %v2418
  %s2424 = scalar_lea.vmem %s3, 576
  %v2425 = vld [vmem:[%s2424] sm:$0xf]
  %v2426 = vld [vmem:[%s2424 + $0x4] sm:$0xf]
  %v2427 = vld [vmem:[%s2424 + $0x8] sm:$0xf]
  %v2428 = vld [vmem:[%s2424 + $0xc] sm:$0xf]
  %v2429 = vld [vmem:[%s2424 + $0x10] sm:$0xf]
  %v2430 = vld [vmem:[%s2424 + $0x14] sm:$0xf]
  %v2431 = vld [vmem:[%s2424 + $0x18] sm:$0xf]
  %v2432 = vld [vmem:[%s2424 + $0x1c] sm:$0xf]
  %v2433 = vld [vmem:[%s2424 + $0x20] sm:$0xf]
  %v2434 = vld [vmem:[%s2424 + $0x24] sm:$0xf]
  %v2435 = vld [vmem:[%s2424 + $0x28] sm:$0xf]
  %v2436 = vld [vmem:[%s2424 + $0x2c] sm:$0xf]
  %v2437 = vld [vmem:[%s2424 + $0x30] sm:$0xf]
  %v2438 = vld [vmem:[%s2424 + $0x34] sm:$0xf]
  %v2439 = vld [vmem:[%s2424 + $0x38] sm:$0xf]
  %v2440 = vld [vmem:[%s2424 + $0x3c] sm:$0xf]
  %v2442 = vrot.slane %v1452, 4
  %v2460 = vunpack.c.l.b16 %v2425
  %v2461 = vunpack.c.l.b16 %v2426
  %v2462 = vunpack.c.l.b16 %v2427
  %v2463 = vunpack.c.l.b16 %v2428
  %v2464 = vunpack.c.l.b16 %v2429
  %v2465 = vunpack.c.l.b16 %v2430
  %v2466 = vunpack.c.l.b16 %v2431
  %v2467 = vunpack.c.l.b16 %v2432
  %v2468 = vunpack.c.l.b16 %v2433
  %v2469 = vunpack.c.l.b16 %v2434
  %v2470 = vunpack.c.l.b16 %v2435
  %v2471 = vunpack.c.l.b16 %v2436
  %v2472 = vunpack.c.l.b16 %v2437
  %v2473 = vunpack.c.l.b16 %v2438
  %v2474 = vunpack.c.l.b16 %v2439
  %v2475 = vunpack.c.l.b16 %v2440
  %v2476 = vpack.c.b16 %v2461, %v2460
  %v2477 = vpack.c.b16 %v2463, %v2462
  %v2478 = vpack.c.b16 %v2465, %v2464
  %v2479 = vpack.c.b16 %v2467, %v2466
  %v2480 = vpack.c.b16 %v2469, %v2468
  %v2481 = vpack.c.b16 %v2471, %v2470
  %v2482 = vpack.c.b16 %v2473, %v2472
  %v2483 = vpack.c.b16 %v2475, %v2474
  %2492 = vmatprep.subr.bf16.mxu0 0
  %2493 = vmatpush1.bf16.msra.mxu0 %v2476
  %2494 = vmatprep.subr.bf16.mxu0 0
  %2495 = vmatpush1.bf16.msra.mxu0 %v2477
  %2496 = vmatprep.subr.bf16.mxu0 0
  %2497 = vmatpush1.bf16.msra.mxu0 %v2478
  %2498 = vmatprep.subr.bf16.mxu0 0
  %2499 = vmatpush1.bf16.msra.mxu0 %v2479
  %2500 = vmatprep.subr.bf16.mxu0 0
  %2501 = vmatpush1.bf16.msra.mxu0 %v2480
  %2502 = vmatprep.subr.bf16.mxu0 0
  %2503 = vmatpush1.bf16.msra.mxu0 %v2481
  %2504 = vmatprep.subr.bf16.mxu0 0
  %2505 = vmatpush1.bf16.msra.mxu0 %v2482
  %2506 = vmatprep.subr.bf16.mxu0 0
  %2507 = vmatpush1.bf16.msra.mxu0 %v2483
  %2508 = vmatprep.subr.bf16.mxu0 0
  %2509 = vmatpush1.bf16.msra.mxu0 0
  %2510 = vmatprep.subr.bf16.mxu0 0
  %2511 = vmatpush1.bf16.msra.mxu0 0
  %2512 = vmatprep.subr.bf16.mxu0 0
  %2513 = vmatpush1.bf16.msra.mxu0 0
  %2514 = vmatprep.subr.bf16.mxu0 0
  %2515 = vmatpush1.bf16.msra.mxu0 0
  %2516 = vmatprep.subr.bf16.mxu0 0
  %2517 = vmatpush1.bf16.msra.mxu0 0
  %2518 = vmatprep.subr.bf16.mxu0 0
  %2519 = vmatpush1.bf16.msra.mxu0 0
  %2520 = vmatprep.subr.bf16.mxu0 0
  %2521 = vmatpush1.bf16.msra.mxu0 0
  %2522 = vmatprep.subr.bf16.mxu0 0
  %2523 = vmatpush1.bf16.msra.mxu0 0
  %2524 = vmatprep.mubr.bf16.mxu0 0
  %2525 = vmatmul.mubr.bf16.gmra.mrb[0].mxu0 %v2442
  %v2526 = vpop.f32.mrb[0].mxu0
  %v2527 = vadd.f32 0.0, %v2526
  %v2528 = vpop.f32.mrb[0].mxu0
  %v2529 = vpop.f32.mrb[0].mxu0
  %v2530 = vpop.f32.mrb[0].mxu0
  %2531 = vdwg.mxu0
  %v2532 = vadd.f32 %v2423, %v2527
  %s2533 = scalar_lea.vmem %s3, 640
  %v2534 = vld [vmem:[%s2533] sm:$0xf]
  %v2535 = vld [vmem:[%s2533 + $0x4] sm:$0xf]
  %v2536 = vld [vmem:[%s2533 + $0x8] sm:$0xf]
  %v2537 = vld [vmem:[%s2533 + $0xc] sm:$0xf]
  %v2538 = vld [vmem:[%s2533 + $0x10] sm:$0xf]
  %v2539 = vld [vmem:[%s2533 + $0x14] sm:$0xf]
  %v2540 = vld [vmem:[%s2533 + $0x18] sm:$0xf]
  %v2541 = vld [vmem:[%s2533 + $0x1c] sm:$0xf]
  %v2542 = vld [vmem:[%s2533 + $0x20] sm:$0xf]
  %v2543 = vld [vmem:[%s2533 + $0x24] sm:$0xf]
  %v2544 = vld [vmem:[%s2533 + $0x28] sm:$0xf]
  %v2545 = vld [vmem:[%s2533 + $0x2c] sm:$0xf]
  %v2546 = vld [vmem:[%s2533 + $0x30] sm:$0xf]
  %v2547 = vld [vmem:[%s2533 + $0x34] sm:$0xf]
  %v2548 = vld [vmem:[%s2533 + $0x38] sm:$0xf]
  %v2549 = vld [vmem:[%s2533 + $0x3c] sm:$0xf]
  %v2566 = vunpack.c.l.b16 %v2534
  %v2567 = vunpack.c.l.b16 %v2535
  %v2568 = vunpack.c.l.b16 %v2536
  %v2569 = vunpack.c.l.b16 %v2537
  %v2570 = vunpack.c.l.b16 %v2538
  %v2571 = vunpack.c.l.b16 %v2539
  %v2572 = vunpack.c.l.b16 %v2540
  %v2573 = vunpack.c.l.b16 %v2541
  %v2574 = vunpack.c.l.b16 %v2542
  %v2575 = vunpack.c.l.b16 %v2543
  %v2576 = vunpack.c.l.b16 %v2544
  %v2577 = vunpack.c.l.b16 %v2545
  %v2578 = vunpack.c.l.b16 %v2546
  %v2579 = vunpack.c.l.b16 %v2547
  %v2580 = vunpack.c.l.b16 %v2548
  %v2581 = vunpack.c.l.b16 %v2549
  %v2582 = vpack.c.b16 %v2567, %v2566
  %v2583 = vpack.c.b16 %v2569, %v2568
  %v2584 = vpack.c.b16 %v2571, %v2570
  %v2585 = vpack.c.b16 %v2573, %v2572
  %v2586 = vpack.c.b16 %v2575, %v2574
  %v2587 = vpack.c.b16 %v2577, %v2576
  %v2588 = vpack.c.b16 %v2579, %v2578
  %v2589 = vpack.c.b16 %v2581, %v2580
  %2598 = vmatprep.subr.bf16.mxu0 0
  %2599 = vmatpush1.bf16.msra.mxu0 %v2582
  %2600 = vmatprep.subr.bf16.mxu0 0
  %2601 = vmatpush1.bf16.msra.mxu0 %v2583
  %2602 = vmatprep.subr.bf16.mxu0 0
  %2603 = vmatpush1.bf16.msra.mxu0 %v2584
  %2604 = vmatprep.subr.bf16.mxu0 0
  %2605 = vmatpush1.bf16.msra.mxu0 %v2585
  %2606 = vmatprep.subr.bf16.mxu0 0
  %2607 = vmatpush1.bf16.msra.mxu0 %v2586
  %2608 = vmatprep.subr.bf16.mxu0 0
  %2609 = vmatpush1.bf16.msra.mxu0 %v2587
  %2610 = vmatprep.subr.bf16.mxu0 0
  %2611 = vmatpush1.bf16.msra.mxu0 %v2588
  %2612 = vmatprep.subr.bf16.mxu0 0
  %2613 = vmatpush1.bf16.msra.mxu0 %v2589
  %2614 = vmatprep.subr.bf16.mxu0 0
  %2615 = vmatpush1.bf16.msra.mxu0 0
  %2616 = vmatprep.subr.bf16.mxu0 0
  %2617 = vmatpush1.bf16.msra.mxu0 0
  %2618 = vmatprep.subr.bf16.mxu0 0
  %2619 = vmatpush1.bf16.msra.mxu0 0
  %2620 = vmatprep.subr.bf16.mxu0 0
  %2621 = vmatpush1.bf16.msra.mxu0 0
  %2622 = vmatprep.subr.bf16.mxu0 0
  %2623 = vmatpush1.bf16.msra.mxu0 0
  %2624 = vmatprep.subr.bf16.mxu0 0
  %2625 = vmatpush1.bf16.msra.mxu0 0
  %2626 = vmatprep.subr.bf16.mxu0 0
  %2627 = vmatpush1.bf16.msra.mxu0 0
  %2628 = vmatprep.subr.bf16.mxu0 0
  %2629 = vmatpush1.bf16.msra.mxu0 0
  %2630 = vmatprep.mubr.bf16.mxu0 0
  %2631 = vmatmul.mubr.bf16.gmra.mrb[0].mxu0 %v1453
  %v2632 = vpop.f32.mrb[0].mxu0
  %v2633 = vadd.f32 0.0, %v2632
  %v2634 = vpop.f32.mrb[0].mxu0
  %v2635 = vpop.f32.mrb[0].mxu0
  %v2636 = vpop.f32.mrb[0].mxu0
  %2637 = vdwg.mxu0
  %v2638 = vadd.f32 %v2532, %v2633
  %s2639 = scalar_lea.vmem %s3, 704
  %v2640 = vld [vmem:[%s2639] sm:$0xf]
  %v2641 = vld [vmem:[%s2639 + $0x4] sm:$0xf]
  %v2642 = vld [vmem:[%s2639 + $0x8] sm:$0xf]
  %v2643 = vld [vmem:[%s2639 + $0xc] sm:$0xf]
  %v2644 = vld [vmem:[%s2639 + $0x10] sm:$0xf]
  %v2645 = vld [vmem:[%s2639 + $0x14] sm:$0xf]
  %v2646 = vld [vmem:[%s2639 + $0x18] sm:$0xf]
  %v2647 = vld [vmem:[%s2639 + $0x1c] sm:$0xf]
  %v2648 = vld [vmem:[%s2639 + $0x20] sm:$0xf]
  %v2649 = vld [vmem:[%s2639 + $0x24] sm:$0xf]
  %v2650 = vld [vmem:[%s2639 + $0x28] sm:$0xf]
  %v2651 = vld [vmem:[%s2639 + $0x2c] sm:$0xf]
  %v2652 = vld [vmem:[%s2639 + $0x30] sm:$0xf]
  %v2653 = vld [vmem:[%s2639 + $0x34] sm:$0xf]
  %v2654 = vld [vmem:[%s2639 + $0x38] sm:$0xf]
  %v2655 = vld [vmem:[%s2639 + $0x3c] sm:$0xf]
  %v2657 = vrot.slane %v1453, 4
  %v2675 = vunpack.c.l.b16 %v2640
  %v2676 = vunpack.c.l.b16 %v2641
  %v2677 = vunpack.c.l.b16 %v2642
  %v2678 = vunpack.c.l.b16 %v2643
  %v2679 = vunpack.c.l.b16 %v2644
  %v2680 = vunpack.c.l.b16 %v2645
  %v2681 = vunpack.c.l.b16 %v2646
  %v2682 = vunpack.c.l.b16 %v2647
  %v2683 = vunpack.c.l.b16 %v2648
  %v2684 = vunpack.c.l.b16 %v2649
  %v2685 = vunpack.c.l.b16 %v2650
  %v2686 = vunpack.c.l.b16 %v2651
  %v2687 = vunpack.c.l.b16 %v2652
  %v2688 = vunpack.c.l.b16 %v2653
  %v2689 = vunpack.c.l.b16 %v2654
  %v2690 = vunpack.c.l.b16 %v2655
  %v2691 = vpack.c.b16 %v2676, %v2675
  %v2692 = vpack.c.b16 %v2678, %v2677
  %v2693 = vpack.c.b16 %v2680, %v2679
  %v2694 = vpack.c.b16 %v2682, %v2681
  %v2695 = vpack.c.b16 %v2684, %v2683
  %v2696 = vpack.c.b16 %v2686, %v2685
  %v2697 = vpack.c.b16 %v2688, %v2687
  %v2698 = vpack.c.b16 %v2690, %v2689
  %2707 = vmatprep.subr.bf16.mxu0 0
  %2708 = vmatpush1.bf16.msra.mxu0 %v2691
  %2709 = vmatprep.subr.bf16.mxu0 0
  %2710 = vmatpush1.bf16.msra.mxu0 %v2692
  %2711 = vmatprep.subr.bf16.mxu0 0
  %2712 = vmatpush1.bf16.msra.mxu0 %v2693
  %2713 = vmatprep.subr.bf16.mxu0 0
  %2714 = vmatpush1.bf16.msra.mxu0 %v2694
  %2715 = vmatprep.subr.bf16.mxu0 0
  %2716 = vmatpush1.bf16.msra.mxu0 %v2695
  %2717 = vmatprep.subr.bf16.mxu0 0
  %2718 = vmatpush1.bf16.msra.mxu0 %v2696
  %2719 = vmatprep.subr.bf16.mxu0 0
  %2720 = vmatpush1.bf16.msra.mxu0 %v2697
  %2721 = vmatprep.subr.bf16.mxu0 0
  %2722 = vmatpush1.bf16.msra.mxu0 %v2698
  %2723 = vmatprep.subr.bf16.mxu0 0
  %2724 = vmatpush1.bf16.msra.mxu0 0
  %2725 = vmatprep.subr.bf16.mxu0 0
  %2726 = vmatpush1.bf16.msra.mxu0 0
  %2727 = vmatprep.subr.bf16.mxu0 0
  %2728 = vmatpush1.bf16.msra.mxu0 0
  %2729 = vmatprep.subr.bf16.mxu0 0
  %2730 = vmatpush1.bf16.msra.mxu0 0
  %2731 = vmatprep.subr.bf16.mxu0 0
  %2732 = vmatpush1.bf16.msra.mxu0 0
  %2733 = vmatprep.subr.bf16.mxu0 0
  %2734 = vmatpush1.bf16.msra.mxu0 0
  %2735 = vmatprep.subr.bf16.mxu0 0
  %2736 = vmatpush1.bf16.msra.mxu0 0
  %2737 = vmatprep.subr.bf16.mxu0 0
  %2738 = vmatpush1.bf16.msra.mxu0 0
  %2739 = vmatprep.mubr.bf16.mxu0 0
  %2740 = vmatmul.mubr.bf16.gmra.mrb[0].mxu0 %v2657
  %v2741 = vpop.f32.mrb[0].mxu0
  %v2742 = vadd.f32 0.0, %v2741
  %v2743 = vpop.f32.mrb[0].mxu0
  %v2744 = vpop.f32.mrb[0].mxu0
  %v2745 = vpop.f32.mrb[0].mxu0
  %2746 = vdwg.mxu0
  %v2747 = vadd.f32 %v2638, %v2742
  %s2748 = scalar_lea.vmem %s3, 768
  %v2749 = vld [vmem:[%s2748] sm:$0xf]
  %v2750 = vld [vmem:[%s2748 + $0x4] sm:$0xf]
  %v2751 = vld [vmem:[%s2748 + $0x8] sm:$0xf]
  %v2752 = vld [vmem:[%s2748 + $0xc] sm:$0xf]
  %v2753 = vld [vmem:[%s2748 + $0x10] sm:$0xf]
  %v2754 = vld [vmem:[%s2748 + $0x14] sm:$0xf]
  %v2755 = vld [vmem:[%s2748 + $0x18] sm:$0xf]
  %v2756 = vld [vmem:[%s2748 + $0x1c] sm:$0xf]
  %v2757 = vld [vmem:[%s2748 + $0x20] sm:$0xf]
  %v2758 = vld [vmem:[%s2748 + $0x24] sm:$0xf]
  %v2759 = vld [vmem:[%s2748 + $0x28] sm:$0xf]
  %v2760 = vld [vmem:[%s2748 + $0x2c] sm:$0xf]
  %v2761 = vld [vmem:[%s2748 + $0x30] sm:$0xf]
  %v2762 = vld [vmem:[%s2748 + $0x34] sm:$0xf]
  %v2763 = vld [vmem:[%s2748 + $0x38] sm:$0xf]
  %v2764 = vld [vmem:[%s2748 + $0x3c] sm:$0xf]
  %v2781 = vunpack.c.l.b16 %v2749
  %v2782 = vunpack.c.l.b16 %v2750
  %v2783 = vunpack.c.l.b16 %v2751
  %v2784 = vunpack.c.l.b16 %v2752
  %v2785 = vunpack.c.l.b16 %v2753
  %v2786 = vunpack.c.l.b16 %v2754
  %v2787 = vunpack.c.l.b16 %v2755
  %v2788 = vunpack.c.l.b16 %v2756
  %v2789 = vunpack.c.l.b16 %v2757
  %v2790 = vunpack.c.l.b16 %v2758
  %v2791 = vunpack.c.l.b16 %v2759
  %v2792 = vunpack.c.l.b16 %v2760
  %v2793 = vunpack.c.l.b16 %v2761
  %v2794 = vunpack.c.l.b16 %v2762
  %v2795 = vunpack.c.l.b16 %v2763
  %v2796 = vunpack.c.l.b16 %v2764
  %v2797 = vpack.c.b16 %v2782, %v2781
  %v2798 = vpack.c.b16 %v2784, %v2783
  %v2799 = vpack.c.b16 %v2786, %v2785
  %v2800 = vpack.c.b16 %v2788, %v2787
  %v2801 = vpack.c.b16 %v2790, %v2789
  %v2802 = vpack.c.b16 %v2792, %v2791
  %v2803 = vpack.c.b16 %v2794, %v2793
  %v2804 = vpack.c.b16 %v2796, %v2795
  %2813 = vmatprep.subr.bf16.mxu0 0
  %2814 = vmatpush1.bf16.msra.mxu0 %v2797
  %2815 = vmatprep.subr.bf16.mxu0 0
  %2816 = vmatpush1.bf16.msra.mxu0 %v2798
  %2817 = vmatprep.subr.bf16.mxu0 0
  %2818 = vmatpush1.bf16.msra.mxu0 %v2799
  %2819 = vmatprep.subr.bf16.mxu0 0
  %2820 = vmatpush1.bf16.msra.mxu0 %v2800
  %2821 = vmatprep.subr.bf16.mxu0 0
  %2822 = vmatpush1.bf16.msra.mxu0 %v2801
  %2823 = vmatprep.subr.bf16.mxu0 0
  %2824 = vmatpush1.bf16.msra.mxu0 %v2802
  %2825 = vmatprep.subr.bf16.mxu0 0
  %2826 = vmatpush1.bf16.msra.mxu0 %v2803
  %2827 = vmatprep.subr.bf16.mxu0 0
  %2828 = vmatpush1.bf16.msra.mxu0 %v2804
  %2829 = vmatprep.subr.bf16.mxu0 0
  %2830 = vmatpush1.bf16.msra.mxu0 0
  %2831 = vmatprep.subr.bf16.mxu0 0
  %2832 = vmatpush1.bf16.msra.mxu0 0
  %2833 = vmatprep.subr.bf16.mxu0 0
  %2834 = vmatpush1.bf16.msra.mxu0 0
  %2835 = vmatprep.subr.bf16.mxu0 0
  %2836 = vmatpush1.bf16.msra.mxu0 0
  %2837 = vmatprep.subr.bf16.mxu0 0
  %2838 = vmatpush1.bf16.msra.mxu0 0
  %2839 = vmatprep.subr.bf16.mxu0 0
  %2840 = vmatpush1.bf16.msra.mxu0 0
  %2841 = vmatprep.subr.bf16.mxu0 0
  %2842 = vmatpush1.bf16.msra.mxu0 0
  %2843 = vmatprep.subr.bf16.mxu0 0
  %2844 = vmatpush1.bf16.msra.mxu0 0
  %2845 = vmatprep.mubr.bf16.mxu0 0
  %2846 = vmatmul.mubr.bf16.gmra.mrb[0].mxu0 %v1454
  %v2847 = vpop.f32.mrb[0].mxu0
  %v2848 = vadd.f32 0.0, %v2847
  %v2849 = vpop.f32.mrb[0].mxu0
  %v2850 = vpop.f32.mrb[0].mxu0
  %v2851 = vpop.f32.mrb[0].mxu0
  %2852 = vdwg.mxu0
  %v2853 = vadd.f32 %v2747, %v2848
  %s2854 = scalar_lea.vmem %s3, 832
  %v2855 = vld [vmem:[%s2854] sm:$0xf]
  %v2856 = vld [vmem:[%s2854 + $0x4] sm:$0xf]
  %v2857 = vld [vmem:[%s2854 + $0x8] sm:$0xf]
  %v2858 = vld [vmem:[%s2854 + $0xc] sm:$0xf]
  %v2859 = vld [vmem:[%s2854 + $0x10] sm:$0xf]
  %v2860 = vld [vmem:[%s2854 + $0x14] sm:$0xf]
  %v2861 = vld [vmem:[%s2854 + $0x18] sm:$0xf]
  %v2862 = vld [vmem:[%s2854 + $0x1c] sm:$0xf]
  %v2863 = vld [vmem:[%s2854 + $0x20] sm:$0xf]
  %v2864 = vld [vmem:[%s2854 + $0x24] sm:$0xf]
  %v2865 = vld [vmem:[%s2854 + $0x28] sm:$0xf]
  %v2866 = vld [vmem:[%s2854 + $0x2c] sm:$0xf]
  %v2867 = vld [vmem:[%s2854 + $0x30] sm:$0xf]
  %v2868 = vld [vmem:[%s2854 + $0x34] sm:$0xf]
  %v2869 = vld [vmem:[%s2854 + $0x38] sm:$0xf]
  %v2870 = vld [vmem:[%s2854 + $0x3c] sm:$0xf]
  %v2872 = vrot.slane %v1454, 4
  %v2890 = vunpack.c.l.b16 %v2855
  %v2891 = vunpack.c.l.b16 %v2856
  %v2892 = vunpack.c.l.b16 %v2857
  %v2893 = vunpack.c.l.b16 %v2858
  %v2894 = vunpack.c.l.b16 %v2859
  %v2895 = vunpack.c.l.b16 %v2860
  %v2896 = vunpack.c.l.b16 %v2861
  %v2897 = vunpack.c.l.b16 %v2862
  %v2898 = vunpack.c.l.b16 %v2863
  %v2899 = vunpack.c.l.b16 %v2864
  %v2900 = vunpack.c.l.b16 %v2865
  %v2901 = vunpack.c.l.b16 %v2866
  %v2902 = vunpack.c.l.b16 %v2867
  %v2903 = vunpack.c.l.b16 %v2868
  %v2904 = vunpack.c.l.b16 %v2869
  %v2905 = vunpack.c.l.b16 %v2870
  %v2906 = vpack.c.b16 %v2891, %v2890
  %v2907 = vpack.c.b16 %v2893, %v2892
  %v2908 = vpack.c.b16 %v2895, %v2894
  %v2909 = vpack.c.b16 %v2897, %v2896
  %v2910 = vpack.c.b16 %v2899, %v2898
  %v2911 = vpack.c.b16 %v2901, %v2900
  %v2912 = vpack.c.b16 %v2903, %v2902
  %v2913 = vpack.c.b16 %v2905, %v2904
  %2922 = vmatprep.subr.bf16.mxu0 0
  %2923 = vmatpush1.bf16.msra.mxu0 %v2906
  %2924 = vmatprep.subr.bf16.mxu0 0
  %2925 = vmatpush1.bf16.msra.mxu0 %v2907
  %2926 = vmatprep.subr.bf16.mxu0 0
  %2927 = vmatpush1.bf16.msra.mxu0 %v2908
  %2928 = vmatprep.subr.bf16.mxu0 0
  %2929 = vmatpush1.bf16.msra.mxu0 %v2909
  %2930 = vmatprep.subr.bf16.mxu0 0
  %2931 = vmatpush1.bf16.msra.mxu0 %v2910
  %2932 = vmatprep.subr.bf16.mxu0 0
  %2933 = vmatpush1.bf16.msra.mxu0 %v2911
  %2934 = vmatprep.subr.bf16.mxu0 0
  %2935 = vmatpush1.bf16.msra.mxu0 %v2912
  %2936 = vmatprep.subr.bf16.mxu0 0
  %2937 = vmatpush1.bf16.msra.mxu0 %v2913
  %2938 = vmatprep.subr.bf16.mxu0 0
  %2939 = vmatpush1.bf16.msra.mxu0 0
  %2940 = vmatprep.subr.bf16.mxu0 0
  %2941 = vmatpush1.bf16.msra.mxu0 0
  %2942 = vmatprep.subr.bf16.mxu0 0
  %2943 = vmatpush1.bf16.msra.mxu0 0
  %2944 = vmatprep.subr.bf16.mxu0 0
  %2945 = vmatpush1.bf16.msra.mxu0 0
  %2946 = vmatprep.subr.bf16.mxu0 0
  %2947 = vmatpush1.bf16.msra.mxu0 0
  %2948 = vmatprep.subr.bf16.mxu0 0
  %2949 = vmatpush1.bf16.msra.mxu0 0
  %2950 = vmatprep.subr.bf16.mxu0 0
  %2951 = vmatpush1.bf16.msra.mxu0 0
  %2952 = vmatprep.subr.bf16.mxu0 0
  %2953 = vmatpush1.bf16.msra.mxu0 0
  %2954 = vmatprep.mubr.bf16.mxu0 0
  %2955 = vmatmul.mubr.bf16.gmra.mrb[0].mxu0 %v2872
  %v2956 = vpop.f32.mrb[0].mxu0
  %v2957 = vadd.f32 0.0, %v2956
  %v2958 = vpop.f32.mrb[0].mxu0
  %v2959 = vpop.f32.mrb[0].mxu0
  %v2960 = vpop.f32.mrb[0].mxu0
  %2961 = vdwg.mxu0
  %v2962 = vadd.f32 %v2853, %v2957
  %s2963 = scalar_lea.vmem %s3, 896
  %v2964 = vld [vmem:[%s2963] sm:$0xf]
  %v2965 = vld [vmem:[%s2963 + $0x4] sm:$0xf]
  %v2966 = vld [vmem:[%s2963 + $0x8] sm:$0xf]
  %v2967 = vld [vmem:[%s2963 + $0xc] sm:$0xf]
  %v2968 = vld [vmem:[%s2963 + $0x10] sm:$0xf]
  %v2969 = vld [vmem:[%s2963 + $0x14] sm:$0xf]
  %v2970 = vld [vmem:[%s2963 + $0x18] sm:$0xf]
  %v2971 = vld [vmem:[%s2963 + $0x1c] sm:$0xf]
  %v2972 = vld [vmem:[%s2963 + $0x20] sm:$0xf]
  %v2973 = vld [vmem:[%s2963 + $0x24] sm:$0xf]
  %v2974 = vld [vmem:[%s2963 + $0x28] sm:$0xf]
  %v2975 = vld [vmem:[%s2963 + $0x2c] sm:$0xf]
  %v2976 = vld [vmem:[%s2963 + $0x30] sm:$0xf]
  %v2977 = vld [vmem:[%s2963 + $0x34] sm:$0xf]
  %v2978 = vld [vmem:[%s2963 + $0x38] sm:$0xf]
  %v2979 = vld [vmem:[%s2963 + $0x3c] sm:$0xf]
  %v2996 = vunpack.c.l.b16 %v2964
  %v2997 = vunpack.c.l.b16 %v2965
  %v2998 = vunpack.c.l.b16 %v2966
  %v2999 = vunpack.c.l.b16 %v2967
  %v3000 = vunpack.c.l.b16 %v2968
  %v3001 = vunpack.c.l.b16 %v2969
  %v3002 = vunpack.c.l.b16 %v2970
  %v3003 = vunpack.c.l.b16 %v2971
  %v3004 = vunpack.c.l.b16 %v2972
  %v3005 = vunpack.c.l.b16 %v2973
  %v3006 = vunpack.c.l.b16 %v2974
  %v3007 = vunpack.c.l.b16 %v2975
  %v3008 = vunpack.c.l.b16 %v2976
  %v3009 = vunpack.c.l.b16 %v2977
  %v3010 = vunpack.c.l.b16 %v2978
  %v3011 = vunpack.c.l.b16 %v2979
  %v3012 = vpack.c.b16 %v2997, %v2996
  %v3013 = vpack.c.b16 %v2999, %v2998
  %v3014 = vpack.c.b16 %v3001, %v3000
  %v3015 = vpack.c.b16 %v3003, %v3002
  %v3016 = vpack.c.b16 %v3005, %v3004
  %v3017 = vpack.c.b16 %v3007, %v3006
  %v3018 = vpack.c.b16 %v3009, %v3008
  %v3019 = vpack.c.b16 %v3011, %v3010
  %3028 = vmatprep.subr.bf16.mxu0 0
  %3029 = vmatpush1.bf16.msra.mxu0 %v3012
  %3030 = vmatprep.subr.bf16.mxu0 0
  %3031 = vmatpush1.bf16.msra.mxu0 %v3013
  %3032 = vmatprep.subr.bf16.mxu0 0
  %3033 = vmatpush1.bf16.msra.mxu0 %v3014
  %3034 = vmatprep.subr.bf16.mxu0 0
  %3035 = vmatpush1.bf16.msra.mxu0 %v3015
  %3036 = vmatprep.subr.bf16.mxu0 0
  %3037 = vmatpush1.bf16.msra.mxu0 %v3016
  %3038 = vmatprep.subr.bf16.mxu0 0
  %3039 = vmatpush1.bf16.msra.mxu0 %v3017
  %3040 = vmatprep.subr.bf16.mxu0 0
  %3041 = vmatpush1.bf16.msra.mxu0 %v3018
  %3042 = vmatprep.subr.bf16.mxu0 0
  %3043 = vmatpush1.bf16.msra.mxu0 %v3019
  %3044 = vmatprep.subr.bf16.mxu0 0
  %3045 = vmatpush1.bf16.msra.mxu0 0
  %3046 = vmatprep.subr.bf16.mxu0 0
  %3047 = vmatpush1.bf16.msra.mxu0 0
  %3048 = vmatprep.subr.bf16.mxu0 0
  %3049 = vmatpush1.bf16.msra.mxu0 0
  %3050 = vmatprep.subr.bf16.mxu0 0
  %3051 = vmatpush1.bf16.msra.mxu0 0
  %3052 = vmatprep.subr.bf16.mxu0 0
  %3053 = vmatpush1.bf16.msra.mxu0 0
  %3054 = vmatprep.subr.bf16.mxu0 0
  %3055 = vmatpush1.bf16.msra.mxu0 0
  %3056 = vmatprep.subr.bf16.mxu0 0
  %3057 = vmatpush1.bf16.msra.mxu0 0
  %3058 = vmatprep.subr.bf16.mxu0 0
  %3059 = vmatpush1.bf16.msra.mxu0 0
  %3060 = vmatprep.mubr.bf16.mxu0 0
  %3061 = vmatmul.mubr.bf16.gmra.mrb[0].mxu0 %v1455
  %v3062 = vpop.f32.mrb[0].mxu0
  %v3063 = vadd.f32 0.0, %v3062
  %v3064 = vpop.f32.mrb[0].mxu0
  %v3065 = vpop.f32.mrb[0].mxu0
  %v3066 = vpop.f32.mrb[0].mxu0
  %3067 = vdwg.mxu0
  %v3068 = vadd.f32 %v2962, %v3063
  %s3069 = scalar_lea.vmem %s3, 960
  %v3070 = vld [vmem:[%s3069] sm:$0xf]
  %v3071 = vld [vmem:[%s3069 + $0x4] sm:$0xf]
  %v3072 = vld [vmem:[%s3069 + $0x8] sm:$0xf]
  %v3073 = vld [vmem:[%s3069 + $0xc] sm:$0xf]
  %v3074 = vld [vmem:[%s3069 + $0x10] sm:$0xf]
  %v3075 = vld [vmem:[%s3069 + $0x14] sm:$0xf]
  %v3076 = vld [vmem:[%s3069 + $0x18] sm:$0xf]
  %v3077 = vld [vmem:[%s3069 + $0x1c] sm:$0xf]
  %v3078 = vld [vmem:[%s3069 + $0x20] sm:$0xf]
  %v3079 = vld [vmem:[%s3069 + $0x24] sm:$0xf]
  %v3080 = vld [vmem:[%s3069 + $0x28] sm:$0xf]
  %v3081 = vld [vmem:[%s3069 + $0x2c] sm:$0xf]
  %v3082 = vld [vmem:[%s3069 + $0x30] sm:$0xf]
  %v3083 = vld [vmem:[%s3069 + $0x34] sm:$0xf]
  %v3084 = vld [vmem:[%s3069 + $0x38] sm:$0xf]
  %v3085 = vld [vmem:[%s3069 + $0x3c] sm:$0xf]
  %v3087 = vrot.slane %v1455, 4
  %v3105 = vunpack.c.l.b16 %v3070
  %v3106 = vunpack.c.l.b16 %v3071
  %v3107 = vunpack.c.l.b16 %v3072
  %v3108 = vunpack.c.l.b16 %v3073
  %v3109 = vunpack.c.l.b16 %v3074
  %v3110 = vunpack.c.l.b16 %v3075
  %v3111 = vunpack.c.l.b16 %v3076
  %v3112 = vunpack.c.l.b16 %v3077
  %v3113 = vunpack.c.l.b16 %v3078
  %v3114 = vunpack.c.l.b16 %v3079
  %v3115 = vunpack.c.l.b16 %v3080
  %v3116 = vunpack.c.l.b16 %v3081
  %v3117 = vunpack.c.l.b16 %v3082
  %v3118 = vunpack.c.l.b16 %v3083
  %v3119 = vunpack.c.l.b16 %v3084
  %v3120 = vunpack.c.l.b16 %v3085
  %v3121 = vpack.c.b16 %v3106, %v3105
  %v3122 = vpack.c.b16 %v3108, %v3107
  %v3123 = vpack.c.b16 %v3110, %v3109
  %v3124 = vpack.c.b16 %v3112, %v3111
  %v3125 = vpack.c.b16 %v3114, %v3113
  %v3126 = vpack.c.b16 %v3116, %v3115
  %v3127 = vpack.c.b16 %v3118, %v3117
  %v3128 = vpack.c.b16 %v3120, %v3119
  %3137 = vmatprep.subr.bf16.mxu0 0
  %3138 = vmatpush1.bf16.msra.mxu0 %v3121
  %3139 = vmatprep.subr.bf16.mxu0 0
  %3140 = vmatpush1.bf16.msra.mxu0 %v3122
  %3141 = vmatprep.subr.bf16.mxu0 0
  %3142 = vmatpush1.bf16.msra.mxu0 %v3123
  %3143 = vmatprep.subr.bf16.mxu0 0
  %3144 = vmatpush1.bf16.msra.mxu0 %v3124
  %3145 = vmatprep.subr.bf16.mxu0 0
  %3146 = vmatpush1.bf16.msra.mxu0 %v3125
  %3147 = vmatprep.subr.bf16.mxu0 0
  %3148 = vmatpush1.bf16.msra.mxu0 %v3126
  %3149 = vmatprep.subr.bf16.mxu0 0
  %3150 = vmatpush1.bf16.msra.mxu0 %v3127
  %3151 = vmatprep.subr.bf16.mxu0 0
  %3152 = vmatpush1.bf16.msra.mxu0 %v3128
  %3153 = vmatprep.subr.bf16.mxu0 0
  %3154 = vmatpush1.bf16.msra.mxu0 0
  %3155 = vmatprep.subr.bf16.mxu0 0
  %3156 = vmatpush1.bf16.msra.mxu0 0
  %3157 = vmatprep.subr.bf16.mxu0 0
  %3158 = vmatpush1.bf16.msra.mxu0 0
  %3159 = vmatprep.subr.bf16.mxu0 0
  %3160 = vmatpush1.bf16.msra.mxu0 0
  %3161 = vmatprep.subr.bf16.mxu0 0
  %3162 = vmatpush1.bf16.msra.mxu0 0
  %3163 = vmatprep.subr.bf16.mxu0 0
  %3164 = vmatpush1.bf16.msra.mxu0 0
  %3165 = vmatprep.subr.bf16.mxu0 0
  %3166 = vmatpush1.bf16.msra.mxu0 0
  %3167 = vmatprep.subr.bf16.mxu0 0
  %3168 = vmatpush1.bf16.msra.mxu0 0
  %3169 = vmatprep.mubr.bf16.mxu0 0
  %3170 = vmatmul.mubr.bf16.gmra.mrb[0].mxu0 %v3087
  %v3171 = vpop.f32.mrb[0].mxu0
  %v3172 = vadd.f32 0.0, %v3171
  %v3173 = vpop.f32.mrb[0].mxu0
  %v3174 = vpop.f32.mrb[0].mxu0
  %v3175 = vpop.f32.mrb[0].mxu0
  %3176 = vdwg.mxu0
  %v3177 = vadd.f32 %v3068, %v3172
  %s3178 = scalar_lea.vmem %s3, 1024
  %v3179 = vld [vmem:[%s3178] sm:$0xf]
  %v3180 = vld [vmem:[%s3178 + $0x4] sm:$0xf]
  %v3181 = vld [vmem:[%s3178 + $0x8] sm:$0xf]
  %v3182 = vld [vmem:[%s3178 + $0xc] sm:$0xf]
  %v3183 = vld [vmem:[%s3178 + $0x10] sm:$0xf]
  %v3184 = vld [vmem:[%s3178 + $0x14] sm:$0xf]
  %v3185 = vld [vmem:[%s3178 + $0x18] sm:$0xf]
  %v3186 = vld [vmem:[%s3178 + $0x1c] sm:$0xf]
  %v3187 = vld [vmem:[%s3178 + $0x20] sm:$0xf]
  %v3188 = vld [vmem:[%s3178 + $0x24] sm:$0xf]
  %v3189 = vld [vmem:[%s3178 + $0x28] sm:$0xf]
  %v3190 = vld [vmem:[%s3178 + $0x2c] sm:$0xf]
  %v3191 = vld [vmem:[%s3178 + $0x30] sm:$0xf]
  %v3192 = vld [vmem:[%s3178 + $0x34] sm:$0xf]
  %v3193 = vld [vmem:[%s3178 + $0x38] sm:$0xf]
  %v3194 = vld [vmem:[%s3178 + $0x3c] sm:$0xf]
  %v3211 = vunpack.c.l.b16 %v3179
  %v3212 = vunpack.c.l.b16 %v3180
  %v3213 = vunpack.c.l.b16 %v3181
  %v3214 = vunpack.c.l.b16 %v3182
  %v3215 = vunpack.c.l.b16 %v3183
  %v3216 = vunpack.c.l.b16 %v3184
  %v3217 = vunpack.c.l.b16 %v3185
  %v3218 = vunpack.c.l.b16 %v3186
  %v3219 = vunpack.c.l.b16 %v3187
  %v3220 = vunpack.c.l.b16 %v3188
  %v3221 = vunpack.c.l.b16 %v3189
  %v3222 = vunpack.c.l.b16 %v3190
  %v3223 = vunpack.c.l.b16 %v3191
  %v3224 = vunpack.c.l.b16 %v3192
  %v3225 = vunpack.c.l.b16 %v3193
  %v3226 = vunpack.c.l.b16 %v3194
  %v3227 = vpack.c.b16 %v3212, %v3211
  %v3228 = vpack.c.b16 %v3214, %v3213
  %v3229 = vpack.c.b16 %v3216, %v3215
  %v3230 = vpack.c.b16 %v3218, %v3217
  %v3231 = vpack.c.b16 %v3220, %v3219
  %v3232 = vpack.c.b16 %v3222, %v3221
  %v3233 = vpack.c.b16 %v3224, %v3223
  %v3234 = vpack.c.b16 %v3226, %v3225
  %3243 = vmatprep.subr.bf16.mxu0 0
  %3244 = vmatpush1.bf16.msra.mxu0 %v3227
  %3245 = vmatprep.subr.bf16.mxu0 0
  %3246 = vmatpush1.bf16.msra.mxu0 %v3228
  %3247 = vmatprep.subr.bf16.mxu0 0
  %3248 = vmatpush1.bf16.msra.mxu0 %v3229
  %3249 = vmatprep.subr.bf16.mxu0 0
  %3250 = vmatpush1.bf16.msra.mxu0 %v3230
  %3251 = vmatprep.subr.bf16.mxu0 0
  %3252 = vmatpush1.bf16.msra.mxu0 %v3231
  %3253 = vmatprep.subr.bf16.mxu0 0
  %3254 = vmatpush1.bf16.msra.mxu0 %v3232
  %3255 = vmatprep.subr.bf16.mxu0 0
  %3256 = vmatpush1.bf16.msra.mxu0 %v3233
  %3257 = vmatprep.subr.bf16.mxu0 0
  %3258 = vmatpush1.bf16.msra.mxu0 %v3234
  %3259 = vmatprep.subr.bf16.mxu0 0
  %3260 = vmatpush1.bf16.msra.mxu0 0
  %3261 = vmatprep.subr.bf16.mxu0 0
  %3262 = vmatpush1.bf16.msra.mxu0 0
  %3263 = vmatprep.subr.bf16.mxu0 0
  %3264 = vmatpush1.bf16.msra.mxu0 0
  %3265 = vmatprep.subr.bf16.mxu0 0
  %3266 = vmatpush1.bf16.msra.mxu0 0
  %3267 = vmatprep.subr.bf16.mxu0 0
  %3268 = vmatpush1.bf16.msra.mxu0 0
  %3269 = vmatprep.subr.bf16.mxu0 0
  %3270 = vmatpush1.bf16.msra.mxu0 0
  %3271 = vmatprep.subr.bf16.mxu0 0
  %3272 = vmatpush1.bf16.msra.mxu0 0
  %3273 = vmatprep.subr.bf16.mxu0 0
  %3274 = vmatpush1.bf16.msra.mxu0 0
  %3275 = vmatprep.mubr.bf16.mxu0 0
  %3276 = vmatmul.mubr.bf16.gmra.mrb[0].mxu0 %v1456
  %v3277 = vpop.f32.mrb[0].mxu0
  %v3278 = vadd.f32 0.0, %v3277
  %v3279 = vpop.f32.mrb[0].mxu0
  %v3280 = vpop.f32.mrb[0].mxu0
  %v3281 = vpop.f32.mrb[0].mxu0
  %3282 = vdwg.mxu0
  %v3283 = vadd.f32 %v3177, %v3278
  %s3284 = scalar_lea.vmem %s3, 1088
  %v3285 = vld [vmem:[%s3284] sm:$0xf]
  %v3286 = vld [vmem:[%s3284 + $0x4] sm:$0xf]
  %v3287 = vld [vmem:[%s3284 + $0x8] sm:$0xf]
  %v3288 = vld [vmem:[%s3284 + $0xc] sm:$0xf]
  %v3289 = vld [vmem:[%s3284 + $0x10] sm:$0xf]
  %v3290 = vld [vmem:[%s3284 + $0x14] sm:$0xf]
  %v3291 = vld [vmem:[%s3284 + $0x18] sm:$0xf]
  %v3292 = vld [vmem:[%s3284 + $0x1c] sm:$0xf]
  %v3293 = vld [vmem:[%s3284 + $0x20] sm:$0xf]
  %v3294 = vld [vmem:[%s3284 + $0x24] sm:$0xf]
  %v3295 = vld [vmem:[%s3284 + $0x28] sm:$0xf]
  %v3296 = vld [vmem:[%s3284 + $0x2c] sm:$0xf]
  %v3297 = vld [vmem:[%s3284 + $0x30] sm:$0xf]
  %v3298 = vld [vmem:[%s3284 + $0x34] sm:$0xf]
  %v3299 = vld [vmem:[%s3284 + $0x38] sm:$0xf]
  %v3300 = vld [vmem:[%s3284 + $0x3c] sm:$0xf]
  %v3302 = vrot.slane %v1456, 4
  %v3320 = vunpack.c.l.b16 %v3285
  %v3321 = vunpack.c.l.b16 %v3286
  %v3322 = vunpack.c.l.b16 %v3287
  %v3323 = vunpack.c.l.b16 %v3288
  %v3324 = vunpack.c.l.b16 %v3289
  %v3325 = vunpack.c.l.b16 %v3290
  %v3326 = vunpack.c.l.b16 %v3291
  %v3327 = vunpack.c.l.b16 %v3292
  %v3328 = vunpack.c.l.b16 %v3293
  %v3329 = vunpack.c.l.b16 %v3294
  %v3330 = vunpack.c.l.b16 %v3295
  %v3331 = vunpack.c.l.b16 %v3296
  %v3332 = vunpack.c.l.b16 %v3297
  %v3333 = vunpack.c.l.b16 %v3298
  %v3334 = vunpack.c.l.b16 %v3299
  %v3335 = vunpack.c.l.b16 %v3300
  %v3336 = vpack.c.b16 %v3321, %v3320
  %v3337 = vpack.c.b16 %v3323, %v3322
  %v3338 = vpack.c.b16 %v3325, %v3324
  %v3339 = vpack.c.b16 %v3327, %v3326
  %v3340 = vpack.c.b16 %v3329, %v3328
  %v3341 = vpack.c.b16 %v3331, %v3330
  %v3342 = vpack.c.b16 %v3333, %v3332
  %v3343 = vpack.c.b16 %v3335, %v3334
  %3352 = vmatprep.subr.bf16.mxu0 0
  %3353 = vmatpush1.bf16.msra.mxu0 %v3336
  %3354 = vmatprep.subr.bf16.mxu0 0
  %3355 = vmatpush1.bf16.msra.mxu0 %v3337
  %3356 = vmatprep.subr.bf16.mxu0 0
  %3357 = vmatpush1.bf16.msra.mxu0 %v3338
  %3358 = vmatprep.subr.bf16.mxu0 0
  %3359 = vmatpush1.bf16.msra.mxu0 %v3339
  %3360 = vmatprep.subr.bf16.mxu0 0
  %3361 = vmatpush1.bf16.msra.mxu0 %v3340
  %3362 = vmatprep.subr.bf16.mxu0 0
  %3363 = vmatpush1.bf16.msra.mxu0 %v3341
  %3364 = vmatprep.subr.bf16.mxu0 0
  %3365 = vmatpush1.bf16.msra.mxu0 %v3342
  %3366 = vmatprep.subr.bf16.mxu0 0
  %3367 = vmatpush1.bf16.msra.mxu0 %v3343
  %3368 = vmatprep.subr.bf16.mxu0 0
  %3369 = vmatpush1.bf16.msra.mxu0 0
  %3370 = vmatprep.subr.bf16.mxu0 0
  %3371 = vmatpush1.bf16.msra.mxu0 0
  %3372 = vmatprep.subr.bf16.mxu0 0
  %3373 = vmatpush1.bf16.msra.mxu0 0
  %3374 = vmatprep.subr.bf16.mxu0 0
  %3375 = vmatpush1.bf16.msra.mxu0 0
  %3376 = vmatprep.subr.bf16.mxu0 0
  %3377 = vmatpush1.bf16.msra.mxu0 0
  %3378 = vmatprep.subr.bf16.mxu0 0
  %3379 = vmatpush1.bf16.msra.mxu0 0
  %3380 = vmatprep.subr.bf16.mxu0 0
  %3381 = vmatpush1.bf16.msra.mxu0 0
  %3382 = vmatprep.subr.bf16.mxu0 0
  %3383 = vmatpush1.bf16.msra.mxu0 0
  %3384 = vmatprep.mubr.bf16.mxu0 0
  %3385 = vmatmul.mubr.bf16.gmra.mrb[0].mxu0 %v3302
  %v3386 = vpop.f32.mrb[0].mxu0
  %v3387 = vadd.f32 0.0, %v3386
  %v3388 = vpop.f32.mrb[0].mxu0
  %v3389 = vpop.f32.mrb[0].mxu0
  %v3390 = vpop.f32.mrb[0].mxu0
  %3391 = vdwg.mxu0
  %v3392 = vadd.f32 %v3283, %v3387
  %s3393 = scalar_lea.vmem %s3, 1152
  %v3394 = vld [vmem:[%s3393] sm:$0xf]
  %v3395 = vld [vmem:[%s3393 + $0x4] sm:$0xf]
  %v3396 = vld [vmem:[%s3393 + $0x8] sm:$0xf]
  %v3397 = vld [vmem:[%s3393 + $0xc] sm:$0xf]
  %v3398 = vld [vmem:[%s3393 + $0x10] sm:$0xf]
  %v3399 = vld [vmem:[%s3393 + $0x14] sm:$0xf]
  %v3400 = vld [vmem:[%s3393 + $0x18] sm:$0xf]
  %v3401 = vld [vmem:[%s3393 + $0x1c] sm:$0xf]
  %v3402 = vld [vmem:[%s3393 + $0x20] sm:$0xf]
  %v3403 = vld [vmem:[%s3393 + $0x24] sm:$0xf]
  %v3404 = vld [vmem:[%s3393 + $0x28] sm:$0xf]
  %v3405 = vld [vmem:[%s3393 + $0x2c] sm:$0xf]
  %v3406 = vld [vmem:[%s3393 + $0x30] sm:$0xf]
  %v3407 = vld [vmem:[%s3393 + $0x34] sm:$0xf]
  %v3408 = vld [vmem:[%s3393 + $0x38] sm:$0xf]
  %v3409 = vld [vmem:[%s3393 + $0x3c] sm:$0xf]
  %v3426 = vunpack.c.l.b16 %v3394
  %v3427 = vunpack.c.l.b16 %v3395
  %v3428 = vunpack.c.l.b16 %v3396
  %v3429 = vunpack.c.l.b16 %v3397
  %v3430 = vunpack.c.l.b16 %v3398
  %v3431 = vunpack.c.l.b16 %v3399
  %v3432 = vunpack.c.l.b16 %v3400
  %v3433 = vunpack.c.l.b16 %v3401
  %v3434 = vunpack.c.l.b16 %v3402
  %v3435 = vunpack.c.l.b16 %v3403
  %v3436 = vunpack.c.l.b16 %v3404
  %v3437 = vunpack.c.l.b16 %v3405
  %v3438 = vunpack.c.l.b16 %v3406
  %v3439 = vunpack.c.l.b16 %v3407
  %v3440 = vunpack.c.l.b16 %v3408
  %v3441 = vunpack.c.l.b16 %v3409
  %v3442 = vpack.c.b16 %v3427, %v3426
  %v3443 = vpack.c.b16 %v3429, %v3428
  %v3444 = vpack.c.b16 %v3431, %v3430
  %v3445 = vpack.c.b16 %v3433, %v3432
  %v3446 = vpack.c.b16 %v3435, %v3434
  %v3447 = vpack.c.b16 %v3437, %v3436
  %v3448 = vpack.c.b16 %v3439, %v3438
  %v3449 = vpack.c.b16 %v3441, %v3440
  %3458 = vmatprep.subr.bf16.mxu0 0
  %3459 = vmatpush1.bf16.msra.mxu0 %v3442
  %3460 = vmatprep.subr.bf16.mxu0 0
  %3461 = vmatpush1.bf16.msra.mxu0 %v3443
  %3462 = vmatprep.subr.bf16.mxu0 0
  %3463 = vmatpush1.bf16.msra.mxu0 %v3444
  %3464 = vmatprep.subr.bf16.mxu0 0
  %3465 = vmatpush1.bf16.msra.mxu0 %v3445
  %3466 = vmatprep.subr.bf16.mxu0 0
  %3467 = vmatpush1.bf16.msra.mxu0 %v3446
  %3468 = vmatprep.subr.bf16.mxu0 0
  %3469 = vmatpush1.bf16.msra.mxu0 %v3447
  %3470 = vmatprep.subr.bf16.mxu0 0
  %3471 = vmatpush1.bf16.msra.mxu0 %v3448
  %3472 = vmatprep.subr.bf16.mxu0 0
  %3473 = vmatpush1.bf16.msra.mxu0 %v3449
  %3474 = vmatprep.subr.bf16.mxu0 0
  %3475 = vmatpush1.bf16.msra.mxu0 0
  %3476 = vmatprep.subr.bf16.mxu0 0
  %3477 = vmatpush1.bf16.msra.mxu0 0
  %3478 = vmatprep.subr.bf16.mxu0 0
  %3479 = vmatpush1.bf16.msra.mxu0 0
  %3480 = vmatprep.subr.bf16.mxu0 0
  %3481 = vmatpush1.bf16.msra.mxu0 0
  %3482 = vmatprep.subr.bf16.mxu0 0
  %3483 = vmatpush1.bf16.msra.mxu0 0
  %3484 = vmatprep.subr.bf16.mxu0 0
  %3485 = vmatpush1.bf16.msra.mxu0 0
  %3486 = vmatprep.subr.bf16.mxu0 0
  %3487 = vmatpush1.bf16.msra.mxu0 0
  %3488 = vmatprep.subr.bf16.mxu0 0
  %3489 = vmatpush1.bf16.msra.mxu0 0
  %3490 = vmatprep.mubr.bf16.mxu0 0
  %3491 = vmatmul.mubr.bf16.gmra.mrb[0].mxu0 %v1457
  %v3492 = vpop.f32.mrb[0].mxu0
  %v3493 = vadd.f32 0.0, %v3492
  %v3494 = vpop.f32.mrb[0].mxu0
  %v3495 = vpop.f32.mrb[0].mxu0
  %v3496 = vpop.f32.mrb[0].mxu0
  %3497 = vdwg.mxu0
  %v3498 = vadd.f32 %v3392, %v3493
  %s3499 = scalar_lea.vmem %s3, 1216
  %v3500 = vld [vmem:[%s3499] sm:$0xf]
  %v3501 = vld [vmem:[%s3499 + $0x4] sm:$0xf]
  %v3502 = vld [vmem:[%s3499 + $0x8] sm:$0xf]
  %v3503 = vld [vmem:[%s3499 + $0xc] sm:$0xf]
  %v3504 = vld [vmem:[%s3499 + $0x10] sm:$0xf]
  %v3505 = vld [vmem:[%s3499 + $0x14] sm:$0xf]
  %v3506 = vld [vmem:[%s3499 + $0x18] sm:$0xf]
  %v3507 = vld [vmem:[%s3499 + $0x1c] sm:$0xf]
  %v3508 = vld [vmem:[%s3499 + $0x20] sm:$0xf]
  %v3509 = vld [vmem:[%s3499 + $0x24] sm:$0xf]
  %v3510 = vld [vmem:[%s3499 + $0x28] sm:$0xf]
  %v3511 = vld [vmem:[%s3499 + $0x2c] sm:$0xf]
  %v3512 = vld [vmem:[%s3499 + $0x30] sm:$0xf]
  %v3513 = vld [vmem:[%s3499 + $0x34] sm:$0xf]
  %v3514 = vld [vmem:[%s3499 + $0x38] sm:$0xf]
  %v3515 = vld [vmem:[%s3499 + $0x3c] sm:$0xf]
  %v3517 = vrot.slane %v1457, 4
  %v3535 = vunpack.c.l.b16 %v3500
  %v3536 = vunpack.c.l.b16 %v3501
  %v3537 = vunpack.c.l.b16 %v3502
  %v3538 = vunpack.c.l.b16 %v3503
  %v3539 = vunpack.c.l.b16 %v3504
  %v3540 = vunpack.c.l.b16 %v3505
  %v3541 = vunpack.c.l.b16 %v3506
  %v3542 = vunpack.c.l.b16 %v3507
  %v3543 = vunpack.c.l.b16 %v3508
  %v3544 = vunpack.c.l.b16 %v3509
  %v3545 = vunpack.c.l.b16 %v3510
  %v3546 = vunpack.c.l.b16 %v3511
  %v3547 = vunpack.c.l.b16 %v3512
  %v3548 = vunpack.c.l.b16 %v3513
  %v3549 = vunpack.c.l.b16 %v3514
  %v3550 = vunpack.c.l.b16 %v3515
  %v3551 = vpack.c.b16 %v3536, %v3535
  %v3552 = vpack.c.b16 %v3538, %v3537
  %v3553 = vpack.c.b16 %v3540, %v3539
  %v3554 = vpack.c.b16 %v3542, %v3541
  %v3555 = vpack.c.b16 %v3544, %v3543
  %v3556 = vpack.c.b16 %v3546, %v3545
  %v3557 = vpack.c.b16 %v3548, %v3547
  %v3558 = vpack.c.b16 %v3550, %v3549
  %3567 = vmatprep.subr.bf16.mxu0 0
  %3568 = vmatpush1.bf16.msra.mxu0 %v3551
  %3569 = vmatprep.subr.bf16.mxu0 0
  %3570 = vmatpush1.bf16.msra.mxu0 %v3552
  %3571 = vmatprep.subr.bf16.mxu0 0
  %3572 = vmatpush1.bf16.msra.mxu0 %v3553
  %3573 = vmatprep.subr.bf16.mxu0 0
  %3574 = vmatpush1.bf16.msra.mxu0 %v3554
  %3575 = vmatprep.subr.bf16.mxu0 0
  %3576 = vmatpush1.bf16.msra.mxu0 %v3555
  %3577 = vmatprep.subr.bf16.mxu0 0
  %3578 = vmatpush1.bf16.msra.mxu0 %v3556
  %3579 = vmatprep.subr.bf16.mxu0 0
  %3580 = vmatpush1.bf16.msra.mxu0 %v3557
  %3581 = vmatprep.subr.bf16.mxu0 0
  %3582 = vmatpush1.bf16.msra.mxu0 %v3558
  %3583 = vmatprep.subr.bf16.mxu0 0
  %3584 = vmatpush1.bf16.msra.mxu0 0
  %3585 = vmatprep.subr.bf16.mxu0 0
  %3586 = vmatpush1.bf16.msra.mxu0 0
  %3587 = vmatprep.subr.bf16.mxu0 0
  %3588 = vmatpush1.bf16.msra.mxu0 0
  %3589 = vmatprep.subr.bf16.mxu0 0
  %3590 = vmatpush1.bf16.msra.mxu0 0
  %3591 = vmatprep.subr.bf16.mxu0 0
  %3592 = vmatpush1.bf16.msra.mxu0 0
  %3593 = vmatprep.subr.bf16.mxu0 0
  %3594 = vmatpush1.bf16.msra.mxu0 0
  %3595 = vmatprep.subr.bf16.mxu0 0
  %3596 = vmatpush1.bf16.msra.mxu0 0
  %3597 = vmatprep.subr.bf16.mxu0 0
  %3598 = vmatpush1.bf16.msra.mxu0 0
  %3599 = vmatprep.mubr.bf16.mxu0 0
  %3600 = vmatmul.mubr.bf16.gmra.mrb[0].mxu0 %v3517
  %v3601 = vpop.f32.mrb[0].mxu0
  %v3602 = vadd.f32 0.0, %v3601
  %v3603 = vpop.f32.mrb[0].mxu0
  %v3604 = vpop.f32.mrb[0].mxu0
  %v3605 = vpop.f32.mrb[0].mxu0
  %3606 = vdwg.mxu0
  %v3607 = vadd.f32 %v3498, %v3602
  %s3608 = scalar_lea.vmem %s3, 1280
  %v3609 = vld [vmem:[%s3608] sm:$0xf]
  %v3610 = vld [vmem:[%s3608 + $0x4] sm:$0xf]
  %v3611 = vld [vmem:[%s3608 + $0x8] sm:$0xf]
  %v3612 = vld [vmem:[%s3608 + $0xc] sm:$0xf]
  %v3613 = vld [vmem:[%s3608 + $0x10] sm:$0xf]
  %v3614 = vld [vmem:[%s3608 + $0x14] sm:$0xf]
  %v3615 = vld [vmem:[%s3608 + $0x18] sm:$0xf]
  %v3616 = vld [vmem:[%s3608 + $0x1c] sm:$0xf]
  %v3617 = vld [vmem:[%s3608 + $0x20] sm:$0xf]
  %v3618 = vld [vmem:[%s3608 + $0x24] sm:$0xf]
  %v3619 = vld [vmem:[%s3608 + $0x28] sm:$0xf]
  %v3620 = vld [vmem:[%s3608 + $0x2c] sm:$0xf]
  %v3621 = vld [vmem:[%s3608 + $0x30] sm:$0xf]
  %v3622 = vld [vmem:[%s3608 + $0x34] sm:$0xf]
  %v3623 = vld [vmem:[%s3608 + $0x38] sm:$0xf]
  %v3624 = vld [vmem:[%s3608 + $0x3c] sm:$0xf]
  %v3641 = vunpack.c.l.b16 %v3609
  %v3642 = vunpack.c.l.b16 %v3610
  %v3643 = vunpack.c.l.b16 %v3611
  %v3644 = vunpack.c.l.b16 %v3612
  %v3645 = vunpack.c.l.b16 %v3613
  %v3646 = vunpack.c.l.b16 %v3614
  %v3647 = vunpack.c.l.b16 %v3615
  %v3648 = vunpack.c.l.b16 %v3616
  %v3649 = vunpack.c.l.b16 %v3617
  %v3650 = vunpack.c.l.b16 %v3618
  %v3651 = vunpack.c.l.b16 %v3619
  %v3652 = vunpack.c.l.b16 %v3620
  %v3653 = vunpack.c.l.b16 %v3621
  %v3654 = vunpack.c.l.b16 %v3622
  %v3655 = vunpack.c.l.b16 %v3623
  %v3656 = vunpack.c.l.b16 %v3624
  %v3657 = vpack.c.b16 %v3642, %v3641
  %v3658 = vpack.c.b16 %v3644, %v3643
  %v3659 = vpack.c.b16 %v3646, %v3645
  %v3660 = vpack.c.b16 %v3648, %v3647
  %v3661 = vpack.c.b16 %v3650, %v3649
  %v3662 = vpack.c.b16 %v3652, %v3651
  %v3663 = vpack.c.b16 %v3654, %v3653
  %v3664 = vpack.c.b16 %v3656, %v3655
  %3673 = vmatprep.subr.bf16.mxu0 0
  %3674 = vmatpush1.bf16.msra.mxu0 %v3657
  %3675 = vmatprep.subr.bf16.mxu0 0
  %3676 = vmatpush1.bf16.msra.mxu0 %v3658
  %3677 = vmatprep.subr.bf16.mxu0 0
  %3678 = vmatpush1.bf16.msra.mxu0 %v3659
  %3679 = vmatprep.subr.bf16.mxu0 0
  %3680 = vmatpush1.bf16.msra.mxu0 %v3660
  %3681 = vmatprep.subr.bf16.mxu0 0
  %3682 = vmatpush1.bf16.msra.mxu0 %v3661
  %3683 = vmatprep.subr.bf16.mxu0 0
  %3684 = vmatpush1.bf16.msra.mxu0 %v3662
  %3685 = vmatprep.subr.bf16.mxu0 0
  %3686 = vmatpush1.bf16.msra.mxu0 %v3663
  %3687 = vmatprep.subr.bf16.mxu0 0
  %3688 = vmatpush1.bf16.msra.mxu0 %v3664
  %3689 = vmatprep.subr.bf16.mxu0 0
  %3690 = vmatpush1.bf16.msra.mxu0 0
  %3691 = vmatprep.subr.bf16.mxu0 0
  %3692 = vmatpush1.bf16.msra.mxu0 0
  %3693 = vmatprep.subr.bf16.mxu0 0
  %3694 = vmatpush1.bf16.msra.mxu0 0
  %3695 = vmatprep.subr.bf16.mxu0 0
  %3696 = vmatpush1.bf16.msra.mxu0 0
  %3697 = vmatprep.subr.bf16.mxu0 0
  %3698 = vmatpush1.bf16.msra.mxu0 0
  %3699 = vmatprep.subr.bf16.mxu0 0
  %3700 = vmatpush1.bf16.msra.mxu0 0
  %3701 = vmatprep.subr.bf16.mxu0 0
  %3702 = vmatpush1.bf16.msra.mxu0 0
  %3703 = vmatprep.subr.bf16.mxu0 0
  %3704 = vmatpush1.bf16.msra.mxu0 0
  %3705 = vmatprep.mubr.bf16.mxu0 0
  %3706 = vmatmul.mubr.bf16.gmra.mrb[0].mxu0 %v1458
  %v3707 = vpop.f32.mrb[0].mxu0
  %v3708 = vadd.f32 0.0, %v3707
  %v3709 = vpop.f32.mrb[0].mxu0
  %v3710 = vpop.f32.mrb[0].mxu0
  %v3711 = vpop.f32.mrb[0].mxu0
  %3712 = vdwg.mxu0
  %v3713 = vadd.f32 %v3607, %v3708
  %s3714 = scalar_lea.vmem %s3, 1344
  %v3715 = vld [vmem:[%s3714] sm:$0xf]
  %v3716 = vld [vmem:[%s3714 + $0x4] sm:$0xf]
  %v3717 = vld [vmem:[%s3714 + $0x8] sm:$0xf]
  %v3718 = vld [vmem:[%s3714 + $0xc] sm:$0xf]
  %v3719 = vld [vmem:[%s3714 + $0x10] sm:$0xf]
  %v3720 = vld [vmem:[%s3714 + $0x14] sm:$0xf]
  %v3721 = vld [vmem:[%s3714 + $0x18] sm:$0xf]
  %v3722 = vld [vmem:[%s3714 + $0x1c] sm:$0xf]
  %v3723 = vld [vmem:[%s3714 + $0x20] sm:$0xf]
  %v3724 = vld [vmem:[%s3714 + $0x24] sm:$0xf]
  %v3725 = vld [vmem:[%s3714 + $0x28] sm:$0xf]
  %v3726 = vld [vmem:[%s3714 + $0x2c] sm:$0xf]
  %v3727 = vld [vmem:[%s3714 + $0x30] sm:$0xf]
  %v3728 = vld [vmem:[%s3714 + $0x34] sm:$0xf]
  %v3729 = vld [vmem:[%s3714 + $0x38] sm:$0xf]
  %v3730 = vld [vmem:[%s3714 + $0x3c] sm:$0xf]
  %v3732 = vrot.slane %v1458, 4
  %v3750 = vunpack.c.l.b16 %v3715
  %v3751 = vunpack.c.l.b16 %v3716
  %v3752 = vunpack.c.l.b16 %v3717
  %v3753 = vunpack.c.l.b16 %v3718
  %v3754 = vunpack.c.l.b16 %v3719
  %v3755 = vunpack.c.l.b16 %v3720
  %v3756 = vunpack.c.l.b16 %v3721
  %v3757 = vunpack.c.l.b16 %v3722
  %v3758 = vunpack.c.l.b16 %v3723
  %v3759 = vunpack.c.l.b16 %v3724
  %v3760 = vunpack.c.l.b16 %v3725
  %v3761 = vunpack.c.l.b16 %v3726
  %v3762 = vunpack.c.l.b16 %v3727
  %v3763 = vunpack.c.l.b16 %v3728
  %v3764 = vunpack.c.l.b16 %v3729
  %v3765 = vunpack.c.l.b16 %v3730
  %v3766 = vpack.c.b16 %v3751, %v3750
  %v3767 = vpack.c.b16 %v3753, %v3752
  %v3768 = vpack.c.b16 %v3755, %v3754
  %v3769 = vpack.c.b16 %v3757, %v3756
  %v3770 = vpack.c.b16 %v3759, %v3758
  %v3771 = vpack.c.b16 %v3761, %v3760
  %v3772 = vpack.c.b16 %v3763, %v3762
  %v3773 = vpack.c.b16 %v3765, %v3764
  %3782 = vmatprep.subr.bf16.mxu0 0
  %3783 = vmatpush1.bf16.msra.mxu0 %v3766
  %3784 = vmatprep.subr.bf16.mxu0 0
  %3785 = vmatpush1.bf16.msra.mxu0 %v3767
  %3786 = vmatprep.subr.bf16.mxu0 0
  %3787 = vmatpush1.bf16.msra.mxu0 %v3768
  %3788 = vmatprep.subr.bf16.mxu0 0
  %3789 = vmatpush1.bf16.msra.mxu0 %v3769
  %3790 = vmatprep.subr.bf16.mxu0 0
  %3791 = vmatpush1.bf16.msra.mxu0 %v3770
  %3792 = vmatprep.subr.bf16.mxu0 0
  %3793 = vmatpush1.bf16.msra.mxu0 %v3771
  %3794 = vmatprep.subr.bf16.mxu0 0
  %3795 = vmatpush1.bf16.msra.mxu0 %v3772
  %3796 = vmatprep.subr.bf16.mxu0 0
  %3797 = vmatpush1.bf16.msra.mxu0 %v3773
  %3798 = vmatprep.subr.bf16.mxu0 0
  %3799 = vmatpush1.bf16.msra.mxu0 0
  %3800 = vmatprep.subr.bf16.mxu0 0
  %3801 = vmatpush1.bf16.msra.mxu0 0
  %3802 = vmatprep.subr.bf16.mxu0 0
  %3803 = vmatpush1.bf16.msra.mxu0 0
  %3804 = vmatprep.subr.bf16.mxu0 0
  %3805 = vmatpush1.bf16.msra.mxu0 0
  %3806 = vmatprep.subr.bf16.mxu0 0
  %3807 = vmatpush1.bf16.msra.mxu0 0
  %3808 = vmatprep.subr.bf16.mxu0 0
  %3809 = vmatpush1.bf16.msra.mxu0 0
  %3810 = vmatprep.subr.bf16.mxu0 0
  %3811 = vmatpush1.bf16.msra.mxu0 0
  %3812 = vmatprep.subr.bf16.mxu0 0
  %3813 = vmatpush1.bf16.msra.mxu0 0
  %3814 = vmatprep.mubr.bf16.mxu0 0
  %3815 = vmatmul.mubr.bf16.gmra.mrb[0].mxu0 %v3732
  %v3816 = vpop.f32.mrb[0].mxu0
  %v3817 = vadd.f32 0.0, %v3816
  %v3818 = vpop.f32.mrb[0].mxu0
  %v3819 = vpop.f32.mrb[0].mxu0
  %v3820 = vpop.f32.mrb[0].mxu0
  %3821 = vdwg.mxu0
  %v3822 = vadd.f32 %v3713, %v3817
  %s3823 = scalar_lea.vmem %s3, 1408
  %v3824 = vld [vmem:[%s3823] sm:$0xf]
  %v3825 = vld [vmem:[%s3823 + $0x4] sm:$0xf]
  %v3826 = vld [vmem:[%s3823 + $0x8] sm:$0xf]
  %v3827 = vld [vmem:[%s3823 + $0xc] sm:$0xf]
  %v3828 = vld [vmem:[%s3823 + $0x10] sm:$0xf]
  %v3829 = vld [vmem:[%s3823 + $0x14] sm:$0xf]
  %v3830 = vld [vmem:[%s3823 + $0x18] sm:$0xf]
  %v3831 = vld [vmem:[%s3823 + $0x1c] sm:$0xf]
  %v3832 = vld [vmem:[%s3823 + $0x20] sm:$0xf]
  %v3833 = vld [vmem:[%s3823 + $0x24] sm:$0xf]
  %v3834 = vld [vmem:[%s3823 + $0x28] sm:$0xf]
  %v3835 = vld [vmem:[%s3823 + $0x2c] sm:$0xf]
  %v3836 = vld [vmem:[%s3823 + $0x30] sm:$0xf]
  %v3837 = vld [vmem:[%s3823 + $0x34] sm:$0xf]
  %v3838 = vld [vmem:[%s3823 + $0x38] sm:$0xf]
  %v3839 = vld [vmem:[%s3823 + $0x3c] sm:$0xf]
  %v3856 = vunpack.c.l.b16 %v3824
  %v3857 = vunpack.c.l.b16 %v3825
  %v3858 = vunpack.c.l.b16 %v3826
  %v3859 = vunpack.c.l.b16 %v3827
  %v3860 = vunpack.c.l.b16 %v3828
  %v3861 = vunpack.c.l.b16 %v3829
  %v3862 = vunpack.c.l.b16 %v3830
  %v3863 = vunpack.c.l.b16 %v3831
  %v3864 = vunpack.c.l.b16 %v3832
  %v3865 = vunpack.c.l.b16 %v3833
  %v3866 = vunpack.c.l.b16 %v3834
  %v3867 = vunpack.c.l.b16 %v3835
  %v3868 = vunpack.c.l.b16 %v3836
  %v3869 = vunpack.c.l.b16 %v3837
  %v3870 = vunpack.c.l.b16 %v3838
  %v3871 = vunpack.c.l.b16 %v3839
  %v3872 = vpack.c.b16 %v3857, %v3856
  %v3873 = vpack.c.b16 %v3859, %v3858
  %v3874 = vpack.c.b16 %v3861, %v3860
  %v3875 = vpack.c.b16 %v3863, %v3862
  %v3876 = vpack.c.b16 %v3865, %v3864
  %v3877 = vpack.c.b16 %v3867, %v3866
  %v3878 = vpack.c.b16 %v3869, %v3868
  %v3879 = vpack.c.b16 %v3871, %v3870
  %3888 = vmatprep.subr.bf16.mxu0 0
  %3889 = vmatpush1.bf16.msra.mxu0 %v3872
  %3890 = vmatprep.subr.bf16.mxu0 0
  %3891 = vmatpush1.bf16.msra.mxu0 %v3873
  %3892 = vmatprep.subr.bf16.mxu0 0
  %3893 = vmatpush1.bf16.msra.mxu0 %v3874
  %3894 = vmatprep.subr.bf16.mxu0 0
  %3895 = vmatpush1.bf16.msra.mxu0 %v3875
  %3896 = vmatprep.subr.bf16.mxu0 0
  %3897 = vmatpush1.bf16.msra.mxu0 %v3876
  %3898 = vmatprep.subr.bf16.mxu0 0
  %3899 = vmatpush1.bf16.msra.mxu0 %v3877
  %3900 = vmatprep.subr.bf16.mxu0 0
  %3901 = vmatpush1.bf16.msra.mxu0 %v3878
  %3902 = vmatprep.subr.bf16.mxu0 0
  %3903 = vmatpush1.bf16.msra.mxu0 %v3879
  %3904 = vmatprep.subr.bf16.mxu0 0
  %3905 = vmatpush1.bf16.msra.mxu0 0
  %3906 = vmatprep.subr.bf16.mxu0 0
  %3907 = vmatpush1.bf16.msra.mxu0 0
  %3908 = vmatprep.subr.bf16.mxu0 0
  %3909 = vmatpush1.bf16.msra.mxu0 0
  %3910 = vmatprep.subr.bf16.mxu0 0
  %3911 = vmatpush1.bf16.msra.mxu0 0
  %3912 = vmatprep.subr.bf16.mxu0 0
  %3913 = vmatpush1.bf16.msra.mxu0 0
  %3914 = vmatprep.subr.bf16.mxu0 0
  %3915 = vmatpush1.bf16.msra.mxu0 0
  %3916 = vmatprep.subr.bf16.mxu0 0
  %3917 = vmatpush1.bf16.msra.mxu0 0
  %3918 = vmatprep.subr.bf16.mxu0 0
  %3919 = vmatpush1.bf16.msra.mxu0 0
  %3920 = vmatprep.mubr.bf16.mxu0 0
  %3921 = vmatmul.mubr.bf16.gmra.mrb[0].mxu0 %v1459
  %v3922 = vpop.f32.mrb[0].mxu0
  %v3923 = vadd.f32 0.0, %v3922
  %v3924 = vpop.f32.mrb[0].mxu0
  %v3925 = vpop.f32.mrb[0].mxu0
  %v3926 = vpop.f32.mrb[0].mxu0
  %3927 = vdwg.mxu0
  %v3928 = vadd.f32 %v3822, %v3923
  %s3929 = scalar_lea.vmem %s3, 1472
  %v3930 = vld [vmem:[%s3929] sm:$0xf]
  %v3931 = vld [vmem:[%s3929 + $0x4] sm:$0xf]
  %v3932 = vld [vmem:[%s3929 + $0x8] sm:$0xf]
  %v3933 = vld [vmem:[%s3929 + $0xc] sm:$0xf]
  %v3934 = vld [vmem:[%s3929 + $0x10] sm:$0xf]
  %v3935 = vld [vmem:[%s3929 + $0x14] sm:$0xf]
  %v3936 = vld [vmem:[%s3929 + $0x18] sm:$0xf]
  %v3937 = vld [vmem:[%s3929 + $0x1c] sm:$0xf]
  %v3938 = vld [vmem:[%s3929 + $0x20] sm:$0xf]
  %v3939 = vld [vmem:[%s3929 + $0x24] sm:$0xf]
  %v3940 = vld [vmem:[%s3929 + $0x28] sm:$0xf]
  %v3941 = vld [vmem:[%s3929 + $0x2c] sm:$0xf]
  %v3942 = vld [vmem:[%s3929 + $0x30] sm:$0xf]
  %v3943 = vld [vmem:[%s3929 + $0x34] sm:$0xf]
  %v3944 = vld [vmem:[%s3929 + $0x38] sm:$0xf]
  %v3945 = vld [vmem:[%s3929 + $0x3c] sm:$0xf]
  %v3947 = vrot.slane %v1459, 4
  %v3965 = vunpack.c.l.b16 %v3930
  %v3966 = vunpack.c.l.b16 %v3931
  %v3967 = vunpack.c.l.b16 %v3932
  %v3968 = vunpack.c.l.b16 %v3933
  %v3969 = vunpack.c.l.b16 %v3934
  %v3970 = vunpack.c.l.b16 %v3935
  %v3971 = vunpack.c.l.b16 %v3936
  %v3972 = vunpack.c.l.b16 %v3937
  %v3973 = vunpack.c.l.b16 %v3938
  %v3974 = vunpack.c.l.b16 %v3939
  %v3975 = vunpack.c.l.b16 %v3940
  %v3976 = vunpack.c.l.b16 %v3941
  %v3977 = vunpack.c.l.b16 %v3942
  %v3978 = vunpack.c.l.b16 %v3943
  %v3979 = vunpack.c.l.b16 %v3944
  %v3980 = vunpack.c.l.b16 %v3945
  %v3981 = vpack.c.b16 %v3966, %v3965
  %v3982 = vpack.c.b16 %v3968, %v3967
  %v3983 = vpack.c.b16 %v3970, %v3969
  %v3984 = vpack.c.b16 %v3972, %v3971
  %v3985 = vpack.c.b16 %v3974, %v3973
  %v3986 = vpack.c.b16 %v3976, %v3975
  %v3987 = vpack.c.b16 %v3978, %v3977
  %v3988 = vpack.c.b16 %v3980, %v3979
  %3997 = vmatprep.subr.bf16.mxu0 0
  %3998 = vmatpush1.bf16.msra.mxu0 %v3981
  %3999 = vmatprep.subr.bf16.mxu0 0
  %4000 = vmatpush1.bf16.msra.mxu0 %v3982
  %4001 = vmatprep.subr.bf16.mxu0 0
  %4002 = vmatpush1.bf16.msra.mxu0 %v3983
  %4003 = vmatprep.subr.bf16.mxu0 0
  %4004 = vmatpush1.bf16.msra.mxu0 %v3984
  %4005 = vmatprep.subr.bf16.mxu0 0
  %4006 = vmatpush1.bf16.msra.mxu0 %v3985
  %4007 = vmatprep.subr.bf16.mxu0 0
  %4008 = vmatpush1.bf16.msra.mxu0 %v3986
  %4009 = vmatprep.subr.bf16.mxu0 0
  %4010 = vmatpush1.bf16.msra.mxu0 %v3987
  %4011 = vmatprep.subr.bf16.mxu0 0
  %4012 = vmatpush1.bf16.msra.mxu0 %v3988
  %4013 = vmatprep.subr.bf16.mxu0 0
  %4014 = vmatpush1.bf16.msra.mxu0 0
  %4015 = vmatprep.subr.bf16.mxu0 0
  %4016 = vmatpush1.bf16.msra.mxu0 0
  %4017 = vmatprep.subr.bf16.mxu0 0
  %4018 = vmatpush1.bf16.msra.mxu0 0
  %4019 = vmatprep.subr.bf16.mxu0 0
  %4020 = vmatpush1.bf16.msra.mxu0 0
  %4021 = vmatprep.subr.bf16.mxu0 0
  %4022 = vmatpush1.bf16.msra.mxu0 0
  %4023 = vmatprep.subr.bf16.mxu0 0
  %4024 = vmatpush1.bf16.msra.mxu0 0
  %4025 = vmatprep.subr.bf16.mxu0 0
  %4026 = vmatpush1.bf16.msra.mxu0 0
  %4027 = vmatprep.subr.bf16.mxu0 0
  %4028 = vmatpush1.bf16.msra.mxu0 0
  %4029 = vmatprep.mubr.bf16.mxu0 0
  %4030 = vmatmul.mubr.bf16.gmra.mrb[0].mxu0 %v3947
  %v4031 = vpop.f32.mrb[0].mxu0
  %v4032 = vadd.f32 0.0, %v4031
  %v4033 = vpop.f32.mrb[0].mxu0
  %v4034 = vpop.f32.mrb[0].mxu0
  %v4035 = vpop.f32.mrb[0].mxu0
  %4036 = vdwg.mxu0
  %v4037 = vadd.f32 %v3928, %v4032
  %s4038 = scalar_lea.vmem %s3, 1536
  %v4039 = vld [vmem:[%s4038] sm:$0xf]
  %v4040 = vld [vmem:[%s4038 + $0x4] sm:$0xf]
  %v4041 = vld [vmem:[%s4038 + $0x8] sm:$0xf]
  %v4042 = vld [vmem:[%s4038 + $0xc] sm:$0xf]
  %v4043 = vld [vmem:[%s4038 + $0x10] sm:$0xf]
  %v4044 = vld [vmem:[%s4038 + $0x14] sm:$0xf]
  %v4045 = vld [vmem:[%s4038 + $0x18] sm:$0xf]
  %v4046 = vld [vmem:[%s4038 + $0x1c] sm:$0xf]
  %v4047 = vld [vmem:[%s4038 + $0x20] sm:$0xf]
  %v4048 = vld [vmem:[%s4038 + $0x24] sm:$0xf]
  %v4049 = vld [vmem:[%s4038 + $0x28] sm:$0xf]
  %v4050 = vld [vmem:[%s4038 + $0x2c] sm:$0xf]
  %v4051 = vld [vmem:[%s4038 + $0x30] sm:$0xf]
  %v4052 = vld [vmem:[%s4038 + $0x34] sm:$0xf]
  %v4053 = vld [vmem:[%s4038 + $0x38] sm:$0xf]
  %v4054 = vld [vmem:[%s4038 + $0x3c] sm:$0xf]
  %v4071 = vunpack.c.l.b16 %v4039
  %v4072 = vunpack.c.l.b16 %v4040
  %v4073 = vunpack.c.l.b16 %v4041
  %v4074 = vunpack.c.l.b16 %v4042
  %v4075 = vunpack.c.l.b16 %v4043
  %v4076 = vunpack.c.l.b16 %v4044
  %v4077 = vunpack.c.l.b16 %v4045
  %v4078 = vunpack.c.l.b16 %v4046
  %v4079 = vunpack.c.l.b16 %v4047
  %v4080 = vunpack.c.l.b16 %v4048
  %v4081 = vunpack.c.l.b16 %v4049
  %v4082 = vunpack.c.l.b16 %v4050
  %v4083 = vunpack.c.l.b16 %v4051
  %v4084 = vunpack.c.l.b16 %v4052
  %v4085 = vunpack.c.l.b16 %v4053
  %v4086 = vunpack.c.l.b16 %v4054
  %v4087 = vpack.c.b16 %v4072, %v4071
  %v4088 = vpack.c.b16 %v4074, %v4073
  %v4089 = vpack.c.b16 %v4076, %v4075
  %v4090 = vpack.c.b16 %v4078, %v4077
  %v4091 = vpack.c.b16 %v4080, %v4079
  %v4092 = vpack.c.b16 %v4082, %v4081
  %v4093 = vpack.c.b16 %v4084, %v4083
  %v4094 = vpack.c.b16 %v4086, %v4085
  %4103 = vmatprep.subr.bf16.mxu0 0
  %4104 = vmatpush1.bf16.msra.mxu0 %v4087
  %4105 = vmatprep.subr.bf16.mxu0 0
  %4106 = vmatpush1.bf16.msra.mxu0 %v4088
  %4107 = vmatprep.subr.bf16.mxu0 0
  %4108 = vmatpush1.bf16.msra.mxu0 %v4089
  %4109 = vmatprep.subr.bf16.mxu0 0
  %4110 = vmatpush1.bf16.msra.mxu0 %v4090
  %4111 = vmatprep.subr.bf16.mxu0 0
  %4112 = vmatpush1.bf16.msra.mxu0 %v4091
  %4113 = vmatprep.subr.bf16.mxu0 0
  %4114 = vmatpush1.bf16.msra.mxu0 %v4092
  %4115 = vmatprep.subr.bf16.mxu0 0
  %4116 = vmatpush1.bf16.msra.mxu0 %v4093
  %4117 = vmatprep.subr.bf16.mxu0 0
  %4118 = vmatpush1.bf16.msra.mxu0 %v4094
  %4119 = vmatprep.subr.bf16.mxu0 0
  %4120 = vmatpush1.bf16.msra.mxu0 0
  %4121 = vmatprep.subr.bf16.mxu0 0
  %4122 = vmatpush1.bf16.msra.mxu0 0
  %4123 = vmatprep.subr.bf16.mxu0 0
  %4124 = vmatpush1.bf16.msra.mxu0 0
  %4125 = vmatprep.subr.bf16.mxu0 0
  %4126 = vmatpush1.bf16.msra.mxu0 0
  %4127 = vmatprep.subr.bf16.mxu0 0
  %4128 = vmatpush1.bf16.msra.mxu0 0
  %4129 = vmatprep.subr.bf16.mxu0 0
  %4130 = vmatpush1.bf16.msra.mxu0 0
  %4131 = vmatprep.subr.bf16.mxu0 0
  %4132 = vmatpush1.bf16.msra.mxu0 0
  %4133 = vmatprep.subr.bf16.mxu0 0
  %4134 = vmatpush1.bf16.msra.mxu0 0
  %4135 = vmatprep.mubr.bf16.mxu0 0
  %4136 = vmatmul.mubr.bf16.gmra.mrb[0].mxu0 %v1460
  %v4137 = vpop.f32.mrb[0].mxu0
  %v4138 = vadd.f32 0.0, %v4137
  %v4139 = vpop.f32.mrb[0].mxu0
  %v4140 = vpop.f32.mrb[0].mxu0
  %v4141 = vpop.f32.mrb[0].mxu0
  %4142 = vdwg.mxu0
  %v4143 = vadd.f32 %v4037, %v4138
  %v4144 = vld [vmem:[%s4] sm:$0x1]
  %v4146 = vlaneseq
  %v4147 = vshrl.u32 %v4146, 7
  %v4148 = vsub.s32 0, %v4147
  %v4149 = vrot.slane %v4144, %v4148
  %v4151 = vadd.f32 %v4143, %v4149
  %v4152 = vmax.f32 %v4151, 0.0
  %v4153 = vpack.c.bf16 %v4152, %v4152
  %v4154 = vld [vmem:[%s5] sm:$0xf]
  %v4155 = vld [vmem:[%s5 + $0x4] sm:$0xf]
  %v4156 = vld [vmem:[%s5 + $0x8] sm:$0xf]
  %v4157 = vld [vmem:[%s5 + $0xc] sm:$0xf]
  %v4158 = vld [vmem:[%s5 + $0x10] sm:$0xf]
  %v4159 = vld [vmem:[%s5 + $0x14] sm:$0xf]
  %v4160 = vld [vmem:[%s5 + $0x18] sm:$0xf]
  %v4161 = vld [vmem:[%s5 + $0x1c] sm:$0xf]
  %v4162 = vld [vmem:[%s5 + $0x20] sm:$0xf]
  %v4163 = vld [vmem:[%s5 + $0x24] sm:$0xf]
  %v4164 = vld [vmem:[%s5 + $0x28] sm:$0xf]
  %v4165 = vld [vmem:[%s5 + $0x2c] sm:$0xf]
  %v4166 = vld [vmem:[%s5 + $0x30] sm:$0xf]
  %v4167 = vld [vmem:[%s5 + $0x34] sm:$0xf]
  %v4168 = vld [vmem:[%s5 + $0x38] sm:$0xf]
  %v4169 = vld [vmem:[%s5 + $0x3c] sm:$0xf]
  %v4170 = vld [vmem:[%s6] sm:$0x1]
  %v4172 = vlaneseq
  %v4173 = vshrl.u32 %v4172, 7
  %v4174 = vsub.s32 0, %v4173
  %v4175 = vrot.slane %v4170, %v4174
  %v4193 = vunpack.c.l.b16 %v4154
  %v4194 = vunpack.c.l.b16 %v4155
  %v4195 = vunpack.c.l.b16 %v4156
  %v4196 = vunpack.c.l.b16 %v4157
  %v4197 = vunpack.c.l.b16 %v4158
  %v4198 = vunpack.c.l.b16 %v4159
  %v4199 = vunpack.c.l.b16 %v4160
  %v4200 = vunpack.c.l.b16 %v4161
  %v4201 = vunpack.c.l.b16 %v4162
  %v4202 = vunpack.c.l.b16 %v4163
  %v4203 = vunpack.c.l.b16 %v4164
  %v4204 = vunpack.c.l.b16 %v4165
  %v4205 = vunpack.c.l.b16 %v4166
  %v4206 = vunpack.c.l.b16 %v4167
  %v4207 = vunpack.c.l.b16 %v4168
  %v4208 = vunpack.c.l.b16 %v4169
  %v4209 = vpack.c.b16 %v4194, %v4193
  %v4210 = vpack.c.b16 %v4196, %v4195
  %v4211 = vpack.c.b16 %v4198, %v4197
  %v4212 = vpack.c.b16 %v4200, %v4199
  %v4213 = vpack.c.b16 %v4202, %v4201
  %v4214 = vpack.c.b16 %v4204, %v4203
  %v4215 = vpack.c.b16 %v4206, %v4205
  %v4216 = vpack.c.b16 %v4208, %v4207
  %4225 = vmatprep.subr.bf16.mxu0 0
  %4226 = vmatpush1.bf16.msra.mxu0 %v4209
  %4227 = vmatprep.subr.bf16.mxu0 0
  %4228 = vmatpush1.bf16.msra.mxu0 %v4210
  %4229 = vmatprep.subr.bf16.mxu0 0
  %4230 = vmatpush1.bf16.msra.mxu0 %v4211
  %4231 = vmatprep.subr.bf16.mxu0 0
  %4232 = vmatpush1.bf16.msra.mxu0 %v4212
  %4233 = vmatprep.subr.bf16.mxu0 0
  %4234 = vmatpush1.bf16.msra.mxu0 %v4213
  %4235 = vmatprep.subr.bf16.mxu0 0
  %4236 = vmatpush1.bf16.msra.mxu0 %v4214
  %4237 = vmatprep.subr.bf16.mxu0 0
  %4238 = vmatpush1.bf16.msra.mxu0 %v4215
  %4239 = vmatprep.subr.bf16.mxu0 0
  %4240 = vmatpush1.bf16.msra.mxu0 %v4216
  %4241 = vmatprep.subr.bf16.mxu0 0
  %4242 = vmatpush1.bf16.msra.mxu0 0
  %4243 = vmatprep.subr.bf16.mxu0 0
  %4244 = vmatpush1.bf16.msra.mxu0 0
  %4245 = vmatprep.subr.bf16.mxu0 0
  %4246 = vmatpush1.bf16.msra.mxu0 0
  %4247 = vmatprep.subr.bf16.mxu0 0
  %4248 = vmatpush1.bf16.msra.mxu0 0
  %4249 = vmatprep.subr.bf16.mxu0 0
  %4250 = vmatpush1.bf16.msra.mxu0 0
  %4251 = vmatprep.subr.bf16.mxu0 0
  %4252 = vmatpush1.bf16.msra.mxu0 0
  %4253 = vmatprep.subr.bf16.mxu0 0
  %4254 = vmatpush1.bf16.msra.mxu0 0
  %4255 = vmatprep.subr.bf16.mxu0 0
  %4256 = vmatpush1.bf16.msra.mxu0 0
  %4257 = vmatprep.mubr.bf16.mxu0 0
  %4258 = vmatmul.mubr.bf16.gmra.mrb[0].mxu0 %v4153
  %v4259 = vpop.f32.mrb[0].mxu0
  %v4260 = vadd.f32 %v4175, %v4259
  %v4261 = vpop.f32.mrb[0].mxu0
  %v4262 = vpop.f32.mrb[0].mxu0
  %v4263 = vpop.f32.mrb[0].mxu0
  %4264 = vdwg.mxu0
  %v4265 = vmax.f32 %v4260, 0.0
  %v4266 = vpack.c.bf16 %v4265, %v4265
  %v4267 = vld [vmem:[%s7] sm:$0xf]
  %v4268 = vld [vmem:[%s7 + $0x4] sm:$0xf]
  %v4269 = vld [vmem:[%s7 + $0x8] sm:$0xf]
  %v4270 = vld [vmem:[%s7 + $0xc] sm:$0xf]
  %v4271 = vld [vmem:[%s7 + $0x10] sm:$0xf]
  %v4272 = vld [vmem:[%s7 + $0x14] sm:$0xf]
  %v4273 = vld [vmem:[%s7 + $0x18] sm:$0xf]
  %v4274 = vld [vmem:[%s7 + $0x1c] sm:$0xf]
  %v4275 = vld [vmem:[%s7 + $0x20] sm:$0xf]
  %v4276 = vld [vmem:[%s7 + $0x24] sm:$0xf]
  %v4277 = vld [vmem:[%s7 + $0x28] sm:$0xf]
  %v4278 = vld [vmem:[%s7 + $0x2c] sm:$0xf]
  %v4279 = vld [vmem:[%s7 + $0x30] sm:$0xf]
  %v4280 = vld [vmem:[%s7 + $0x34] sm:$0xf]
  %v4281 = vld [vmem:[%s7 + $0x38] sm:$0xf]
  %v4282 = vld [vmem:[%s7 + $0x3c] sm:$0xf]
  %v4283 = vld [vmem:[%s8] sm:$0x1]
  %v4285 = vlaneseq
  %v4286 = vshrl.u32 %v4285, 7
  %v4287 = vsub.s32 0, %v4286
  %v4288 = vrot.slane %v4283, %v4287
  %v4306 = vunpack.c.l.b16 %v4267
  %v4307 = vunpack.c.l.b16 %v4268
  %v4308 = vunpack.c.l.b16 %v4269
  %v4309 = vunpack.c.l.b16 %v4270
  %v4310 = vunpack.c.l.b16 %v4271
  %v4311 = vunpack.c.l.b16 %v4272
  %v4312 = vunpack.c.l.b16 %v4273
  %v4313 = vunpack.c.l.b16 %v4274
  %v4314 = vunpack.c.l.b16 %v4275
  %v4315 = vunpack.c.l.b16 %v4276
  %v4316 = vunpack.c.l.b16 %v4277
  %v4317 = vunpack.c.l.b16 %v4278
  %v4318 = vunpack.c.l.b16 %v4279
  %v4319 = vunpack.c.l.b16 %v4280
  %v4320 = vunpack.c.l.b16 %v4281
  %v4321 = vunpack.c.l.b16 %v4282
  %v4322 = vpack.c.b16 %v4307, %v4306
  %v4323 = vpack.c.b16 %v4309, %v4308
  %v4324 = vpack.c.b16 %v4311, %v4310
  %v4325 = vpack.c.b16 %v4313, %v4312
  %v4326 = vpack.c.b16 %v4315, %v4314
  %v4327 = vpack.c.b16 %v4317, %v4316
  %v4328 = vpack.c.b16 %v4319, %v4318
  %v4329 = vpack.c.b16 %v4321, %v4320
  %4338 = vmatprep.subr.bf16.mxu0 0
  %4339 = vmatpush1.bf16.msra.mxu0 %v4322
  %4340 = vmatprep.subr.bf16.mxu0 0
  %4341 = vmatpush1.bf16.msra.mxu0 %v4323
  %4342 = vmatprep.subr.bf16.mxu0 0
  %4343 = vmatpush1.bf16.msra.mxu0 %v4324
  %4344 = vmatprep.subr.bf16.mxu0 0
  %4345 = vmatpush1.bf16.msra.mxu0 %v4325
  %4346 = vmatprep.subr.bf16.mxu0 0
  %4347 = vmatpush1.bf16.msra.mxu0 %v4326
  %4348 = vmatprep.subr.bf16.mxu0 0
  %4349 = vmatpush1.bf16.msra.mxu0 %v4327
  %4350 = vmatprep.subr.bf16.mxu0 0
  %4351 = vmatpush1.bf16.msra.mxu0 %v4328
  %4352 = vmatprep.subr.bf16.mxu0 0
  %4353 = vmatpush1.bf16.msra.mxu0 %v4329
  %4354 = vmatprep.subr.bf16.mxu0 0
  %4355 = vmatpush1.bf16.msra.mxu0 0
  %4356 = vmatprep.subr.bf16.mxu0 0
  %4357 = vmatpush1.bf16.msra.mxu0 0
  %4358 = vmatprep.subr.bf16.mxu0 0
  %4359 = vmatpush1.bf16.msra.mxu0 0
  %4360 = vmatprep.subr.bf16.mxu0 0
  %4361 = vmatpush1.bf16.msra.mxu0 0
  %4362 = vmatprep.subr.bf16.mxu0 0
  %4363 = vmatpush1.bf16.msra.mxu0 0
  %4364 = vmatprep.subr.bf16.mxu0 0
  %4365 = vmatpush1.bf16.msra.mxu0 0
  %4366 = vmatprep.subr.bf16.mxu0 0
  %4367 = vmatpush1.bf16.msra.mxu0 0
  %4368 = vmatprep.subr.bf16.mxu0 0
  %4369 = vmatpush1.bf16.msra.mxu0 0
  %4370 = vmatprep.mubr.bf16.mxu0 0
  %4371 = vmatmul.mubr.bf16.gmra.mrb[0].mxu0 %v4266
  %v4372 = vpop.f32.mrb[0].mxu0
  %v4373 = vadd.f32 %v4288, %v4372
  %v4374 = vpop.f32.mrb[0].mxu0
  %v4375 = vpop.f32.mrb[0].mxu0
  %v4376 = vpop.f32.mrb[0].mxu0
  %4377 = vdwg.mxu0
  %4378 = vmax.xlane.f32.xlu0 %v4373
  %v4379 = vpop.xlane.xlu0 %4378
  %v4380 = vsub.f32 %v4373, %v4379
  %v4381 = vmul.f32 %v4380, 1.442695
  %v4382 = vpow.pop %v4381
  %4383 = vadd.xlane.f32.xlu0 %v4382
  %v4384 = vpop.xlane.xlu0 %4383
  %v4385 = vlog2.pop %v4384
  %v4386 = vmul.f32 %v4385, 0.6931472
  %v4387 = vsub.f32 %v4380, %v4386
  %4388 = vst [vmem:[%s9] sm:$0xff] %v4387
  // Predicated region
  $region38: #{lenet_forward.3} parent=0 // pred_check
    _
  $region39: #{lenet_forward.3} parent=0 // pred_check_branch
    %4390 = sbr.rel (0) target = $region41
  $region40: #{lenet_forward.3} parent=0 // pred_region
    _
  $region41: #{lenet_forward.3} parent=0 // pred_fallthru
    _
  // Predicated region
  $region42: #{lenet_forward.3} parent=0 // pred_check
    _
  $region43: #{lenet_forward.3} parent=0 // pred_check_branch
    %4392 = sbr.rel (0) target = $region45
  $region44: #{lenet_forward.3} parent=0 // pred_region
    _
  $region45: #{lenet_forward.3} parent=0 // pred_fallthru
    _

</llo_original>
